<compile_context>
chip_gen: v7x
topology: tpu7x:2x2x1
jax: 0.10.0
libtpu: 0.0.40
codegen_flags: <defaults>
</compile_context>

<pallas_src>
import functools

import jax
import jax.numpy as jnp
from jax.experimental import pallas as pl
from jax.experimental.pallas import tpu as pltpu


# ---------------------------------------------------------------------------
# Pallas kernels
# ---------------------------------------------------------------------------
def _conv_mm_kernel(x_ref, w_ref, b_ref, o_ref, acc_ref, *, kh, kw, wp):
    """Fused stride-1 conv (+bias+ReLU) over a flattened NHWC image.

    x_ref  : ((Hp+1)*Wp, Cin)  bf16  -- whole padded image, H*W flattened
    w_ref  : (kh*kw, Cin, TO)  bf16  -- per-tap weight matrices
    b_ref  : (1, TO)           f32
    o_ref  : (OHf*Wp, TO)      f32   -- "wide" output (garbage cols trimmed on host)
    acc_ref: (OHf*Wp, TO)      f32   -- VMEM accumulator scratch
    """
    nrows = o_ref.shape[0]
    acc_ref[...] = jnp.zeros_like(acc_ref)
    for r in range(kh * kw):
        ky, kx = divmod(r, kw)
        a = x_ref[pl.ds(ky * wp + kx, nrows), :]          # shifted flat window
        acc_ref[...] += jnp.dot(a, w_ref[r],
                                preferred_element_type=jnp.float32)
    o_ref[...] = jnp.maximum(acc_ref[...] + b_ref[...], 0.0)


def _maxpool3x3s2_kernel(e0, e1, e2, o0, o1, o2, out_ref, *, ow):
    """3x3/stride-2 max pool for one output row.

    e*/o* : (We, C) / (Wo, C) -- even / odd input columns of rows 2*oh+{0,1,2}
    out   : (OW, C)
    """
    ve = jnp.maximum(jnp.maximum(e0[...], e1[...]), e2[...])
    vo = jnp.maximum(jnp.maximum(o0[...], o1[...]), o2[...])
    out_ref[...] = jnp.maximum(jnp.maximum(ve[:ow, :], vo[:ow, :]),
                               ve[1:ow + 1, :])


# ---------------------------------------------------------------------------
# Conv / pool wrappers
# ---------------------------------------------------------------------------
def _conv_relu(x_pad, wmat, bias, kh, kw, oh=None, ow=None):
    """Stride-1 conv + bias + ReLU on an already spatially padded NHWC input.

    x_pad: (N, Hp, Wp, Cin) f32 ; wmat: (kh*kw, Cin, Opad) bf16 ; bias: (1, Opad) f32
    Returns (N, oh, ow, Opad) f32.
    """
    N, Hp, Wp, Cin = x_pad.shape
    R, Cw, Opad = wmat.shape
    assert R == kh * kw and Cw == Cin
    OHf = Hp - kh + 1
    OWf = Wp - kw + 1
    oh = OHf if oh is None else oh
    ow = OWf if ow is None else ow
    TO = 256 if Opad % 256 == 0 else 128
    n_ob = Opad // TO
    nrows = OHf * Wp

    # one extra zero row so the last shifted window never reads out of bounds
    xflat = jnp.pad(x_pad, ((0, 0), (0, 1), (0, 0), (0, 0))).astype(jnp.bfloat16)
    xflat = xflat.reshape(N, (Hp + 1) * Wp, Cin)

    out = pl.pallas_call(
        functools.partial(_conv_mm_kernel, kh=kh, kw=kw, wp=Wp),
        out_shape=jax.ShapeDtypeStruct((N, nrows, Opad), jnp.float32),
        grid_spec=pltpu.PrefetchScalarGridSpec(
            num_scalar_prefetch=0,
            grid=(N, n_ob),
            in_specs=[
                pl.BlockSpec((None, (Hp + 1) * Wp, Cin), lambda n, j: (n, 0, 0)),
                pl.BlockSpec((R, Cin, TO), lambda n, j: (0, 0, j)),
                pl.BlockSpec((1, TO), lambda n, j: (0, j)),
            ],
            out_specs=pl.BlockSpec((None, nrows, TO), lambda n, j: (n, 0, j)),
            scratch_shapes=[pltpu.VMEM((nrows, TO), jnp.float32)],
        ),
        compiler_params=pltpu.CompilerParams(
            dimension_semantics=("parallel", "parallel"),
            vmem_limit_bytes=32 * 1024 * 1024,
        ),
    )(xflat, wmat, bias)

    return out.reshape(N, OHf, Wp, Opad)[:, :oh, :ow, :]


def maxpool2d_nhwc(x):
    """3x3 stride-2 max pool (no padding), NHWC, channels on the lane axis."""
    N, H, W, C = x.shape
    OH = (H - 3) // 2 + 1
    OW = (W - 3) // 2 + 1
    xe = x[:, :, 0::2, :]                      # even columns
    xo = x[:, :, 1::2, :]                      # odd  columns
    We, Wo = xe.shape[2], xo.shape[2]

    def row_spec(dy, w_arr):
        return pl.BlockSpec((None, None, w_arr, C),
                            lambda n, i, dy=dy: (n, 2 * i + dy, 0, 0))

    return pl.pallas_call(
        functools.partial(_maxpool3x3s2_kernel, ow=OW),
        out_shape=jax.ShapeDtypeStruct((N, OH, OW, C), jnp.float32),
        grid_spec=pltpu.PrefetchScalarGridSpec(
            num_scalar_prefetch=0,
            grid=(N, OH),
            in_specs=[row_spec(0, We), row_spec(1, We), row_spec(2, We),
                      row_spec(0, Wo), row_spec(1, Wo), row_spec(2, Wo)],
            out_specs=pl.BlockSpec((None, None, OW, C),
                                   lambda n, i: (n, i, 0, 0)),
        ),
        compiler_params=pltpu.CompilerParams(
            dimension_semantics=("parallel", "parallel")),
    )(xe, xe, xe, xo, xo, xo)


def _space_to_depth4(x):
    """(N, H, W, C) -> (N, ceil(H/4), ceil(W/4), 16*C); zero round-up padding."""
    N, H, W, C = x.shape
    Hs = -(-H // 4) * 4
    Ws = -(-W // 4) * 4
    x = jnp.pad(x, ((0, 0), (0, Hs - H), (0, Ws - W), (0, 0)))
    x = x.reshape(N, Hs // 4, 4, Ws // 4, 4, C)
    return x.transpose(0, 1, 3, 2, 4, 5).reshape(N, Hs // 4, Ws // 4, 16 * C)


# ---------------------------------------------------------------------------
# AlexNet feature-extractor parameters + forward
# ---------------------------------------------------------------------------
_CONV_CFG = [
    # (out_c, in_c, kh, kw, stride, pad)
    (64,   3, 11, 11, 4, 2),   # features[0]
    (192, 64,  5,  5, 1, 2),   # features[3]
    (384, 192, 3,  3, 1, 1),   # features[6]
    (256, 384, 3,  3, 1, 1),   # features[8]
    (256, 256, 3,  3, 1, 1),   # features[10]
]
_OPAD = [128, 256, 384, 256, 256]   # output channels padded to 128 multiples
_REAL = [64, 192, 384, 256, 256]


def init_params(key):
    """Deterministic synthetic weights with AlexNet shapes (no checkpoint load)."""
    params = []
    for (oc, ic, kh, kw, _, _) in _CONV_CFG:
        key, kw_key, kb_key = jax.random.split(key, 3)
        fan_in = ic * kh * kw
        w = jax.random.normal(kw_key, (oc, ic, kh, kw), jnp.float32) / jnp.sqrt(fan_in)
        b = 0.01 * jax.random.normal(kb_key, (oc,), jnp.float32)
        params.append((w, b))
    return params


def prepare_params(raw):
    """Rearrange weights to per-tap (R, Cin, Opad) bf16 matrices + padded biases."""
    prepped = []
    # conv1: fold 11x11/s4 into 3x3/s1 over the 4x4 space-to-depth input (C'=48)
    w1, b1 = raw[0]
    O = w1.shape[0]
    wp = jnp.pad(w1, ((0, 0), (0, 0), (0, 1), (0, 1)))        # (64, 3, 12, 12)
    wp = wp.reshape(O, 3, 3, 4, 3, 4)                          # (o, c, by, dy, bx, dx)
    wp = wp.transpose(2, 4, 3, 5, 1, 0).reshape(9, 48, O)      # (r, dy*12+dx*3+c, o)
    wmat = jnp.pad(wp, ((0, 0), (0, 0), (0, _OPAD[0] - O))).astype(jnp.bfloat16)
    bias = jnp.pad(b1, (0, _OPAD[0] - O)).reshape(1, -1).astype(jnp.float32)
    prepped.append((wmat, bias))
    cin_pad = _OPAD[0]
    for li in range(1, 5):
        w, b = raw[li]
        O, C, KH, KW = w.shape
        wm = w.transpose(2, 3, 1, 0).reshape(KH * KW, C, O)    # (r, c, o)
        wm = jnp.pad(wm, ((0, 0), (0, cin_pad - C), (0, _OPAD[li] - O)))
        prepped.append((wm.astype(jnp.bfloat16),
                        jnp.pad(b, (0, _OPAD[li] - O)).reshape(1, -1)
                        .astype(jnp.float32)))
        cin_pad = _OPAD[li]
    return prepped


def _to_nchw(y, c_real):
    return jnp.transpose(y[..., :c_real], (0, 3, 1, 2))


def alexnet_feat_forward(params, x_nchw, layer=0):
    """Mirrors AlexNet_feat.forward for layer in {0,...,4}. NCHW in / NCHW out."""
    x = jnp.transpose(x_nchw, (0, 2, 3, 1)).astype(jnp.float32)   # NHWC inside
    N, H, W, _ = x.shape
    (w1, b1), (w2, b2), (w3, b3), (w4, b4), (w5, b5) = params

    # conv1 (11x11 / s4 / p2) + ReLU  via space-to-depth -> 3x3 / s1
    oh1 = (H + 4 - 11) // 4 + 1
    ow1 = (W + 4 - 11) // 4 + 1
    xp = jnp.pad(x, ((0, 0), (2, 2), (2, 2), (0, 0)))
    y = _conv_relu(_space_to_depth4(xp), w1, b1, 3, 3, oh1, ow1)
    y = maxpool2d_nhwc(y)                                         # pool1
    if layer == 0:
        return _to_nchw(y, _REAL[0])
    y = _conv_relu(jnp.pad(y, ((0, 0), (2, 2), (2, 2), (0, 0))), w2, b2, 5, 5)
    if layer == 1:
        return _to_nchw(y, _REAL[1])
    y = maxpool2d_nhwc(y)                                         # pool2
    y = _conv_relu(jnp.pad(y, ((0, 0), (1, 1), (1, 1), (0, 0))), w3, b3, 3, 3)
    if layer == 2:
        return _to_nchw(y, _REAL[2])
    y = _conv_relu(jnp.pad(y, ((0, 0), (1, 1), (1, 1), (0, 0))), w4, b4, 3, 3)
    if layer == 3:
        return _to_nchw(y, _REAL[3])
    y = _conv_relu(jnp.pad(y, ((0, 0), (1, 1), (1, 1), (0, 0))), w5, b5, 3, 3)
    return _to_nchw(y, _REAL[4])


# ---------------------------------------------------------------------------
# Pure-XLA reference for the layer-0 path (correctness check)
# ---------------------------------------------------------------------------
def _reference_layer0(raw, x_nchw):
    w1, b1 = raw[0]
    y = jax.lax.conv_general_dilated(
        x_nchw, w1, window_strides=(4, 4), padding=((2, 2), (2, 2)),
        dimension_numbers=("NCHW", "OIHW", "NCHW"))
    y = jnp.maximum(y + b1.reshape(1, -1, 1, 1), 0.0)
    y = jax.lax.reduce_window(y, -jnp.inf, jax.lax.max,
                              (1, 1, 3, 3), (1, 1, 2, 2), "VALID")
    return y


# ---------------------------------------------------------------------------
if __name__ == "__main__":
    key = jax.random.PRNGKey(0)
    pkey, xkey = jax.random.split(key)
    raw = init_params(pkey)
    params = prepare_params(raw)

    # Small input consistent with AlexNet's first conv:
    # 67x67 -> conv1 16x16 -> pool 7x7 -> ... -> conv5 3x3.
    x = jax.random.normal(xkey, (2, 3, 67, 67), jnp.float32)

    fwd = jax.jit(alexnet_feat_forward, static_argnums=(2,))

    out0 = jax.block_until_ready(fwd(params, x, 0))       # default path (layer 0)
    assert out0.shape == (2, 64, 7, 7), out0.shape

    # value check against the XLA reference (bf16 matmul operands -> loose tol)
    ref0 = _reference_layer0(raw, x)
    err = float(jnp.max(jnp.abs(out0 - ref0)))
    assert err < 0.25, f"layer0 max abs err {err}"

    out4 = jax.block_until_ready(fwd(params, x, 4))       # deepest path (layer 4)
    assert out4.shape == (2, 256, 3, 3), out4.shape

    print("KERNEL_OK")
</pallas_src>

<mosaic_0001>
module attributes {stable_mosaic.version = 11 : i64} {
  func.func @_conv_mm_kernel(%arg0: i32, %arg1: i32, %arg2: memref<1x342x48xbf16, #tpu.memory_space<vmem>>, %arg3: memref<9x48x128xbf16, #tpu.memory_space<vmem>>, %arg4: memref<1x128xf32, #tpu.memory_space<vmem>>, %arg5: memref<1x288x128xf32, #tpu.memory_space<vmem>>, %arg6: memref<288x128xf32, #tpu.memory_space<vmem>>) attributes {dimension_semantics = [#tpu.dimension_semantics<parallel>, #tpu.dimension_semantics<parallel>], iteration_bounds = array<i64: 2, 1>, scalar_prefetch = 0 : i64, scratch_operands = 1 : i64, tpu.core_type = #tpu.core_type<tc>, window_params = [{transform_indices = @transform_0, window_bounds = array<i64: 1, 342, 48>}, {transform_indices = @transform_1, window_bounds = array<i64: 9, 48, 128>}, {transform_indices = @transform_2, window_bounds = array<i64: 1, 128>}, {transform_indices = @transform_3, window_bounds = array<i64: 1, 288, 128>}]} {
    %cst = arith.constant 0.000000e+00 : f32
    %0 = vector.broadcast %cst : f32 to vector<288x128xf32>
    %c0 = arith.constant 0 : index
    %c0_0 = arith.constant 0 : index
    %1 = vector.load %arg6[%c0, %c0_0] : memref<288x128xf32, #tpu.memory_space<vmem>>, vector<288x128xf32>
    tpu.vector_store %arg6[%c0, %c0_0], %0 {strides = array<i32>} : memref<288x128xf32, #tpu.memory_space<vmem>>, vector<288x128xf32>,
    %c0_1 = arith.constant 0 : index
    %c0_2 = arith.constant 0 : index
    %c0_3 = arith.constant 0 : index
    %2 = vector.load %arg2[%c0_1, %c0_2, %c0_3] : memref<1x342x48xbf16, #tpu.memory_space<vmem>>, vector<1x288x48xbf16>
    %3 = vector.shape_cast %2 : vector<1x288x48xbf16> to vector<288x48xbf16>
    %c0_4 = arith.constant 0 : index
    %c0_5 = arith.constant 0 : index
    %4 = vector.load %arg6[%c0_4, %c0_5] : memref<288x128xf32, #tpu.memory_space<vmem>>, vector<288x128xf32>
    %c0_6 = arith.constant 0 : index
    %c0_7 = arith.constant 0 : index
    %c0_8 = arith.constant 0 : index
    %5 = vector.load %arg3[%c0_6, %c0_7, %c0_8] : memref<9x48x128xbf16, #tpu.memory_space<vmem>>, vector<1x48x128xbf16>
    %6 = vector.shape_cast %5 : vector<1x48x128xbf16> to vector<48x128xbf16>
    %cst_9 = arith.constant dense<0.000000e+00> : vector<288x128xf32>
    %7 = tpu.matmul %3, %6, %cst_9 {dimension_numbers = #tpu.dot_dimension_numbers<[1], [0], [0], [1], [0, 0, 1, 1], [], []>} : vector<288x48xbf16>, vector<48x128xbf16>, vector<288x128xf32> -> vector<288x128xf32>
    %8 = arith.addf %4, %7 : vector<288x128xf32>
    %c0_10 = arith.constant 0 : index
    %c0_11 = arith.constant 0 : index
    %9 = vector.load %arg6[%c0_10, %c0_11] : memref<288x128xf32, #tpu.memory_space<vmem>>, vector<288x128xf32>
    tpu.vector_store %arg6[%c0_10, %c0_11], %8 {strides = array<i32>} : memref<288x128xf32, #tpu.memory_space<vmem>>, vector<288x128xf32>,
    %c0_12 = arith.constant 0 : index
    %c1 = arith.constant 1 : index
    %c0_13 = arith.constant 0 : index
    %10 = vector.load %arg2[%c0_12, %c1, %c0_13] : memref<1x342x48xbf16, #tpu.memory_space<vmem>>, vector<1x288x48xbf16>
    %11 = vector.shape_cast %10 : vector<1x288x48xbf16> to vector<288x48xbf16>
    %c0_14 = arith.constant 0 : index
    %c0_15 = arith.constant 0 : index
    %12 = vector.load %arg6[%c0_14, %c0_15] : memref<288x128xf32, #tpu.memory_space<vmem>>, vector<288x128xf32>
    %c1_16 = arith.constant 1 : index
    %c0_17 = arith.constant 0 : index
    %c0_18 = arith.constant 0 : index
    %13 = vector.load %arg3[%c1_16, %c0_17, %c0_18] : memref<9x48x128xbf16, #tpu.memory_space<vmem>>, vector<1x48x128xbf16>
    %14 = vector.shape_cast %13 : vector<1x48x128xbf16> to vector<48x128xbf16>
    %cst_19 = arith.constant dense<0.000000e+00> : vector<288x128xf32>
    %15 = tpu.matmul %11, %14, %cst_19 {dimension_numbers = #tpu.dot_dimension_numbers<[1], [0], [0], [1], [0, 0, 1, 1], [], []>} : vector<288x48xbf16>, vector<48x128xbf16>, vector<288x128xf32> -> vector<288x128xf32>
    %16 = arith.addf %12, %15 : vector<288x128xf32>
    %c0_20 = arith.constant 0 : index
    %c0_21 = arith.constant 0 : index
    %17 = vector.load %arg6[%c0_20, %c0_21] : memref<288x128xf32, #tpu.memory_space<vmem>>, vector<288x128xf32>
    tpu.vector_store %arg6[%c0_20, %c0_21], %16 {strides = array<i32>} : memref<288x128xf32, #tpu.memory_space<vmem>>, vector<288x128xf32>,
    %c0_22 = arith.constant 0 : index
    %c2 = arith.constant 2 : index
    %c0_23 = arith.constant 0 : index
    %18 = vector.load %arg2[%c0_22, %c2, %c0_23] : memref<1x342x48xbf16, #tpu.memory_space<vmem>>, vector<1x288x48xbf16>
    %19 = vector.shape_cast %18 : vector<1x288x48xbf16> to vector<288x48xbf16>
    %c0_24 = arith.constant 0 : index
    %c0_25 = arith.constant 0 : index
    %20 = vector.load %arg6[%c0_24, %c0_25] : memref<288x128xf32, #tpu.memory_space<vmem>>, vector<288x128xf32>
    %c2_26 = arith.constant 2 : index
    %c0_27 = arith.constant 0 : index
    %c0_28 = arith.constant 0 : index
    %21 = vector.load %arg3[%c2_26, %c0_27, %c0_28] : memref<9x48x128xbf16, #tpu.memory_space<vmem>>, vector<1x48x128xbf16>
    %22 = vector.shape_cast %21 : vector<1x48x128xbf16> to vector<48x128xbf16>
    %cst_29 = arith.constant dense<0.000000e+00> : vector<288x128xf32>
    %23 = tpu.matmul %19, %22, %cst_29 {dimension_numbers = #tpu.dot_dimension_numbers<[1], [0], [0], [1], [0, 0, 1, 1], [], []>} : vector<288x48xbf16>, vector<48x128xbf16>, vector<288x128xf32> -> vector<288x128xf32>
    %24 = arith.addf %20, %23 : vector<288x128xf32>
    %c0_30 = arith.constant 0 : index
    %c0_31 = arith.constant 0 : index
    %25 = vector.load %arg6[%c0_30, %c0_31] : memref<288x128xf32, #tpu.memory_space<vmem>>, vector<288x128xf32>
    tpu.vector_store %arg6[%c0_30, %c0_31], %24 {strides = array<i32>} : memref<288x128xf32, #tpu.memory_space<vmem>>, vector<288x128xf32>,
    %c0_32 = arith.constant 0 : index
    %c18 = arith.constant 18 : index
    %c0_33 = arith.constant 0 : index
    %26 = vector.load %arg2[%c0_32, %c18, %c0_33] : memref<1x342x48xbf16, #tpu.memory_space<vmem>>, vector<1x288x48xbf16>
    %27 = vector.shape_cast %26 : vector<1x288x48xbf16> to vector<288x48xbf16>
    %c0_34 = arith.constant 0 : index
    %c0_35 = arith.constant 0 : index
    %28 = vector.load %arg6[%c0_34, %c0_35] : memref<288x128xf32, #tpu.memory_space<vmem>>, vector<288x128xf32>
    %c3 = arith.constant 3 : index
    %c0_36 = arith.constant 0 : index
    %c0_37 = arith.constant 0 : index
    %29 = vector.load %arg3[%c3, %c0_36, %c0_37] : memref<9x48x128xbf16, #tpu.memory_space<vmem>>, vector<1x48x128xbf16>
    %30 = vector.shape_cast %29 : vector<1x48x128xbf16> to vector<48x128xbf16>
    %cst_38 = arith.constant dense<0.000000e+00> : vector<288x128xf32>
    %31 = tpu.matmul %27, %30, %cst_38 {dimension_numbers = #tpu.dot_dimension_numbers<[1], [0], [0], [1], [0, 0, 1, 1], [], []>} : vector<288x48xbf16>, vector<48x128xbf16>, vector<288x128xf32> -> vector<288x128xf32>
    %32 = arith.addf %28, %31 : vector<288x128xf32>
    %c0_39 = arith.constant 0 : index
    %c0_40 = arith.constant 0 : index
    %33 = vector.load %arg6[%c0_39, %c0_40] : memref<288x128xf32, #tpu.memory_space<vmem>>, vector<288x128xf32>
    tpu.vector_store %arg6[%c0_39, %c0_40], %32 {strides = array<i32>} : memref<288x128xf32, #tpu.memory_space<vmem>>, vector<288x128xf32>,
    %c0_41 = arith.constant 0 : index
    %c19 = arith.constant 19 : index
    %c0_42 = arith.constant 0 : index
    %34 = vector.load %arg2[%c0_41, %c19, %c0_42] : memref<1x342x48xbf16, #tpu.memory_space<vmem>>, vector<1x288x48xbf16>
    %35 = vector.shape_cast %34 : vector<1x288x48xbf16> to vector<288x48xbf16>
    %c0_43 = arith.constant 0 : index
    %c0_44 = arith.constant 0 : index
    %36 = vector.load %arg6[%c0_43, %c0_44] : memref<288x128xf32, #tpu.memory_space<vmem>>, vector<288x128xf32>
    %c4 = arith.constant 4 : index
    %c0_45 = arith.constant 0 : index
    %c0_46 = arith.constant 0 : index
    %37 = vector.load %arg3[%c4, %c0_45, %c0_46] : memref<9x48x128xbf16, #tpu.memory_space<vmem>>, vector<1x48x128xbf16>
    %38 = vector.shape_cast %37 : vector<1x48x128xbf16> to vector<48x128xbf16>
    %cst_47 = arith.constant dense<0.000000e+00> : vector<288x128xf32>
    %39 = tpu.matmul %35, %38, %cst_47 {dimension_numbers = #tpu.dot_dimension_numbers<[1], [0], [0], [1], [0, 0, 1, 1], [], []>} : vector<288x48xbf16>, vector<48x128xbf16>, vector<288x128xf32> -> vector<288x128xf32>
    %40 = arith.addf %36, %39 : vector<288x128xf32>
    %c0_48 = arith.constant 0 : index
    %c0_49 = arith.constant 0 : index
    %41 = vector.load %arg6[%c0_48, %c0_49] : memref<288x128xf32, #tpu.memory_space<vmem>>, vector<288x128xf32>
    tpu.vector_store %arg6[%c0_48, %c0_49], %40 {strides = array<i32>} : memref<288x128xf32, #tpu.memory_space<vmem>>, vector<288x128xf32>,
    %c0_50 = arith.constant 0 : index
    %c20 = arith.constant 20 : index
    %c0_51 = arith.constant 0 : index
    %42 = vector.load %arg2[%c0_50, %c20, %c0_51] : memref<1x342x48xbf16, #tpu.memory_space<vmem>>, vector<1x288x48xbf16>
    %43 = vector.shape_cast %42 : vector<1x288x48xbf16> to vector<288x48xbf16>
    %c0_52 = arith.constant 0 : index
    %c0_53 = arith.constant 0 : index
    %44 = vector.load %arg6[%c0_52, %c0_53] : memref<288x128xf32, #tpu.memory_space<vmem>>, vector<288x128xf32>
    %c5 = arith.constant 5 : index
    %c0_54 = arith.constant 0 : index
    %c0_55 = arith.constant 0 : index
    %45 = vector.load %arg3[%c5, %c0_54, %c0_55] : memref<9x48x128xbf16, #tpu.memory_space<vmem>>, vector<1x48x128xbf16>
    %46 = vector.shape_cast %45 : vector<1x48x128xbf16> to vector<48x128xbf16>
    %cst_56 = arith.constant dense<0.000000e+00> : vector<288x128xf32>
    %47 = tpu.matmul %43, %46, %cst_56 {dimension_numbers = #tpu.dot_dimension_numbers<[1], [0], [0], [1], [0, 0, 1, 1], [], []>} : vector<288x48xbf16>, vector<48x128xbf16>, vector<288x128xf32> -> vector<288x128xf32>
    %48 = arith.addf %44, %47 : vector<288x128xf32>
    %c0_57 = arith.constant 0 : index
    %c0_58 = arith.constant 0 : index
    %49 = vector.load %arg6[%c0_57, %c0_58] : memref<288x128xf32, #tpu.memory_space<vmem>>, vector<288x128xf32>
    tpu.vector_store %arg6[%c0_57, %c0_58], %48 {strides = array<i32>} : memref<288x128xf32, #tpu.memory_space<vmem>>, vector<288x128xf32>,
    %c0_59 = arith.constant 0 : index
    %c36 = arith.constant 36 : index
    %c0_60 = arith.constant 0 : index
    %50 = vector.load %arg2[%c0_59, %c36, %c0_60] : memref<1x342x48xbf16, #tpu.memory_space<vmem>>, vector<1x288x48xbf16>
    %51 = vector.shape_cast %50 : vector<1x288x48xbf16> to vector<288x48xbf16>
    %c0_61 = arith.constant 0 : index
    %c0_62 = arith.constant 0 : index
    %52 = vector.load %arg6[%c0_61, %c0_62] : memref<288x128xf32, #tpu.memory_space<vmem>>, vector<288x128xf32>
    %c6 = arith.constant 6 : index
    %c0_63 = arith.constant 0 : index
    %c0_64 = arith.constant 0 : index
    %53 = vector.load %arg3[%c6, %c0_63, %c0_64] : memref<9x48x128xbf16, #tpu.memory_space<vmem>>, vector<1x48x128xbf16>
    %54 = vector.shape_cast %53 : vector<1x48x128xbf16> to vector<48x128xbf16>
    %cst_65 = arith.constant dense<0.000000e+00> : vector<288x128xf32>
    %55 = tpu.matmul %51, %54, %cst_65 {dimension_numbers = #tpu.dot_dimension_numbers<[1], [0], [0], [1], [0, 0, 1, 1], [], []>} : vector<288x48xbf16>, vector<48x128xbf16>, vector<288x128xf32> -> vector<288x128xf32>
    %56 = arith.addf %52, %55 : vector<288x128xf32>
    %c0_66 = arith.constant 0 : index
    %c0_67 = arith.constant 0 : index
    %57 = vector.load %arg6[%c0_66, %c0_67] : memref<288x128xf32, #tpu.memory_space<vmem>>, vector<288x128xf32>
    tpu.vector_store %arg6[%c0_66, %c0_67], %56 {strides = array<i32>} : memref<288x128xf32, #tpu.memory_space<vmem>>, vector<288x128xf32>,
    %c0_68 = arith.constant 0 : index
    %c37 = arith.constant 37 : index
    %c0_69 = arith.constant 0 : index
    %58 = vector.load %arg2[%c0_68, %c37, %c0_69] : memref<1x342x48xbf16, #tpu.memory_space<vmem>>, vector<1x288x48xbf16>
    %59 = vector.shape_cast %58 : vector<1x288x48xbf16> to vector<288x48xbf16>
    %c0_70 = arith.constant 0 : index
    %c0_71 = arith.constant 0 : index
    %60 = vector.load %arg6[%c0_70, %c0_71] : memref<288x128xf32, #tpu.memory_space<vmem>>, vector<288x128xf32>
    %c7 = arith.constant 7 : index
    %c0_72 = arith.constant 0 : index
    %c0_73 = arith.constant 0 : index
    %61 = vector.load %arg3[%c7, %c0_72, %c0_73] : memref<9x48x128xbf16, #tpu.memory_space<vmem>>, vector<1x48x128xbf16>
    %62 = vector.shape_cast %61 : vector<1x48x128xbf16> to vector<48x128xbf16>
    %cst_74 = arith.constant dense<0.000000e+00> : vector<288x128xf32>
    %63 = tpu.matmul %59, %62, %cst_74 {dimension_numbers = #tpu.dot_dimension_numbers<[1], [0], [0], [1], [0, 0, 1, 1], [], []>} : vector<288x48xbf16>, vector<48x128xbf16>, vector<288x128xf32> -> vector<288x128xf32>
    %64 = arith.addf %60, %63 : vector<288x128xf32>
    %c0_75 = arith.constant 0 : index
    %c0_76 = arith.constant 0 : index
    %65 = vector.load %arg6[%c0_75, %c0_76] : memref<288x128xf32, #tpu.memory_space<vmem>>, vector<288x128xf32>
    tpu.vector_store %arg6[%c0_75, %c0_76], %64 {strides = array<i32>} : memref<288x128xf32, #tpu.memory_space<vmem>>, vector<288x128xf32>,
    %c0_77 = arith.constant 0 : index
    %c38 = arith.constant 38 : index
    %c0_78 = arith.constant 0 : index
    %66 = vector.load %arg2[%c0_77, %c38, %c0_78] : memref<1x342x48xbf16, #tpu.memory_space<vmem>>, vector<1x288x48xbf16>
    %67 = vector.shape_cast %66 : vector<1x288x48xbf16> to vector<288x48xbf16>
    %c0_79 = arith.constant 0 : index
    %c0_80 = arith.constant 0 : index
    %68 = vector.load %arg6[%c0_79, %c0_80] : memref<288x128xf32, #tpu.memory_space<vmem>>, vector<288x128xf32>
    %c8 = arith.constant 8 : index
    %c0_81 = arith.constant 0 : index
    %c0_82 = arith.constant 0 : index
    %69 = vector.load %arg3[%c8, %c0_81, %c0_82] : memref<9x48x128xbf16, #tpu.memory_space<vmem>>, vector<1x48x128xbf16>
    %70 = vector.shape_cast %69 : vector<1x48x128xbf16> to vector<48x128xbf16>
    %cst_83 = arith.constant dense<0.000000e+00> : vector<288x128xf32>
    %71 = tpu.matmul %67, %70, %cst_83 {dimension_numbers = #tpu.dot_dimension_numbers<[1], [0], [0], [1], [0, 0, 1, 1], [], []>} : vector<288x48xbf16>, vector<48x128xbf16>, vector<288x128xf32> -> vector<288x128xf32>
    %72 = arith.addf %68, %71 : vector<288x128xf32>
    %c0_84 = arith.constant 0 : index
    %c0_85 = arith.constant 0 : index
    %73 = vector.load %arg6[%c0_84, %c0_85] : memref<288x128xf32, #tpu.memory_space<vmem>>, vector<288x128xf32>
    tpu.vector_store %arg6[%c0_84, %c0_85], %72 {strides = array<i32>} : memref<288x128xf32, #tpu.memory_space<vmem>>, vector<288x128xf32>,
    %c0_86 = arith.constant 0 : index
    %c0_87 = arith.constant 0 : index
    %74 = vector.load %arg6[%c0_86, %c0_87] : memref<288x128xf32, #tpu.memory_space<vmem>>, vector<288x128xf32>
    %c0_88 = arith.constant 0 : index
    %c0_89 = arith.constant 0 : index
    %75 = vector.load %arg4[%c0_88, %c0_89] : memref<1x128xf32, #tpu.memory_space<vmem>>, vector<1x128xf32>
    %76 = vector.broadcast %75 : vector<1x128xf32> to vector<288x128xf32>
    %77 = arith.addf %74, %76 : vector<288x128xf32>
    %cst_90 = arith.constant 0.000000e+00 : f32
    %78 = vector.broadcast %cst_90 : f32 to vector<288x128xf32>
    %79 = arith.maximumf %77, %78 : vector<288x128xf32>
    %c0_91 = arith.constant 0 : index
    %c0_92 = arith.constant 0 : index
    %c0_93 = arith.constant 0 : index
    %80 = vector.load %arg5[%c0_91, %c0_92, %c0_93] : memref<1x288x128xf32, #tpu.memory_space<vmem>>, vector<1x288x128xf32>
    %81 = vector.shape_cast %80 : vector<1x288x128xf32> to vector<288x128xf32>
    %82 = vector.shape_cast %79 : vector<288x128xf32> to vector<1x288x128xf32>
    tpu.vector_store %arg5[%c0_91, %c0_92, %c0_93], %82 {strides = array<i32>} : memref<1x288x128xf32, #tpu.memory_space<vmem>>, vector<1x288x128xf32>,
    return
  }
  func.func @transform_0(%arg0: i32, %arg1: i32) -> (i32, i32, i32) {
    %c0_i32 = arith.constant 0 : i32
    %c0_i32_0 = arith.constant 0 : i32
    %c0_i32_1 = arith.constant 0 : i32
    return %arg0, %c0_i32, %c0_i32_0 : i32, i32, i32
  }
  func.func @transform_1(%arg0: i32, %arg1: i32) -> (i32, i32, i32) {
    %c0_i32 = arith.constant 0 : i32
    %c0_i32_0 = arith.constant 0 : i32
    %c0_i32_1 = arith.constant 0 : i32
    return %c0_i32, %c0_i32_0, %arg1 : i32, i32, i32
  }
  func.func @transform_2(%arg0: i32, %arg1: i32) -> (i32, i32) {
    %c0_i32 = arith.constant 0 : i32
    %c0_i32_0 = arith.constant 0 : i32
    return %c0_i32, %arg1 : i32, i32
  }
  func.func @transform_3(%arg0: i32, %arg1: i32) -> (i32, i32, i32) {
    %c0_i32 = arith.constant 0 : i32
    %c0_i32_0 = arith.constant 0 : i32
    return %arg0, %c0_i32, %arg1 : i32, i32, i32
  }
}

module attributes {stable_mosaic.version = 11 : i64} {
  func.func @_maxpool3x3s2_kernel(%arg0: i32, %arg1: i32, %arg2: memref<1x1x8x128xf32, #tpu.memory_space<vmem>>, %arg3: memref<1x1x8x128xf32, #tpu.memory_space<vmem>>, %arg4: memref<1x1x8x128xf32, #tpu.memory_space<vmem>>, %arg5: memref<1x1x8x128xf32, #tpu.memory_space<vmem>>, %arg6: memref<1x1x8x128xf32, #tpu.memory_space<vmem>>, %arg7: memref<1x1x8x128xf32, #tpu.memory_space<vmem>>, %arg8: memref<1x1x7x128xf32, #tpu.memory_space<vmem>>) attributes {dimension_semantics = [#tpu.dimension_semantics<parallel>, #tpu.dimension_semantics<parallel>], iteration_bounds = array<i64: 2, 7>, scalar_prefetch = 0 : i64, scratch_operands = 0 : i64, tpu.core_type = #tpu.core_type<tc>, window_params = [{transform_indices = @transform_0, window_bounds = array<i64: 1, 1, 8, 128>}, {transform_indices = @transform_1, window_bounds = array<i64: 1, 1, 8, 128>}, {transform_indices = @transform_2, window_bounds = array<i64: 1, 1, 8, 128>}, {transform_indices = @transform_3, window_bounds = array<i64: 1, 1, 8, 128>}, {transform_indices = @transform_4, window_bounds = array<i64: 1, 1, 8, 128>}, {transform_indices = @transform_5, window_bounds = array<i64: 1, 1, 8, 128>}, {transform_indices = @transform_6, window_bounds = array<i64: 1, 1, 7, 128>}]} {
    %c0 = arith.constant 0 : index
    %c0_0 = arith.constant 0 : index
    %c0_1 = arith.constant 0 : index
    %c0_2 = arith.constant 0 : index
    %0 = vector.load %arg2[%c0, %c0_0, %c0_1, %c0_2] : memref<1x1x8x128xf32, #tpu.memory_space<vmem>>, vector<1x1x8x128xf32>
    %1 = vector.shape_cast %0 : vector<1x1x8x128xf32> to vector<8x128xf32>
    %c0_3 = arith.constant 0 : index
    %c0_4 = arith.constant 0 : index
    %c0_5 = arith.constant 0 : index
    %c0_6 = arith.constant 0 : index
    %2 = vector.load %arg3[%c0_3, %c0_4, %c0_5, %c0_6] : memref<1x1x8x128xf32, #tpu.memory_space<vmem>>, vector<1x1x8x128xf32>
    %3 = vector.shape_cast %2 : vector<1x1x8x128xf32> to vector<8x128xf32>
    %4 = arith.maximumf %1, %3 : vector<8x128xf32>
    %c0_7 = arith.constant 0 : index
    %c0_8 = arith.constant 0 : index
    %c0_9 = arith.constant 0 : index
    %c0_10 = arith.constant 0 : index
    %5 = vector.load %arg4[%c0_7, %c0_8, %c0_9, %c0_10] : memref<1x1x8x128xf32, #tpu.memory_space<vmem>>, vector<1x1x8x128xf32>
    %6 = vector.shape_cast %5 : vector<1x1x8x128xf32> to vector<8x128xf32>
    %7 = arith.maximumf %4, %6 : vector<8x128xf32>
    %c0_11 = arith.constant 0 : index
    %c0_12 = arith.constant 0 : index
    %c0_13 = arith.constant 0 : index
    %c0_14 = arith.constant 0 : index
    %8 = vector.load %arg5[%c0_11, %c0_12, %c0_13, %c0_14] : memref<1x1x8x128xf32, #tpu.memory_space<vmem>>, vector<1x1x8x128xf32>
    %9 = vector.shape_cast %8 : vector<1x1x8x128xf32> to vector<8x128xf32>
    %c0_15 = arith.constant 0 : index
    %c0_16 = arith.constant 0 : index
    %c0_17 = arith.constant 0 : index
    %c0_18 = arith.constant 0 : index
    %10 = vector.load %arg6[%c0_15, %c0_16, %c0_17, %c0_18] : memref<1x1x8x128xf32, #tpu.memory_space<vmem>>, vector<1x1x8x128xf32>
    %11 = vector.shape_cast %10 : vector<1x1x8x128xf32> to vector<8x128xf32>
    %12 = arith.maximumf %9, %11 : vector<8x128xf32>
    %c0_19 = arith.constant 0 : index
    %c0_20 = arith.constant 0 : index
    %c0_21 = arith.constant 0 : index
    %c0_22 = arith.constant 0 : index
    %13 = vector.load %arg7[%c0_19, %c0_20, %c0_21, %c0_22] : memref<1x1x8x128xf32, #tpu.memory_space<vmem>>, vector<1x1x8x128xf32>
    %14 = vector.shape_cast %13 : vector<1x1x8x128xf32> to vector<8x128xf32>
    %15 = arith.maximumf %12, %14 : vector<8x128xf32>
    %16 = vector.extract_strided_slice %7 {offsets = [0, 0], sizes = [7, 128], strides = [1, 1]} : vector<8x128xf32> to vector<7x128xf32>
    %17 = vector.extract_strided_slice %15 {offsets = [0, 0], sizes = [7, 128], strides = [1, 1]} : vector<8x128xf32> to vector<7x128xf32>
    %18 = arith.maximumf %16, %17 : vector<7x128xf32>
    %19 = vector.extract_strided_slice %7 {offsets = [1, 0], sizes = [7, 128], strides = [1, 1]} : vector<8x128xf32> to vector<7x128xf32>
    %20 = arith.maximumf %18, %19 : vector<7x128xf32>
    %c0_23 = arith.constant 0 : index
    %c0_24 = arith.constant 0 : index
    %c0_25 = arith.constant 0 : index
    %c0_26 = arith.constant 0 : index
    %21 = vector.load %arg8[%c0_23, %c0_24, %c0_25, %c0_26] : memref<1x1x7x128xf32, #tpu.memory_space<vmem>>, vector<1x1x7x128xf32>
    %22 = vector.shape_cast %21 : vector<1x1x7x128xf32> to vector<7x128xf32>
    %23 = vector.shape_cast %20 : vector<7x128xf32> to vector<1x1x7x128xf32>
    tpu.vector_store %arg8[%c0_23, %c0_24, %c0_25, %c0_26], %23 {strides = array<i32>} : memref<1x1x7x128xf32, #tpu.memory_space<vmem>>, vector<1x1x7x128xf32>,
    return
  }
  func.func @transform_0(%arg0: i32, %arg1: i32) -> (i32, i32, i32, i32) {
    %c2_i32 = arith.constant 2 : i32
    %0 = arith.muli %c2_i32, %arg1 : i32
    %c0_i32 = arith.constant 0 : i32
    %1 = arith.addi %0, %c0_i32 : i32
    %c0_i32_0 = arith.constant 0 : i32
    %c0_i32_1 = arith.constant 0 : i32
    %c0_i32_2 = arith.constant 0 : i32
    return %arg0, %1, %c0_i32_0, %c0_i32_1 : i32, i32, i32, i32
  }
  func.func @transform_1(%arg0: i32, %arg1: i32) -> (i32, i32, i32, i32) {
    %c2_i32 = arith.constant 2 : i32
    %0 = arith.muli %c2_i32, %arg1 : i32
    %c1_i32 = arith.constant 1 : i32
    %1 = arith.addi %0, %c1_i32 : i32
    %c0_i32 = arith.constant 0 : i32
    %c0_i32_0 = arith.constant 0 : i32
    %c0_i32_1 = arith.constant 0 : i32
    return %arg0, %1, %c0_i32, %c0_i32_0 : i32, i32, i32, i32
  }
  func.func @transform_2(%arg0: i32, %arg1: i32) -> (i32, i32, i32, i32) {
    %c2_i32 = arith.constant 2 : i32
    %0 = arith.muli %c2_i32, %arg1 : i32
    %c2_i32_0 = arith.constant 2 : i32
    %1 = arith.addi %0, %c2_i32_0 : i32
    %c0_i32 = arith.constant 0 : i32
    %c0_i32_1 = arith.constant 0 : i32
    %c0_i32_2 = arith.constant 0 : i32
    return %arg0, %1, %c0_i32, %c0_i32_1 : i32, i32, i32, i32
  }
  func.func @transform_3(%arg0: i32, %arg1: i32) -> (i32, i32, i32, i32) {
    %c2_i32 = arith.constant 2 : i32
    %0 = arith.muli %c2_i32, %arg1 : i32
    %c0_i32 = arith.constant 0 : i32
    %1 = arith.addi %0, %c0_i32 : i32
    %c0_i32_0 = arith.constant 0 : i32
    %c0_i32_1 = arith.constant 0 : i32
    %c0_i32_2 = arith.constant 0 : i32
    return %arg0, %1, %c0_i32_0, %c0_i32_1 : i32, i32, i32, i32
  }
  func.func @transform_4(%arg0: i32, %arg1: i32) -> (i32, i32, i32, i32) {
    %c2_i32 = arith.constant 2 : i32
    %0 = arith.muli %c2_i32, %arg1 : i32
    %c1_i32 = arith.constant 1 : i32
    %1 = arith.addi %0, %c1_i32 : i32
    %c0_i32 = arith.constant 0 : i32
    %c0_i32_0 = arith.constant 0 : i32
    %c0_i32_1 = arith.constant 0 : i32
    return %arg0, %1, %c0_i32, %c0_i32_0 : i32, i32, i32, i32
  }
  func.func @transform_5(%arg0: i32, %arg1: i32) -> (i32, i32, i32, i32) {
    %c2_i32 = arith.constant 2 : i32
    %0 = arith.muli %c2_i32, %arg1 : i32
    %c2_i32_0 = arith.constant 2 : i32
    %1 = arith.addi %0, %c2_i32_0 : i32
    %c0_i32 = arith.constant 0 : i32
    %c0_i32_1 = arith.constant 0 : i32
    %c0_i32_2 = arith.constant 0 : i32
    return %arg0, %1, %c0_i32, %c0_i32_1 : i32, i32, i32, i32
  }
  func.func @transform_6(%arg0: i32, %arg1: i32) -> (i32, i32, i32, i32) {
    %c0_i32 = arith.constant 0 : i32
    %c0_i32_0 = arith.constant 0 : i32
    %c0_i32_1 = arith.constant 0 : i32
    return %arg0, %arg1, %c0_i32, %c0_i32_0 : i32, i32, i32, i32
  }
}

</mosaic_0001>

<llo_original>
// kernel: alexnet_feat_forward.3
$region0: #{alexnet_feat_forward.3}
  #allocation0 [shape = 'u32[]', space=smem, size = 0x4, offset = 0x4, fixed_abs, tag = 'smem constant byte address 0x4 - core index']
  #allocation1 [shape = 'u32[144,128]{1,0:T(1,128)}', space=vmem, size = 0x12000, scoped, tag = 'internal scratch']
  %s0 = inlined_call_operand.vmem [shape: f32[2,16,8,128], index: 0, kind: input, shape index: {}, may-alias: {0,1,2}]
  %s1 = inlined_call_operand.vmem [shape: f32[2,16,8,128], index: 1, kind: input, shape index: {}, may-alias: {0,1,2}]
  %s2 = inlined_call_operand.vmem [shape: f32[2,16,8,128], index: 2, kind: input, shape index: {}, may-alias: {0,1,2}]
  %s3 = inlined_call_operand.vmem [shape: f32[2,16,8,128], index: 3, kind: input, shape index: {}, may-alias: {3,4,5}]
  %s4 = inlined_call_operand.vmem [shape: f32[2,16,8,128], index: 4, kind: input, shape index: {}, may-alias: {3,4,5}]
  %s5 = inlined_call_operand.vmem [shape: f32[2,16,8,128], index: 5, kind: input, shape index: {}, may-alias: {3,4,5}]
  %s6 = inlined_call_operand.vmem [shape: f32[2,7,7,128], index: 6, kind: output, shape index: {}]
  %s7 = sld [smem:[#allocation0]]
  $region57: #{alexnet_feat_forward.3} parent=0
    _
  %s9 = ssub.s32 1, %s7
  %s10 = scalar_select 0, %s9, %s7
  loop: start=0, step=1, limit=16
  $region2: #{alexnet_feat_forward.3} parent=0 // loop_pre_header
    _
  $region3: #{alexnet_feat_forward.3} parent=0 // loop_header
    %s12 = sphi 0, %s16
    %p13 = scmp.ge.s32.totalorder %s12, 16
    %s19 = sphi 0, %s31
    %s20 = sphi 0, %s27
    %s21 = sphi 0, %s19
    %s22 = sphi 0, %s20
    %s23 = sphi 0, %s21
    %s24 = sphi 0, %s22
    %s38 = sphi 0, %s40
    %s41 = sphi 0, %s38
    %s42 = sphi 0, %s41
    %s58 = sphi 0, %s42
    %s70 = sphi 0, %s72
    %s73 = sphi 0, %s70
    %s74 = sphi 0, %s73
    %s90 = sphi 0, %s74
    %s102 = sphi 0, %s104
    %s105 = sphi 0, %s102
    %s106 = sphi 0, %s105
    %s122 = sphi 0, %s106
    %s132 = sphi 0, %s134
    %s135 = sphi 0, %s132
    %s136 = sphi 0, %s135
    %s152 = sphi 0, %s136
    %s164 = sphi 0, %s166
    %s167 = sphi 0, %s164
    %s168 = sphi 0, %s167
    %s184 = sphi 0, %s168
    %s196 = sphi 0, %s198
    %s199 = sphi 0, %s196
    %s200 = sphi 0, %s199
    %s216 = sphi 0, %s200
    %s224 = sphi 0, %s226
    %s227 = sphi 0, %s224
    %s228 = sphi 0, %s227
    %s244 = sphi 0, %s228
  $region4: #{alexnet_feat_forward.3} parent=0 // loop_header_branch
    %15 = sbr.rel (%p13) target = $region8
  $region5: #{alexnet_feat_forward.3} parent=0 // loop_body
    %s17 = ssub.s32 %s12, 1
    %s18 = ssub.s32 %s12, 2
    %s25 = sadd.s32 1, %s20
    %p26 = scmp.ge.s32.totalorder %s25, 7
    %s27 = scalar_select %p26, 0, %s25
    %s28 = sadd.s32 1, %s19
    %s29 = scalar_select %p26, %s28, %s19
    %p30 = scmp.ge.s32.totalorder %s29, 2
    %s31 = scalar_select %p30, 0, %s29
    %s32 = smul.u32 %s20, 2
    %s33 = smul.u32 %s27, 2
    %s34 = ssub.s32 %s19, %s31
    %s35 = ssub.s32 %s32, %s33
    %s36 = sor.u32 %s34, %s35
    %p37 = scmp.eq.s32.totalorder %s36, 0
    %s39 = sadd.s32 %s38, 1
    %s40 = scalar_select %p37, %s38, %s39
    %p43 = pneg %p37
    %p44 = scmp.eq.s32.totalorder %s12, 13
    %p45 = por %p43, %p44
    %p46 = scmp.ne.s32.totalorder %s38, %s41
    %p47 = scmp.eq.s32.totalorder %s12, 0
    %p48 = por %p46, %p47
    %p49 = scmp.ne.s32.totalorder %s38, %s41
    %p50 = scmp.eq.s32.totalorder %s17, 13
    %p51 = por %p49, %p50
    %p52 = scmp.ne.s32.totalorder %s41, %s42
    %p53 = scmp.eq.s32.totalorder %s17, 0
    %p54 = por %p52, %p53
    %p55 = scmp.ne.s32.totalorder %s41, %s42
    %p56 = scmp.eq.s32.totalorder %s18, 13
    %p57 = por %p55, %p56
    %p59 = scmp.ne.s32.totalorder %s42, %s58
    %p60 = scmp.eq.s32.totalorder %s18, 0
    %p61 = por %p59, %p60
    %s62 = smul.u32 %s20, 2
    %s63 = sadd.s32 %s62, 1
    %s64 = smul.u32 %s27, 2
    %s65 = sadd.s32 %s64, 1
    %s66 = ssub.s32 %s19, %s31
    %s67 = ssub.s32 %s63, %s65
    %s68 = sor.u32 %s66, %s67
    %p69 = scmp.eq.s32.totalorder %s68, 0
    %s71 = sadd.s32 %s70, 1
    %s72 = scalar_select %p69, %s70, %s71
    %p75 = pneg %p69
    %p76 = scmp.eq.s32.totalorder %s12, 13
    %p77 = por %p75, %p76
    %p78 = scmp.ne.s32.totalorder %s70, %s73
    %p79 = scmp.eq.s32.totalorder %s12, 0
    %p80 = por %p78, %p79
    %p81 = scmp.ne.s32.totalorder %s70, %s73
    %p82 = scmp.eq.s32.totalorder %s17, 13
    %p83 = por %p81, %p82
    %p84 = scmp.ne.s32.totalorder %s73, %s74
    %p85 = scmp.eq.s32.totalorder %s17, 0
    %p86 = por %p84, %p85
    %p87 = scmp.ne.s32.totalorder %s73, %s74
    %p88 = scmp.eq.s32.totalorder %s18, 13
    %p89 = por %p87, %p88
    %p91 = scmp.ne.s32.totalorder %s74, %s90
    %p92 = scmp.eq.s32.totalorder %s18, 0
    %p93 = por %p91, %p92
    %s94 = smul.u32 %s20, 2
    %s95 = sadd.s32 %s94, 2
    %s96 = smul.u32 %s27, 2
    %s97 = sadd.s32 %s96, 2
    %s98 = ssub.s32 %s19, %s31
    %s99 = ssub.s32 %s95, %s97
    %s100 = sor.u32 %s98, %s99
    %p101 = scmp.eq.s32.totalorder %s100, 0
    %s103 = sadd.s32 %s102, 1
    %s104 = scalar_select %p101, %s102, %s103
    %p107 = pneg %p101
    %p108 = scmp.eq.s32.totalorder %s12, 13
    %p109 = por %p107, %p108
    %p110 = scmp.ne.s32.totalorder %s102, %s105
    %p111 = scmp.eq.s32.totalorder %s12, 0
    %p112 = por %p110, %p111
    %p113 = scmp.ne.s32.totalorder %s102, %s105
    %p114 = scmp.eq.s32.totalorder %s17, 13
    %p115 = por %p113, %p114
    %p116 = scmp.ne.s32.totalorder %s105, %s106
    %p117 = scmp.eq.s32.totalorder %s17, 0
    %p118 = por %p116, %p117
    %p119 = scmp.ne.s32.totalorder %s105, %s106
    %p120 = scmp.eq.s32.totalorder %s18, 13
    %p121 = por %p119, %p120
    %p123 = scmp.ne.s32.totalorder %s106, %s122
    %p124 = scmp.eq.s32.totalorder %s18, 0
    %p125 = por %p123, %p124
    %s126 = smul.u32 %s20, 2
    %s127 = smul.u32 %s27, 2
    %s128 = ssub.s32 %s19, %s31
    %s129 = ssub.s32 %s126, %s127
    %s130 = sor.u32 %s128, %s129
    %p131 = scmp.eq.s32.totalorder %s130, 0
    %s133 = sadd.s32 %s132, 1
    %s134 = scalar_select %p131, %s132, %s133
    %p137 = pneg %p131
    %p138 = scmp.eq.s32.totalorder %s12, 13
    %p139 = por %p137, %p138
    %p140 = scmp.ne.s32.totalorder %s132, %s135
    %p141 = scmp.eq.s32.totalorder %s12, 0
    %p142 = por %p140, %p141
    %p143 = scmp.ne.s32.totalorder %s132, %s135
    %p144 = scmp.eq.s32.totalorder %s17, 13
    %p145 = por %p143, %p144
    %p146 = scmp.ne.s32.totalorder %s135, %s136
    %p147 = scmp.eq.s32.totalorder %s17, 0
    %p148 = por %p146, %p147
    %p149 = scmp.ne.s32.totalorder %s135, %s136
    %p150 = scmp.eq.s32.totalorder %s18, 13
    %p151 = por %p149, %p150
    %p153 = scmp.ne.s32.totalorder %s136, %s152
    %p154 = scmp.eq.s32.totalorder %s18, 0
    %p155 = por %p153, %p154
    %s156 = smul.u32 %s20, 2
    %s157 = sadd.s32 %s156, 1
    %s158 = smul.u32 %s27, 2
    %s159 = sadd.s32 %s158, 1
    %s160 = ssub.s32 %s19, %s31
    %s161 = ssub.s32 %s157, %s159
    %s162 = sor.u32 %s160, %s161
    %p163 = scmp.eq.s32.totalorder %s162, 0
    %s165 = sadd.s32 %s164, 1
    %s166 = scalar_select %p163, %s164, %s165
    %p169 = pneg %p163
    %p170 = scmp.eq.s32.totalorder %s12, 13
    %p171 = por %p169, %p170
    %p172 = scmp.ne.s32.totalorder %s164, %s167
    %p173 = scmp.eq.s32.totalorder %s12, 0
    %p174 = por %p172, %p173
    %p175 = scmp.ne.s32.totalorder %s164, %s167
    %p176 = scmp.eq.s32.totalorder %s17, 13
    %p177 = por %p175, %p176
    %p178 = scmp.ne.s32.totalorder %s167, %s168
    %p179 = scmp.eq.s32.totalorder %s17, 0
    %p180 = por %p178, %p179
    %p181 = scmp.ne.s32.totalorder %s167, %s168
    %p182 = scmp.eq.s32.totalorder %s18, 13
    %p183 = por %p181, %p182
    %p185 = scmp.ne.s32.totalorder %s168, %s184
    %p186 = scmp.eq.s32.totalorder %s18, 0
    %p187 = por %p185, %p186
    %s188 = smul.u32 %s20, 2
    %s189 = sadd.s32 %s188, 2
    %s190 = smul.u32 %s27, 2
    %s191 = sadd.s32 %s190, 2
    %s192 = ssub.s32 %s19, %s31
    %s193 = ssub.s32 %s189, %s191
    %s194 = sor.u32 %s192, %s193
    %p195 = scmp.eq.s32.totalorder %s194, 0
    %s197 = sadd.s32 %s196, 1
    %s198 = scalar_select %p195, %s196, %s197
    %p201 = pneg %p195
    %p202 = scmp.eq.s32.totalorder %s12, 13
    %p203 = por %p201, %p202
    %p204 = scmp.ne.s32.totalorder %s196, %s199
    %p205 = scmp.eq.s32.totalorder %s12, 0
    %p206 = por %p204, %p205
    %p207 = scmp.ne.s32.totalorder %s196, %s199
    %p208 = scmp.eq.s32.totalorder %s17, 13
    %p209 = por %p207, %p208
    %p210 = scmp.ne.s32.totalorder %s199, %s200
    %p211 = scmp.eq.s32.totalorder %s17, 0
    %p212 = por %p210, %p211
    %p213 = scmp.ne.s32.totalorder %s199, %s200
    %p214 = scmp.eq.s32.totalorder %s18, 13
    %p215 = por %p213, %p214
    %p217 = scmp.ne.s32.totalorder %s200, %s216
    %p218 = scmp.eq.s32.totalorder %s18, 0
    %p219 = por %p217, %p218
    %s220 = ssub.s32 %s19, %s31
    %s221 = ssub.s32 %s20, %s27
    %s222 = sor.u32 %s220, %s221
    %p223 = scmp.eq.s32.totalorder %s222, 0
    %s225 = sadd.s32 %s224, 1
    %s226 = scalar_select %p223, %s224, %s225
    %p229 = pneg %p223
    %p230 = scmp.eq.s32.totalorder %s12, 13
    %p231 = por %p229, %p230
    %p232 = scmp.ne.s32.totalorder %s224, %s227
    %p233 = scmp.eq.s32.totalorder %s12, 0
    %p234 = por %p232, %p233
    %p235 = scmp.ne.s32.totalorder %s224, %s227
    %p236 = scmp.eq.s32.totalorder %s17, 13
    %p237 = por %p235, %p236
    %p238 = scmp.ne.s32.totalorder %s227, %s228
    %p239 = scmp.eq.s32.totalorder %s17, 0
    %p240 = por %p238, %p239
    %p241 = scmp.ne.s32.totalorder %s227, %s228
    %p242 = scmp.eq.s32.totalorder %s18, 13
    %p243 = por %p241, %p242
    %p245 = scmp.ne.s32.totalorder %s228, %s244
    %p246 = scmp.eq.s32.totalorder %s18, 0
    %p247 = por %p245, %p246
    %p248 = scmp.le.s32.totalorder 1, %s12
    %p249 = scmp.lt.s32.totalorder %s12, 15
    %p250 = pnand %p248, %p249
    %p251 = pneg %p250
    // Predicated region
    $region9: #{alexnet_feat_forward.3} parent=5 // pred_check
      _
    $region10: #{alexnet_feat_forward.3} parent=5 // pred_check_branch
      %253 = sbr.rel (%p250) target = $region12
    $region11: #{alexnet_feat_forward.3} parent=5 // pred_region
      %s254 = ssub.s32 %s12, 1
    $region12: #{alexnet_feat_forward.3} parent=5 // pred_fallthru
      _
    %p255 = scmp.lt.s32.totalorder %s12, 14
    // Predicated region
    $region13: #{alexnet_feat_forward.3} parent=5 // pred_check
      %p256 = pneg %p255
    $region14: #{alexnet_feat_forward.3} parent=5 // pred_check_branch
      %258 = sbr.rel (%p256) target = $region16
    $region15: #{alexnet_feat_forward.3} parent=5 // pred_region
      // Predicated region
      $region17: #{alexnet_feat_forward.3} parent=15 // pred_check
        %p259 = pneg %p48
      $region18: #{alexnet_feat_forward.3} parent=15 // pred_check_branch
        %261 = sbr.rel (%p259) target = $region20
      $region19: #{alexnet_feat_forward.3} parent=15 // pred_region
        %s262 = smul.u32 %s20, 2
        %p263 = scmp.lt.s32.totalorder %s19, 1
        %s264 = scalar_select %p263, %s19, 1
        %p265 = scmp.lt.s32.totalorder %s262, 15
        %s266 = scalar_select %p265, %s262, 15
        %s267 = smul.addr %s264, 16
        %s268 = sadd.s32 %s266, %s267
        %s269 = smul.addr %s268, 8
        %s270 = scalar_lea.vmem %s0, %s269
        %s271 = smul.u32 %s20, 2
      $region20: #{alexnet_feat_forward.3} parent=15 // pred_fallthru
        _
      // Predicated region
      $region21: #{alexnet_feat_forward.3} parent=15 // pred_check
        %p272 = pneg %p80
      $region22: #{alexnet_feat_forward.3} parent=15 // pred_check_branch
        %274 = sbr.rel (%p272) target = $region24
      $region23: #{alexnet_feat_forward.3} parent=15 // pred_region
        %s275 = smul.u32 %s20, 2
        %s276 = sadd.s32 %s275, 1
        %p277 = scmp.lt.s32.totalorder %s19, 1
        %s278 = scalar_select %p277, %s19, 1
        %p279 = scmp.lt.s32.totalorder %s276, 15
        %s280 = scalar_select %p279, %s276, 15
        %s281 = smul.addr %s278, 16
        %s282 = sadd.s32 %s280, %s281
        %s283 = smul.addr %s282, 8
        %s284 = scalar_lea.vmem %s1, %s283
        %s285 = smul.u32 %s20, 2
        %s286 = sadd.s32 %s285, 1
      $region24: #{alexnet_feat_forward.3} parent=15 // pred_fallthru
        _
      // Predicated region
      $region25: #{alexnet_feat_forward.3} parent=15 // pred_check
        %p287 = pneg %p112
      $region26: #{alexnet_feat_forward.3} parent=15 // pred_check_branch
        %289 = sbr.rel (%p287) target = $region28
      $region27: #{alexnet_feat_forward.3} parent=15 // pred_region
        %s290 = smul.u32 %s20, 2
        %s291 = sadd.s32 %s290, 2
        %p292 = scmp.lt.s32.totalorder %s19, 1
        %s293 = scalar_select %p292, %s19, 1
        %p294 = scmp.lt.s32.totalorder %s291, 15
        %s295 = scalar_select %p294, %s291, 15
        %s296 = smul.addr %s293, 16
        %s297 = sadd.s32 %s295, %s296
        %s298 = smul.addr %s297, 8
        %s299 = scalar_lea.vmem %s2, %s298
        %s300 = smul.u32 %s20, 2
        %s301 = sadd.s32 %s300, 2
      $region28: #{alexnet_feat_forward.3} parent=15 // pred_fallthru
        _
      // Predicated region
      $region29: #{alexnet_feat_forward.3} parent=15 // pred_check
        %p302 = pneg %p142
      $region30: #{alexnet_feat_forward.3} parent=15 // pred_check_branch
        %304 = sbr.rel (%p302) target = $region32
      $region31: #{alexnet_feat_forward.3} parent=15 // pred_region
        %s305 = smul.u32 %s20, 2
        %p306 = scmp.lt.s32.totalorder %s19, 1
        %s307 = scalar_select %p306, %s19, 1
        %p308 = scmp.lt.s32.totalorder %s305, 15
        %s309 = scalar_select %p308, %s305, 15
        %s310 = smul.addr %s307, 16
        %s311 = sadd.s32 %s309, %s310
        %s312 = smul.addr %s311, 8
        %s313 = scalar_lea.vmem %s3, %s312
        %s314 = smul.u32 %s20, 2
      $region32: #{alexnet_feat_forward.3} parent=15 // pred_fallthru
        _
      // Predicated region
      $region33: #{alexnet_feat_forward.3} parent=15 // pred_check
        %p315 = pneg %p174
      $region34: #{alexnet_feat_forward.3} parent=15 // pred_check_branch
        %317 = sbr.rel (%p315) target = $region36
      $region35: #{alexnet_feat_forward.3} parent=15 // pred_region
        %s318 = smul.u32 %s20, 2
        %s319 = sadd.s32 %s318, 1
        %p320 = scmp.lt.s32.totalorder %s19, 1
        %s321 = scalar_select %p320, %s19, 1
        %p322 = scmp.lt.s32.totalorder %s319, 15
        %s323 = scalar_select %p322, %s319, 15
        %s324 = smul.addr %s321, 16
        %s325 = sadd.s32 %s323, %s324
        %s326 = smul.addr %s325, 8
        %s327 = scalar_lea.vmem %s4, %s326
        %s328 = smul.u32 %s20, 2
        %s329 = sadd.s32 %s328, 1
      $region36: #{alexnet_feat_forward.3} parent=15 // pred_fallthru
        _
      // Predicated region
      $region37: #{alexnet_feat_forward.3} parent=15 // pred_check
        %p330 = pneg %p206
      $region38: #{alexnet_feat_forward.3} parent=15 // pred_check_branch
        %332 = sbr.rel (%p330) target = $region40
      $region39: #{alexnet_feat_forward.3} parent=15 // pred_region
        %s333 = smul.u32 %s20, 2
        %s334 = sadd.s32 %s333, 2
        %p335 = scmp.lt.s32.totalorder %s19, 1
        %s336 = scalar_select %p335, %s19, 1
        %p337 = scmp.lt.s32.totalorder %s334, 15
        %s338 = scalar_select %p337, %s334, 15
        %s339 = smul.addr %s336, 16
        %s340 = sadd.s32 %s338, %s339
        %s341 = smul.addr %s340, 8
        %s342 = scalar_lea.vmem %s5, %s341
        %s343 = smul.u32 %s20, 2
        %s344 = sadd.s32 %s343, 2
      $region40: #{alexnet_feat_forward.3} parent=15 // pred_fallthru
        _
    $region16: #{alexnet_feat_forward.3} parent=5 // pred_fallthru
      _
    %p345 = scmp.le.s32.totalorder 1, %s12
    %p346 = scmp.lt.s32.totalorder %s12, 15
    %p347 = pnand %p345, %p346
    %p348 = pneg %p347
    // Predicated region
    $region41: #{alexnet_feat_forward.3} parent=5 // pred_check
      _
    $region42: #{alexnet_feat_forward.3} parent=5 // pred_check_branch
      %350 = sbr.rel (%p347) target = $region44
    $region43: #{alexnet_feat_forward.3} parent=5 // pred_region
      %s351 = ssub.s32 %s12, 1
      %s352 = smul.u32 %s22, 2
      %p353 = scmp.lt.s32.totalorder %s21, 1
      %s354 = scalar_select %p353, %s21, 1
      %p355 = scmp.lt.s32.totalorder %s352, 15
      %s356 = scalar_select %p355, %s352, 15
      %s357 = smul.addr %s354, 16
      %s358 = sadd.s32 %s356, %s357
      %s359 = smul.addr %s358, 8
      %s360 = scalar_lea.vmem %s0, %s359
      %p361 = pneg %p54
      %p362 = pneg %p51
      %s363 = smul.u32 %s22, 2
      %s364 = sadd.s32 %s363, 1
      %p365 = scmp.lt.s32.totalorder %s21, 1
      %s366 = scalar_select %p365, %s21, 1
      %p367 = scmp.lt.s32.totalorder %s364, 15
      %s368 = scalar_select %p367, %s364, 15
      %s369 = smul.addr %s366, 16
      %s370 = sadd.s32 %s368, %s369
      %s371 = smul.addr %s370, 8
      %s372 = scalar_lea.vmem %s1, %s371
      %p373 = pneg %p86
      %p374 = pneg %p83
      %s375 = smul.u32 %s22, 2
      %s376 = sadd.s32 %s375, 2
      %p377 = scmp.lt.s32.totalorder %s21, 1
      %s378 = scalar_select %p377, %s21, 1
      %p379 = scmp.lt.s32.totalorder %s376, 15
      %s380 = scalar_select %p379, %s376, 15
      %s381 = smul.addr %s378, 16
      %s382 = sadd.s32 %s380, %s381
      %s383 = smul.addr %s382, 8
      %s384 = scalar_lea.vmem %s2, %s383
      %p385 = pneg %p118
      %p386 = pneg %p115
      %s387 = smul.u32 %s22, 2
      %p388 = scmp.lt.s32.totalorder %s21, 1
      %s389 = scalar_select %p388, %s21, 1
      %p390 = scmp.lt.s32.totalorder %s387, 15
      %s391 = scalar_select %p390, %s387, 15
      %s392 = smul.addr %s389, 16
      %s393 = sadd.s32 %s391, %s392
      %s394 = smul.addr %s393, 8
      %s395 = scalar_lea.vmem %s3, %s394
      %p396 = pneg %p148
      %p397 = pneg %p145
      %s398 = smul.u32 %s22, 2
      %s399 = sadd.s32 %s398, 1
      %p400 = scmp.lt.s32.totalorder %s21, 1
      %s401 = scalar_select %p400, %s21, 1
      %p402 = scmp.lt.s32.totalorder %s399, 15
      %s403 = scalar_select %p402, %s399, 15
      %s404 = smul.addr %s401, 16
      %s405 = sadd.s32 %s403, %s404
      %s406 = smul.addr %s405, 8
      %s407 = scalar_lea.vmem %s4, %s406
      %p408 = pneg %p180
      %p409 = pneg %p177
      %s410 = smul.u32 %s22, 2
      %s411 = sadd.s32 %s410, 2
      %p412 = scmp.lt.s32.totalorder %s21, 1
      %s413 = scalar_select %p412, %s21, 1
      %p414 = scmp.lt.s32.totalorder %s411, 15
      %s415 = scalar_select %p414, %s411, 15
      %s416 = smul.addr %s413, 16
      %s417 = sadd.s32 %s415, %s416
      %s418 = smul.addr %s417, 8
      %s419 = scalar_lea.vmem %s5, %s418
      %p420 = pneg %p212
      %p421 = pneg %p209
      %p422 = pneg %p240
      %p423 = pneg %p237
      %p424 = scmp.lt.s32.totalorder %s21, 1
      %s425 = scalar_select %p424, %s21, 1
      %p426 = scmp.lt.s32.totalorder %s22, 6
      %s427 = scalar_select %p426, %s22, 6
      %s428 = smul.addr %s425, 7
      %s429 = sadd.s32 %s427, %s428
      %s430 = smul.addr %s429, 8
      %s431 = scalar_lea.vmem %s6, %s430
      %s432 = smul.u32 %s22, 2
      %p433 = scmp.lt.s32.totalorder %s21, 1
      %s434 = scalar_select %p433, %s21, 1
      %p435 = scmp.lt.s32.totalorder %s432, 15
      %s436 = scalar_select %p435, %s432, 15
      %s437 = smul.addr %s434, 16
      %s438 = sadd.s32 %s436, %s437
      %s439 = smul.addr %s438, 8
      %s440 = scalar_lea.vmem %s0, %s439
      %s441 = smul.u32 %s22, 2
      %s442 = smul.u32 %s22, 2
      %s443 = sadd.s32 %s442, 1
      %p444 = scmp.lt.s32.totalorder %s21, 1
      %s445 = scalar_select %p444, %s21, 1
      %p446 = scmp.lt.s32.totalorder %s443, 15
      %s447 = scalar_select %p446, %s443, 15
      %s448 = smul.addr %s445, 16
      %s449 = sadd.s32 %s447, %s448
      %s450 = smul.addr %s449, 8
      %s451 = scalar_lea.vmem %s1, %s450
      %s452 = smul.u32 %s22, 2
      %s453 = sadd.s32 %s452, 1
      %s454 = smul.u32 %s22, 2
      %s455 = sadd.s32 %s454, 2
      %p456 = scmp.lt.s32.totalorder %s21, 1
      %s457 = scalar_select %p456, %s21, 1
      %p458 = scmp.lt.s32.totalorder %s455, 15
      %s459 = scalar_select %p458, %s455, 15
      %s460 = smul.addr %s457, 16
      %s461 = sadd.s32 %s459, %s460
      %s462 = smul.addr %s461, 8
      %s463 = scalar_lea.vmem %s2, %s462
      %s464 = smul.u32 %s22, 2
      %s465 = sadd.s32 %s464, 2
      %s466 = smul.u32 %s22, 2
      %p467 = scmp.lt.s32.totalorder %s21, 1
      %s468 = scalar_select %p467, %s21, 1
      %p469 = scmp.lt.s32.totalorder %s466, 15
      %s470 = scalar_select %p469, %s466, 15
      %s471 = smul.addr %s468, 16
      %s472 = sadd.s32 %s470, %s471
      %s473 = smul.addr %s472, 8
      %s474 = scalar_lea.vmem %s3, %s473
      %s475 = smul.u32 %s22, 2
      %s476 = smul.u32 %s22, 2
      %s477 = sadd.s32 %s476, 1
      %p478 = scmp.lt.s32.totalorder %s21, 1
      %s479 = scalar_select %p478, %s21, 1
      %p480 = scmp.lt.s32.totalorder %s477, 15
      %s481 = scalar_select %p480, %s477, 15
      %s482 = smul.addr %s479, 16
      %s483 = sadd.s32 %s481, %s482
      %s484 = smul.addr %s483, 8
      %s485 = scalar_lea.vmem %s4, %s484
      %s486 = smul.u32 %s22, 2
      %s487 = sadd.s32 %s486, 1
      %s488 = smul.u32 %s22, 2
      %s489 = sadd.s32 %s488, 2
      %p490 = scmp.lt.s32.totalorder %s21, 1
      %s491 = scalar_select %p490, %s21, 1
      %p492 = scmp.lt.s32.totalorder %s489, 15
      %s493 = scalar_select %p492, %s489, 15
      %s494 = smul.addr %s491, 16
      %s495 = sadd.s32 %s493, %s494
      %s496 = smul.addr %s495, 8
      %s497 = scalar_lea.vmem %s5, %s496
      %s498 = smul.u32 %s22, 2
      %s499 = sadd.s32 %s498, 2
      %p500 = scmp.lt.s32.totalorder %s21, 1
      %s501 = scalar_select %p500, %s21, 1
      %p502 = scmp.lt.s32.totalorder %s22, 6
      %s503 = scalar_select %p502, %s22, 6
      %s504 = smul.addr %s501, 7
      %s505 = sadd.s32 %s503, %s504
      %s506 = smul.addr %s505, 8
      %s507 = scalar_lea.vmem %s6, %s506
      %v508 = vld [vmem:[%s440] sm:$0xff]
      %v509 = vld [vmem:[%s451] sm:$0xff]
      %v510 = vmax.f32 %v508, %v509
      %v511 = vld [vmem:[%s463] sm:$0xff]
      %v512 = vmax.f32 %v510, %v511
      %v513 = vld [vmem:[%s474] sm:$0xff]
      %v514 = vld [vmem:[%s485] sm:$0xff]
      %v515 = vmax.f32 %v513, %v514
      %v516 = vld [vmem:[%s497] sm:$0xff]
      %v517 = vmax.f32 %v515, %v516
      %v518 = vmax.f32 %v512, %v517
      %v520 = vrot.slane %v512, 1
      %v522 = vmax.f32 %v518, %v520
      %523 = vst [vmem:[%s507] sm:$0x7f] %v522
      %p524 = scmp.lt.s32.totalorder %s21, 1
      %s525 = scalar_select %p524, %s21, 1
      %p526 = scmp.lt.s32.totalorder %s22, 6
      %s527 = scalar_select %p526, %s22, 6
      %s528 = smul.addr %s525, 7
      %s529 = sadd.s32 %s527, %s528
      %s530 = smul.addr %s529, 8
      %s531 = scalar_lea.vmem %s6, %s530
      // Predicated region
      $region45: #{alexnet_feat_forward.3} parent=43 // pred_check
        %p532 = pneg %p237
      $region46: #{alexnet_feat_forward.3} parent=43 // pred_check_branch
        %534 = sbr.rel (%p532) target = $region48
      $region47: #{alexnet_feat_forward.3} parent=43 // pred_region
        _
      $region48: #{alexnet_feat_forward.3} parent=43 // pred_fallthru
        _
    $region44: #{alexnet_feat_forward.3} parent=5 // pred_fallthru
      _
    %p535 = scmp.le.s32.totalorder 2, %s12
    // Predicated region
    $region49: #{alexnet_feat_forward.3} parent=5 // pred_check
      %p536 = pneg %p535
    $region50: #{alexnet_feat_forward.3} parent=5 // pred_check_branch
      %538 = sbr.rel (%p536) target = $region52
    $region51: #{alexnet_feat_forward.3} parent=5 // pred_region
      %s539 = ssub.s32 %s12, 2
      // Predicated region
      $region53: #{alexnet_feat_forward.3} parent=51 // pred_check
        %p540 = pneg %p243
      $region54: #{alexnet_feat_forward.3} parent=51 // pred_check_branch
        %542 = sbr.rel (%p540) target = $region56
      $region55: #{alexnet_feat_forward.3} parent=51 // pred_region
        %p543 = scmp.lt.s32.totalorder %s23, 1
        %s544 = scalar_select %p543, %s23, 1
        %p545 = scmp.lt.s32.totalorder %s24, 6
        %s546 = scalar_select %p545, %s24, 6
        %s547 = smul.addr %s544, 7
        %s548 = sadd.s32 %s546, %s547
        %s549 = smul.addr %s548, 8
        %s550 = scalar_lea.vmem %s6, %s549
      $region56: #{alexnet_feat_forward.3} parent=51 // pred_fallthru
        _
    $region52: #{alexnet_feat_forward.3} parent=5 // pred_fallthru
      _
  $region6: #{alexnet_feat_forward.3} parent=0 // loop_footer
    %s16 = sadd.s32 1, %s12
  $region7: #{alexnet_feat_forward.3} parent=0 // loop_footer_branch
    %11 = sbr.rel target = $region3
  $region8: #{alexnet_feat_forward.3} parent=0 // loop_exit
    _

// kernel: alexnet_feat_forward.2
$region0: #{alexnet_feat_forward.2}
  #allocation0 [shape = 'u32[]', space=smem, size = 0x4, offset = 0x4, fixed_abs, tag = 'smem constant byte address 0x4 - core index']
  #allocation1 [shape = 'u32[144,128]{1,0:T(1,128)}', space=vmem, size = 0x12000, scoped, tag = 'internal scratch']
  #allocation2 [shape = 'f32[288,128]{1,0:T(8,128)}', space=vmem, size = 0x24000, scoped, tag = 'scratch operand']
  %s0 = inlined_call_operand.vmem [shape: bf16[2,342,48], index: 0, kind: input, shape index: {}]
  %s1 = inlined_call_operand.vmem [shape: bf16[9,48,128], index: 1, kind: input, shape index: {}]
  %s2 = inlined_call_operand.vmem [shape: f32[1,128], index: 2, kind: input, shape index: {}]
  %s3 = inlined_call_operand.vmem [shape: f32[2,288,128], index: 3, kind: output, shape index: {}]
  %s4 = sld [smem:[#allocation0]]
  $region45: #{alexnet_feat_forward.2} parent=0
    _
  %s6 = ssub.s32 1, %s4
  %s7 = scalar_select 0, %s6, %s4
  loop: start=0, step=1, limit=4
  $region2: #{alexnet_feat_forward.2} parent=0 // loop_pre_header
    _
  $region3: #{alexnet_feat_forward.2} parent=0 // loop_header
    %s9 = sphi 0, %s13
    %p10 = scmp.ge.s32.totalorder %s9, 4
    %s16 = sphi 0, %s28
    %s17 = sphi 0, %s24
    %s18 = sphi 0, %s16
    %s19 = sphi 0, %s17
    %s20 = sphi 0, %s18
    %s21 = sphi 0, %s19
    %s31 = sphi 0, %s33
    %s34 = sphi 0, %s31
    %s35 = sphi 0, %s34
    %s51 = sphi 0, %s35
    %s57 = sphi 0, %s59
    %s60 = sphi 0, %s57
    %s61 = sphi 0, %s60
    %s77 = sphi 0, %s61
    %s83 = sphi 0, %s85
    %s86 = sphi 0, %s83
    %s87 = sphi 0, %s86
    %s103 = sphi 0, %s87
    %s111 = sphi 0, %s113
    %s114 = sphi 0, %s111
    %s115 = sphi 0, %s114
    %s131 = sphi 0, %s115
  $region4: #{alexnet_feat_forward.2} parent=0 // loop_header_branch
    %12 = sbr.rel (%p10) target = $region8
  $region5: #{alexnet_feat_forward.2} parent=0 // loop_body
    %s14 = ssub.s32 %s9, 1
    %s15 = ssub.s32 %s9, 2
    %s22 = sadd.s32 1, %s17
    %p23 = scmp.ge.s32.totalorder %s22, 1
    %s24 = scalar_select %p23, 0, %s22
    %s25 = sadd.s32 1, %s16
    %s26 = scalar_select %p23, %s25, %s16
    %p27 = scmp.ge.s32.totalorder %s26, 2
    %s28 = scalar_select %p27, 0, %s26
    %s29 = ssub.s32 %s16, %s28
    %p30 = scmp.eq.s32.totalorder %s29, 0
    %s32 = sadd.s32 %s31, 1
    %s33 = scalar_select %p30, %s31, %s32
    %p36 = pneg %p30
    %p37 = scmp.eq.s32.totalorder %s9, 1
    %p38 = por %p36, %p37
    %p39 = scmp.ne.s32.totalorder %s31, %s34
    %p40 = scmp.eq.s32.totalorder %s9, 0
    %p41 = por %p39, %p40
    %p42 = scmp.ne.s32.totalorder %s31, %s34
    %p43 = scmp.eq.s32.totalorder %s14, 1
    %p44 = por %p42, %p43
    %p45 = scmp.ne.s32.totalorder %s34, %s35
    %p46 = scmp.eq.s32.totalorder %s14, 0
    %p47 = por %p45, %p46
    %p48 = scmp.ne.s32.totalorder %s34, %s35
    %p49 = scmp.eq.s32.totalorder %s15, 1
    %p50 = por %p48, %p49
    %p52 = scmp.ne.s32.totalorder %s35, %s51
    %p53 = scmp.eq.s32.totalorder %s15, 0
    %p54 = por %p52, %p53
    %s55 = ssub.s32 %s17, %s24
    %p56 = scmp.eq.s32.totalorder %s55, 0
    %s58 = sadd.s32 %s57, 1
    %s59 = scalar_select %p56, %s57, %s58
    %p62 = pneg %p56
    %p63 = scmp.eq.s32.totalorder %s9, 1
    %p64 = por %p62, %p63
    %p65 = scmp.ne.s32.totalorder %s57, %s60
    %p66 = scmp.eq.s32.totalorder %s9, 0
    %p67 = por %p65, %p66
    %p68 = scmp.ne.s32.totalorder %s57, %s60
    %p69 = scmp.eq.s32.totalorder %s14, 1
    %p70 = por %p68, %p69
    %p71 = scmp.ne.s32.totalorder %s60, %s61
    %p72 = scmp.eq.s32.totalorder %s14, 0
    %p73 = por %p71, %p72
    %p74 = scmp.ne.s32.totalorder %s60, %s61
    %p75 = scmp.eq.s32.totalorder %s15, 1
    %p76 = por %p74, %p75
    %p78 = scmp.ne.s32.totalorder %s61, %s77
    %p79 = scmp.eq.s32.totalorder %s15, 0
    %p80 = por %p78, %p79
    %s81 = ssub.s32 %s17, %s24
    %p82 = scmp.eq.s32.totalorder %s81, 0
    %s84 = sadd.s32 %s83, 1
    %s85 = scalar_select %p82, %s83, %s84
    %p88 = pneg %p82
    %p89 = scmp.eq.s32.totalorder %s9, 1
    %p90 = por %p88, %p89
    %p91 = scmp.ne.s32.totalorder %s83, %s86
    %p92 = scmp.eq.s32.totalorder %s9, 0
    %p93 = por %p91, %p92
    %p94 = scmp.ne.s32.totalorder %s83, %s86
    %p95 = scmp.eq.s32.totalorder %s14, 1
    %p96 = por %p94, %p95
    %p97 = scmp.ne.s32.totalorder %s86, %s87
    %p98 = scmp.eq.s32.totalorder %s14, 0
    %p99 = por %p97, %p98
    %p100 = scmp.ne.s32.totalorder %s86, %s87
    %p101 = scmp.eq.s32.totalorder %s15, 1
    %p102 = por %p100, %p101
    %p104 = scmp.ne.s32.totalorder %s87, %s103
    %p105 = scmp.eq.s32.totalorder %s15, 0
    %p106 = por %p104, %p105
    %s107 = ssub.s32 %s16, %s28
    %s108 = ssub.s32 %s17, %s24
    %s109 = sor.u32 %s107, %s108
    %p110 = scmp.eq.s32.totalorder %s109, 0
    %s112 = sadd.s32 %s111, 1
    %s113 = scalar_select %p110, %s111, %s112
    %p116 = pneg %p110
    %p117 = scmp.eq.s32.totalorder %s9, 1
    %p118 = por %p116, %p117
    %p119 = scmp.ne.s32.totalorder %s111, %s114
    %p120 = scmp.eq.s32.totalorder %s9, 0
    %p121 = por %p119, %p120
    %p122 = scmp.ne.s32.totalorder %s111, %s114
    %p123 = scmp.eq.s32.totalorder %s14, 1
    %p124 = por %p122, %p123
    %p125 = scmp.ne.s32.totalorder %s114, %s115
    %p126 = scmp.eq.s32.totalorder %s14, 0
    %p127 = por %p125, %p126
    %p128 = scmp.ne.s32.totalorder %s114, %s115
    %p129 = scmp.eq.s32.totalorder %s15, 1
    %p130 = por %p128, %p129
    %p132 = scmp.ne.s32.totalorder %s115, %s131
    %p133 = scmp.eq.s32.totalorder %s15, 0
    %p134 = por %p132, %p133
    %p135 = scmp.le.s32.totalorder 1, %s9
    %p136 = scmp.lt.s32.totalorder %s9, 3
    %p137 = pnand %p135, %p136
    %p138 = pneg %p137
    // Predicated region
    $region9: #{alexnet_feat_forward.2} parent=5 // pred_check
      _
    $region10: #{alexnet_feat_forward.2} parent=5 // pred_check_branch
      %140 = sbr.rel (%p137) target = $region12
    $region11: #{alexnet_feat_forward.2} parent=5 // pred_region
      %s141 = ssub.s32 %s9, 1
      // Predicated region
      $region13: #{alexnet_feat_forward.2} parent=11 // pred_check
        %p142 = pneg %p73
      $region14: #{alexnet_feat_forward.2} parent=11 // pred_check_branch
        %144 = sbr.rel (%p142) target = $region16
      $region15: #{alexnet_feat_forward.2} parent=11 // pred_region
        %p145 = scmp.lt.s32.totalorder %s19, 0
        %s146 = scalar_select %p145, %s19, 0
        %s147 = smul.addr %s146, 4
        %s148 = scalar_lea.vmem %s1, %s147
      $region16: #{alexnet_feat_forward.2} parent=11 // pred_fallthru
        _
      // Predicated region
      $region17: #{alexnet_feat_forward.2} parent=11 // pred_check
        %p149 = pneg %p99
      $region18: #{alexnet_feat_forward.2} parent=11 // pred_check_branch
        %151 = sbr.rel (%p149) target = $region20
      $region19: #{alexnet_feat_forward.2} parent=11 // pred_region
        %p152 = scmp.lt.s32.totalorder %s19, 0
        %s153 = scalar_select %p152, %s19, 0
        %s154 = scalar_lea.vmem %s2, %s153
      $region20: #{alexnet_feat_forward.2} parent=11 // pred_fallthru
        _
    $region12: #{alexnet_feat_forward.2} parent=5 // pred_fallthru
      _
    %p155 = scmp.lt.s32.totalorder %s9, 2
    // Predicated region
    $region21: #{alexnet_feat_forward.2} parent=5 // pred_check
      %p156 = pneg %p155
    $region22: #{alexnet_feat_forward.2} parent=5 // pred_check_branch
      %158 = sbr.rel (%p156) target = $region24
    $region23: #{alexnet_feat_forward.2} parent=5 // pred_region
      // Predicated region
      $region25: #{alexnet_feat_forward.2} parent=23 // pred_check
        %p159 = pneg %p41
      $region26: #{alexnet_feat_forward.2} parent=23 // pred_check_branch
        %161 = sbr.rel (%p159) target = $region28
      $region27: #{alexnet_feat_forward.2} parent=23 // pred_region
        %p162 = scmp.lt.s32.totalorder %s16, 1
        %s163 = scalar_select %p162, %s16, 1
        %s164 = smul.addr %s163, 43
        %s165 = smul.addr %s164, 4
        %s166 = scalar_lea.vmem %s0, %s165
      $region28: #{alexnet_feat_forward.2} parent=23 // pred_fallthru
        _
    $region24: #{alexnet_feat_forward.2} parent=5 // pred_fallthru
      _
    %p167 = scmp.le.s32.totalorder 1, %s9
    %p168 = scmp.lt.s32.totalorder %s9, 3
    %p169 = pnand %p167, %p168
    %p170 = pneg %p169
    // Predicated region
    $region29: #{alexnet_feat_forward.2} parent=5 // pred_check
      _
    $region30: #{alexnet_feat_forward.2} parent=5 // pred_check_branch
      %172 = sbr.rel (%p169) target = $region32
    $region31: #{alexnet_feat_forward.2} parent=5 // pred_region
      %s173 = ssub.s32 %s9, 1
      %p174 = scmp.lt.s32.totalorder %s18, 1
      %s175 = scalar_select %p174, %s18, 1
      %s176 = smul.addr %s175, 43
      %s177 = smul.addr %s176, 4
      %s178 = scalar_lea.vmem %s0, %s177
      %p179 = pneg %p47
      %p180 = pneg %p44
      %p181 = scmp.lt.s32.totalorder %s19, 0
      %s182 = scalar_select %p181, %s19, 0
      %s183 = smul.addr %s182, 4
      %s184 = scalar_lea.vmem %s1, %s183
      %p185 = pneg %p73
      %p186 = pneg %p70
      %p187 = scmp.lt.s32.totalorder %s19, 0
      %s188 = scalar_select %p187, %s19, 0
      %s189 = scalar_lea.vmem %s2, %s188
      %p190 = pneg %p99
      %p191 = pneg %p96
      %p192 = pneg %p127
      %p193 = pneg %p124
      %p194 = scmp.lt.s32.totalorder %s18, 1
      %s195 = scalar_select %p194, %s18, 1
      %p196 = scmp.lt.s32.totalorder %s19, 0
      %s197 = scalar_select %p196, %s19, 0
      %s198 = smul.addr %s195, 36
      %s199 = sadd.s32 %s197, %s198
      %s200 = smul.addr %s199, 8
      %s201 = scalar_lea.vmem %s3, %s200
      %p202 = scmp.lt.s32.totalorder %s18, 1
      %s203 = scalar_select %p202, %s18, 1
      %s204 = smul.addr %s203, 43
      %s205 = smul.addr %s204, 4
      %s206 = scalar_lea.vmem %s0, %s205
      %p207 = scmp.lt.s32.totalorder %s19, 0
      %s208 = scalar_select %p207, %s19, 0
      %s209 = smul.addr %s208, 4
      %s210 = scalar_lea.vmem %s1, %s209
      %p211 = scmp.lt.s32.totalorder %s19, 0
      %s212 = scalar_select %p211, %s19, 0
      %s213 = scalar_lea.vmem %s2, %s212
      %p214 = scmp.lt.s32.totalorder %s18, 1
      %s215 = scalar_select %p214, %s18, 1
      %p216 = scmp.lt.s32.totalorder %s19, 0
      %s217 = scalar_select %p216, %s19, 0
      %s218 = smul.addr %s215, 36
      %s219 = sadd.s32 %s217, %s218
      %s220 = smul.addr %s219, 8
      %s221 = scalar_lea.vmem %s3, %s220
      %223 = vst [vmem:[#allocation2] sm:$0xff] 0.0
      %224 = vst [vmem:[#allocation2 + $0x8] sm:$0xff] 0.0
      %225 = vst [vmem:[#allocation2 + $0x10] sm:$0xff] 0.0
      %226 = vst [vmem:[#allocation2 + $0x18] sm:$0xff] 0.0
      %227 = vst [vmem:[#allocation2 + $0x20] sm:$0xff] 0.0
      %228 = vst [vmem:[#allocation2 + $0x28] sm:$0xff] 0.0
      %229 = vst [vmem:[#allocation2 + $0x30] sm:$0xff] 0.0
      %230 = vst [vmem:[#allocation2 + $0x38] sm:$0xff] 0.0
      %231 = vst [vmem:[#allocation2 + $0x40] sm:$0xff] 0.0
      %232 = vst [vmem:[#allocation2 + $0x48] sm:$0xff] 0.0
      %233 = vst [vmem:[#allocation2 + $0x50] sm:$0xff] 0.0
      %234 = vst [vmem:[#allocation2 + $0x58] sm:$0xff] 0.0
      %235 = vst [vmem:[#allocation2 + $0x60] sm:$0xff] 0.0
      %236 = vst [vmem:[#allocation2 + $0x68] sm:$0xff] 0.0
      %237 = vst [vmem:[#allocation2 + $0x70] sm:$0xff] 0.0
      %238 = vst [vmem:[#allocation2 + $0x78] sm:$0xff] 0.0
      %239 = vst [vmem:[#allocation2 + $0x80] sm:$0xff] 0.0
      %240 = vst [vmem:[#allocation2 + $0x88] sm:$0xff] 0.0
      %241 = vst [vmem:[#allocation2 + $0x90] sm:$0xff] 0.0
      %242 = vst [vmem:[#allocation2 + $0x98] sm:$0xff] 0.0
      %243 = vst [vmem:[#allocation2 + $0xa0] sm:$0xff] 0.0
      %244 = vst [vmem:[#allocation2 + $0xa8] sm:$0xff] 0.0
      %245 = vst [vmem:[#allocation2 + $0xb0] sm:$0xff] 0.0
      %246 = vst [vmem:[#allocation2 + $0xb8] sm:$0xff] 0.0
      %247 = vst [vmem:[#allocation2 + $0xc0] sm:$0xff] 0.0
      %248 = vst [vmem:[#allocation2 + $0xc8] sm:$0xff] 0.0
      %249 = vst [vmem:[#allocation2 + $0xd0] sm:$0xff] 0.0
      %250 = vst [vmem:[#allocation2 + $0xd8] sm:$0xff] 0.0
      %251 = vst [vmem:[#allocation2 + $0xe0] sm:$0xff] 0.0
      %252 = vst [vmem:[#allocation2 + $0xe8] sm:$0xff] 0.0
      %253 = vst [vmem:[#allocation2 + $0xf0] sm:$0xff] 0.0
      %254 = vst [vmem:[#allocation2 + $0xf8] sm:$0xff] 0.0
      %255 = vst [vmem:[#allocation2 + $0x100] sm:$0xff] 0.0
      %256 = vst [vmem:[#allocation2 + $0x108] sm:$0xff] 0.0
      %257 = vst [vmem:[#allocation2 + $0x110] sm:$0xff] 0.0
      %258 = vst [vmem:[#allocation2 + $0x118] sm:$0xff] 0.0
      %v259 = vld [vmem:[%s206] sm:$0xf]
      %v260 = vld [vmem:[%s206 + $0x4] sm:$0xf]
      %v261 = vld [vmem:[%s206 + $0x8] sm:$0xf]
      %v262 = vld [vmem:[%s206 + $0xc] sm:$0xf]
      %v263 = vld [vmem:[%s206 + $0x10] sm:$0xf]
      %v264 = vld [vmem:[%s206 + $0x14] sm:$0xf]
      %v265 = vld [vmem:[%s206 + $0x18] sm:$0xf]
      %v266 = vld [vmem:[%s206 + $0x1c] sm:$0xf]
      %v267 = vld [vmem:[%s206 + $0x20] sm:$0xf]
      %v268 = vld [vmem:[%s206 + $0x24] sm:$0xf]
      %v269 = vld [vmem:[%s206 + $0x28] sm:$0xf]
      %v270 = vld [vmem:[%s206 + $0x2c] sm:$0xf]
      %v271 = vld [vmem:[%s206 + $0x30] sm:$0xf]
      %v272 = vld [vmem:[%s206 + $0x34] sm:$0xf]
      %v273 = vld [vmem:[%s206 + $0x38] sm:$0xf]
      %v274 = vld [vmem:[%s206 + $0x3c] sm:$0xf]
      %v275 = vld [vmem:[%s206 + $0x40] sm:$0xf]
      %v276 = vld [vmem:[%s206 + $0x44] sm:$0xf]
      %v277 = vld [vmem:[%s206 + $0x48] sm:$0xf]
      %v278 = vld [vmem:[%s206 + $0x4c] sm:$0xf]
      %v279 = vld [vmem:[%s206 + $0x50] sm:$0xf]
      %v280 = vld [vmem:[%s206 + $0x54] sm:$0xf]
      %v281 = vld [vmem:[%s206 + $0x58] sm:$0xf]
      %v282 = vld [vmem:[%s206 + $0x5c] sm:$0xf]
      %v283 = vld [vmem:[%s206 + $0x60] sm:$0xf]
      %v284 = vld [vmem:[%s206 + $0x64] sm:$0xf]
      %v285 = vld [vmem:[%s206 + $0x68] sm:$0xf]
      %v286 = vld [vmem:[%s206 + $0x6c] sm:$0xf]
      %v287 = vld [vmem:[%s206 + $0x70] sm:$0xf]
      %v288 = vld [vmem:[%s206 + $0x74] sm:$0xf]
      %v289 = vld [vmem:[%s206 + $0x78] sm:$0xf]
      %v290 = vld [vmem:[%s206 + $0x7c] sm:$0xf]
      %v291 = vld [vmem:[%s206 + $0x80] sm:$0xf]
      %v292 = vld [vmem:[%s206 + $0x84] sm:$0xf]
      %v293 = vld [vmem:[%s206 + $0x88] sm:$0xf]
      %v294 = vld [vmem:[%s206 + $0x8c] sm:$0xf]
      %v295 = vld [vmem:[#allocation2] sm:$0xff]
      %v296 = vld [vmem:[#allocation2 + $0x8] sm:$0xff]
      %v297 = vld [vmem:[#allocation2 + $0x10] sm:$0xff]
      %v298 = vld [vmem:[#allocation2 + $0x18] sm:$0xff]
      %v299 = vld [vmem:[#allocation2 + $0x20] sm:$0xff]
      %v300 = vld [vmem:[#allocation2 + $0x28] sm:$0xff]
      %v301 = vld [vmem:[#allocation2 + $0x30] sm:$0xff]
      %v302 = vld [vmem:[#allocation2 + $0x38] sm:$0xff]
      %v303 = vld [vmem:[#allocation2 + $0x40] sm:$0xff]
      %v304 = vld [vmem:[#allocation2 + $0x48] sm:$0xff]
      %v305 = vld [vmem:[#allocation2 + $0x50] sm:$0xff]
      %v306 = vld [vmem:[#allocation2 + $0x58] sm:$0xff]
      %v307 = vld [vmem:[#allocation2 + $0x60] sm:$0xff]
      %v308 = vld [vmem:[#allocation2 + $0x68] sm:$0xff]
      %v309 = vld [vmem:[#allocation2 + $0x70] sm:$0xff]
      %v310 = vld [vmem:[#allocation2 + $0x78] sm:$0xff]
      %v311 = vld [vmem:[#allocation2 + $0x80] sm:$0xff]
      %v312 = vld [vmem:[#allocation2 + $0x88] sm:$0xff]
      %v313 = vld [vmem:[#allocation2 + $0x90] sm:$0xff]
      %v314 = vld [vmem:[#allocation2 + $0x98] sm:$0xff]
      %v315 = vld [vmem:[#allocation2 + $0xa0] sm:$0xff]
      %v316 = vld [vmem:[#allocation2 + $0xa8] sm:$0xff]
      %v317 = vld [vmem:[#allocation2 + $0xb0] sm:$0xff]
      %v318 = vld [vmem:[#allocation2 + $0xb8] sm:$0xff]
      %v319 = vld [vmem:[#allocation2 + $0xc0] sm:$0xff]
      %v320 = vld [vmem:[#allocation2 + $0xc8] sm:$0xff]
      %v321 = vld [vmem:[#allocation2 + $0xd0] sm:$0xff]
      %v322 = vld [vmem:[#allocation2 + $0xd8] sm:$0xff]
      %v323 = vld [vmem:[#allocation2 + $0xe0] sm:$0xff]
      %v324 = vld [vmem:[#allocation2 + $0xe8] sm:$0xff]
      %v325 = vld [vmem:[#allocation2 + $0xf0] sm:$0xff]
      %v326 = vld [vmem:[#allocation2 + $0xf8] sm:$0xff]
      %v327 = vld [vmem:[#allocation2 + $0x100] sm:$0xff]
      %v328 = vld [vmem:[#allocation2 + $0x108] sm:$0xff]
      %v329 = vld [vmem:[#allocation2 + $0x110] sm:$0xff]
      %v330 = vld [vmem:[#allocation2 + $0x118] sm:$0xff]
      %v331 = vld [vmem:[%s210] sm:$0xf]
      %v332 = vld [vmem:[%s210 + $0x4] sm:$0xf]
      %v333 = vld [vmem:[%s210 + $0x8] sm:$0xf]
      %v334 = vld [vmem:[%s210 + $0xc] sm:$0xf]
      %v335 = vld [vmem:[%s210 + $0x10] sm:$0xf]
      %v336 = vld [vmem:[%s210 + $0x14] sm:$0xf]
      %v373 = vunpack.c.l.b16 %v259
      %v374 = vunpack.c.l.b16 %v260
      %v375 = vunpack.c.l.b16 %v261
      %v376 = vunpack.c.l.b16 %v262
      %v377 = vunpack.c.l.b16 %v263
      %v378 = vunpack.c.l.b16 %v264
      %v379 = vunpack.c.l.b16 %v265
      %v380 = vunpack.c.l.b16 %v266
      %v381 = vunpack.c.l.b16 %v267
      %v382 = vunpack.c.l.b16 %v268
      %v383 = vunpack.c.l.b16 %v269
      %v384 = vunpack.c.l.b16 %v270
      %v385 = vunpack.c.l.b16 %v271
      %v386 = vunpack.c.l.b16 %v272
      %v387 = vunpack.c.l.b16 %v273
      %v388 = vunpack.c.l.b16 %v274
      %v389 = vunpack.c.l.b16 %v275
      %v390 = vunpack.c.l.b16 %v276
      %v391 = vunpack.c.l.b16 %v277
      %v392 = vunpack.c.l.b16 %v278
      %v393 = vunpack.c.l.b16 %v279
      %v394 = vunpack.c.l.b16 %v280
      %v395 = vunpack.c.l.b16 %v281
      %v396 = vunpack.c.l.b16 %v282
      %v397 = vunpack.c.l.b16 %v283
      %v398 = vunpack.c.l.b16 %v284
      %v399 = vunpack.c.l.b16 %v285
      %v400 = vunpack.c.l.b16 %v286
      %v401 = vunpack.c.l.b16 %v287
      %v402 = vunpack.c.l.b16 %v288
      %v403 = vunpack.c.l.b16 %v289
      %v404 = vunpack.c.l.b16 %v290
      %v405 = vunpack.c.l.b16 %v291
      %v406 = vunpack.c.l.b16 %v292
      %v407 = vunpack.c.l.b16 %v293
      %v408 = vunpack.c.l.b16 %v294
      %v409 = vpack.c.b16 %v374, %v373
      %v410 = vpack.c.b16 %v376, %v375
      %v411 = vpack.c.b16 %v378, %v377
      %v412 = vpack.c.b16 %v380, %v379
      %v413 = vpack.c.b16 %v382, %v381
      %v414 = vpack.c.b16 %v384, %v383
      %v415 = vpack.c.b16 %v386, %v385
      %v416 = vpack.c.b16 %v388, %v387
      %v417 = vpack.c.b16 %v390, %v389
      %v418 = vpack.c.b16 %v392, %v391
      %v419 = vpack.c.b16 %v394, %v393
      %v420 = vpack.c.b16 %v396, %v395
      %v421 = vpack.c.b16 %v398, %v397
      %v422 = vpack.c.b16 %v400, %v399
      %v423 = vpack.c.b16 %v402, %v401
      %v424 = vpack.c.b16 %v404, %v403
      %v425 = vpack.c.b16 %v406, %v405
      %v426 = vpack.c.b16 %v408, %v407
      %v433 = vunpack.c.l.b16 %v331
      %v434 = vunpack.c.l.b16 %v332
      %v435 = vunpack.c.l.b16 %v333
      %v436 = vunpack.c.l.b16 %v334
      %v437 = vunpack.c.l.b16 %v335
      %v438 = vunpack.c.l.b16 %v336
      %v439 = vpack.c.b16 %v434, %v433
      %v440 = vpack.c.b16 %v436, %v435
      %v441 = vpack.c.b16 %v438, %v437
      %vm445 = vcmask 392192
      %v447 = vsel %vm445, %v409, 0
      %v450 = vsel %vm445, %v410, 0
      %v453 = vsel %vm445, %v411, 0
      %v456 = vsel %vm445, %v412, 0
      %v459 = vsel %vm445, %v413, 0
      %v462 = vsel %vm445, %v414, 0
      %v465 = vsel %vm445, %v415, 0
      %v468 = vsel %vm445, %v416, 0
      %v471 = vsel %vm445, %v417, 0
      %v474 = vsel %vm445, %v418, 0
      %v477 = vsel %vm445, %v419, 0
      %v480 = vsel %vm445, %v420, 0
      %v483 = vsel %vm445, %v421, 0
      %v486 = vsel %vm445, %v422, 0
      %v489 = vsel %vm445, %v423, 0
      %v492 = vsel %vm445, %v424, 0
      %v495 = vsel %vm445, %v425, 0
      %v498 = vsel %vm445, %v426, 0
      %500 = vmatprep.subr.bf16.mxu0 0
      %501 = vmatpush1.bf16.msra.mxu0 %v439
      %502 = vmatprep.subr.bf16.mxu0 0
      %503 = vmatpush1.bf16.msra.mxu0 %v440
      %504 = vmatprep.subr.bf16.mxu0 0
      %505 = vmatpush1.bf16.msra.mxu0 %v441
      %506 = vmatprep.subr.bf16.mxu0 0
      %507 = vmatpush1.bf16.msra.mxu0 0
      %508 = vmatprep.subr.bf16.mxu0 0
      %509 = vmatpush1.bf16.msra.mxu0 0
      %510 = vmatprep.subr.bf16.mxu0 0
      %511 = vmatpush1.bf16.msra.mxu0 0
      %512 = vmatprep.subr.bf16.mxu0 0
      %513 = vmatpush1.bf16.msra.mxu0 0
      %514 = vmatprep.subr.bf16.mxu0 0
      %515 = vmatpush1.bf16.msra.mxu0 0
      %516 = vmatprep.subr.bf16.mxu0 0
      %517 = vmatpush1.bf16.msra.mxu0 0
      %518 = vmatprep.subr.bf16.mxu0 0
      %519 = vmatpush1.bf16.msra.mxu0 0
      %520 = vmatprep.subr.bf16.mxu0 0
      %521 = vmatpush1.bf16.msra.mxu0 0
      %522 = vmatprep.subr.bf16.mxu0 0
      %523 = vmatpush1.bf16.msra.mxu0 0
      %524 = vmatprep.subr.bf16.mxu0 0
      %525 = vmatpush1.bf16.msra.mxu0 0
      %526 = vmatprep.subr.bf16.mxu0 0
      %527 = vmatpush1.bf16.msra.mxu0 0
      %528 = vmatprep.subr.bf16.mxu0 0
      %529 = vmatpush1.bf16.msra.mxu0 0
      %530 = vmatprep.subr.bf16.mxu0 0
      %531 = vmatpush1.bf16.msra.mxu0 0
      %532 = vmatprep.mubr.bf16.mxu0 0
      %533 = vmatmul.mubr.bf16.gmra.mrb[0].mxu0 %v447
      %v534 = vpop.f32.mrb[0].mxu0
      %v535 = vadd.f32 0.0, %v534
      %v536 = vpop.f32.mrb[0].mxu0
      %v537 = vpop.f32.mrb[0].mxu0
      %v538 = vadd.f32 0.0, %v537
      %v539 = vpop.f32.mrb[0].mxu0
      %540 = vmatprep.mubr.bf16.mxu0 0
      %541 = vmatmul.mubr.bf16.gmra.mrb[0].mxu0 %v450
      %v542 = vpop.f32.mrb[0].mxu0
      %v543 = vadd.f32 0.0, %v542
      %v544 = vpop.f32.mrb[0].mxu0
      %v545 = vpop.f32.mrb[0].mxu0
      %v546 = vadd.f32 0.0, %v545
      %v547 = vpop.f32.mrb[0].mxu0
      %548 = vmatprep.mubr.bf16.mxu0 0
      %549 = vmatmul.mubr.bf16.gmra.mrb[0].mxu0 %v453
      %v550 = vpop.f32.mrb[0].mxu0
      %v551 = vadd.f32 0.0, %v550
      %v552 = vpop.f32.mrb[0].mxu0
      %v553 = vpop.f32.mrb[0].mxu0
      %v554 = vadd.f32 0.0, %v553
      %v555 = vpop.f32.mrb[0].mxu0
      %556 = vmatprep.mubr.bf16.mxu0 0
      %557 = vmatmul.mubr.bf16.gmra.mrb[0].mxu0 %v456
      %v558 = vpop.f32.mrb[0].mxu0
      %v559 = vadd.f32 0.0, %v558
      %v560 = vpop.f32.mrb[0].mxu0
      %v561 = vpop.f32.mrb[0].mxu0
      %v562 = vadd.f32 0.0, %v561
      %v563 = vpop.f32.mrb[0].mxu0
      %564 = vmatprep.mubr.bf16.mxu0 0
      %565 = vmatmul.mubr.bf16.gmra.mrb[0].mxu0 %v459
      %v566 = vpop.f32.mrb[0].mxu0
      %v567 = vadd.f32 0.0, %v566
      %v568 = vpop.f32.mrb[0].mxu0
      %v569 = vpop.f32.mrb[0].mxu0
      %v570 = vadd.f32 0.0, %v569
      %v571 = vpop.f32.mrb[0].mxu0
      %572 = vmatprep.mubr.bf16.mxu0 0
      %573 = vmatmul.mubr.bf16.gmra.mrb[0].mxu0 %v462
      %v574 = vpop.f32.mrb[0].mxu0
      %v575 = vadd.f32 0.0, %v574
      %v576 = vpop.f32.mrb[0].mxu0
      %v577 = vpop.f32.mrb[0].mxu0
      %v578 = vadd.f32 0.0, %v577
      %v579 = vpop.f32.mrb[0].mxu0
      %580 = vmatprep.mubr.bf16.mxu0 0
      %581 = vmatmul.mubr.bf16.gmra.mrb[0].mxu0 %v465
      %v582 = vpop.f32.mrb[0].mxu0
      %v583 = vadd.f32 0.0, %v582
      %v584 = vpop.f32.mrb[0].mxu0
      %v585 = vpop.f32.mrb[0].mxu0
      %v586 = vadd.f32 0.0, %v585
      %v587 = vpop.f32.mrb[0].mxu0
      %588 = vmatprep.mubr.bf16.mxu0 0
      %589 = vmatmul.mubr.bf16.gmra.mrb[0].mxu0 %v468
      %v590 = vpop.f32.mrb[0].mxu0
      %v591 = vadd.f32 0.0, %v590
      %v592 = vpop.f32.mrb[0].mxu0
      %v593 = vpop.f32.mrb[0].mxu0
      %v594 = vadd.f32 0.0, %v593
      %v595 = vpop.f32.mrb[0].mxu0
      %596 = vmatprep.mubr.bf16.mxu0 0
      %597 = vmatmul.mubr.bf16.gmra.mrb[0].mxu0 %v471
      %v598 = vpop.f32.mrb[0].mxu0
      %v599 = vadd.f32 0.0, %v598
      %v600 = vpop.f32.mrb[0].mxu0
      %v601 = vpop.f32.mrb[0].mxu0
      %v602 = vadd.f32 0.0, %v601
      %v603 = vpop.f32.mrb[0].mxu0
      %604 = vmatprep.mubr.bf16.mxu0 0
      %605 = vmatmul.mubr.bf16.gmra.mrb[0].mxu0 %v474
      %v606 = vpop.f32.mrb[0].mxu0
      %v607 = vadd.f32 0.0, %v606
      %v608 = vpop.f32.mrb[0].mxu0
      %v609 = vpop.f32.mrb[0].mxu0
      %v610 = vadd.f32 0.0, %v609
      %v611 = vpop.f32.mrb[0].mxu0
      %612 = vmatprep.mubr.bf16.mxu0 0
      %613 = vmatmul.mubr.bf16.gmra.mrb[0].mxu0 %v477
      %v614 = vpop.f32.mrb[0].mxu0
      %v615 = vadd.f32 0.0, %v614
      %v616 = vpop.f32.mrb[0].mxu0
      %v617 = vpop.f32.mrb[0].mxu0
      %v618 = vadd.f32 0.0, %v617
      %v619 = vpop.f32.mrb[0].mxu0
      %620 = vmatprep.mubr.bf16.mxu0 0
      %621 = vmatmul.mubr.bf16.gmra.mrb[0].mxu0 %v480
      %v622 = vpop.f32.mrb[0].mxu0
      %v623 = vadd.f32 0.0, %v622
      %v624 = vpop.f32.mrb[0].mxu0
      %v625 = vpop.f32.mrb[0].mxu0
      %v626 = vadd.f32 0.0, %v625
      %v627 = vpop.f32.mrb[0].mxu0
      %628 = vmatprep.mubr.bf16.mxu0 0
      %629 = vmatmul.mubr.bf16.gmra.mrb[0].mxu0 %v483
      %v630 = vpop.f32.mrb[0].mxu0
      %v631 = vadd.f32 0.0, %v630
      %v632 = vpop.f32.mrb[0].mxu0
      %v633 = vpop.f32.mrb[0].mxu0
      %v634 = vadd.f32 0.0, %v633
      %v635 = vpop.f32.mrb[0].mxu0
      %636 = vmatprep.mubr.bf16.mxu0 0
      %637 = vmatmul.mubr.bf16.gmra.mrb[0].mxu0 %v486
      %v638 = vpop.f32.mrb[0].mxu0
      %v639 = vadd.f32 0.0, %v638
      %v640 = vpop.f32.mrb[0].mxu0
      %v641 = vpop.f32.mrb[0].mxu0
      %v642 = vadd.f32 0.0, %v641
      %v643 = vpop.f32.mrb[0].mxu0
      %644 = vmatprep.mubr.bf16.mxu0 0
      %645 = vmatmul.mubr.bf16.gmra.mrb[0].mxu0 %v489
      %v646 = vpop.f32.mrb[0].mxu0
      %v647 = vadd.f32 0.0, %v646
      %v648 = vpop.f32.mrb[0].mxu0
      %v649 = vpop.f32.mrb[0].mxu0
      %v650 = vadd.f32 0.0, %v649
      %v651 = vpop.f32.mrb[0].mxu0
      %652 = vmatprep.mubr.bf16.mxu0 0
      %653 = vmatmul.mubr.bf16.gmra.mrb[0].mxu0 %v492
      %v654 = vpop.f32.mrb[0].mxu0
      %v655 = vadd.f32 0.0, %v654
      %v656 = vpop.f32.mrb[0].mxu0
      %v657 = vpop.f32.mrb[0].mxu0
      %v658 = vadd.f32 0.0, %v657
      %v659 = vpop.f32.mrb[0].mxu0
      %660 = vmatprep.mubr.bf16.mxu0 0
      %661 = vmatmul.mubr.bf16.gmra.mrb[0].mxu0 %v495
      %v662 = vpop.f32.mrb[0].mxu0
      %v663 = vadd.f32 0.0, %v662
      %v664 = vpop.f32.mrb[0].mxu0
      %v665 = vpop.f32.mrb[0].mxu0
      %v666 = vadd.f32 0.0, %v665
      %v667 = vpop.f32.mrb[0].mxu0
      %668 = vmatprep.mubr.bf16.mxu0 0
      %669 = vmatmul.mubr.bf16.gmra.mrb[0].mxu0 %v498
      %v670 = vpop.f32.mrb[0].mxu0
      %v671 = vadd.f32 0.0, %v670
      %v672 = vpop.f32.mrb[0].mxu0
      %v673 = vpop.f32.mrb[0].mxu0
      %v674 = vadd.f32 0.0, %v673
      %v675 = vpop.f32.mrb[0].mxu0
      %676 = vdwg.mxu0
      %v677 = vadd.f32 %v295, %v535
      %v678 = vadd.f32 %v296, %v538
      %v679 = vadd.f32 %v297, %v543
      %v680 = vadd.f32 %v298, %v546
      %v681 = vadd.f32 %v299, %v551
      %v682 = vadd.f32 %v300, %v554
      %v683 = vadd.f32 %v301, %v559
      %v684 = vadd.f32 %v302, %v562
      %v685 = vadd.f32 %v303, %v567
      %v686 = vadd.f32 %v304, %v570
      %v687 = vadd.f32 %v305, %v575
      %v688 = vadd.f32 %v306, %v578
      %v689 = vadd.f32 %v307, %v583
      %v690 = vadd.f32 %v308, %v586
      %v691 = vadd.f32 %v309, %v591
      %v692 = vadd.f32 %v310, %v594
      %v693 = vadd.f32 %v311, %v599
      %v694 = vadd.f32 %v312, %v602
      %v695 = vadd.f32 %v313, %v607
      %v696 = vadd.f32 %v314, %v610
      %v697 = vadd.f32 %v315, %v615
      %v698 = vadd.f32 %v316, %v618
      %v699 = vadd.f32 %v317, %v623
      %v700 = vadd.f32 %v318, %v626
      %v701 = vadd.f32 %v319, %v631
      %v702 = vadd.f32 %v320, %v634
      %v703 = vadd.f32 %v321, %v639
      %v704 = vadd.f32 %v322, %v642
      %v705 = vadd.f32 %v323, %v647
      %v706 = vadd.f32 %v324, %v650
      %v707 = vadd.f32 %v325, %v655
      %v708 = vadd.f32 %v326, %v658
      %v709 = vadd.f32 %v327, %v663
      %v710 = vadd.f32 %v328, %v666
      %v711 = vadd.f32 %v329, %v671
      %v712 = vadd.f32 %v330, %v674
      %713 = vst [vmem:[#allocation2] sm:$0xff] %v677
      %714 = vst [vmem:[#allocation2 + $0x8] sm:$0xff] %v678
      %715 = vst [vmem:[#allocation2 + $0x10] sm:$0xff] %v679
      %716 = vst [vmem:[#allocation2 + $0x18] sm:$0xff] %v680
      %717 = vst [vmem:[#allocation2 + $0x20] sm:$0xff] %v681
      %718 = vst [vmem:[#allocation2 + $0x28] sm:$0xff] %v682
      %719 = vst [vmem:[#allocation2 + $0x30] sm:$0xff] %v683
      %720 = vst [vmem:[#allocation2 + $0x38] sm:$0xff] %v684
      %721 = vst [vmem:[#allocation2 + $0x40] sm:$0xff] %v685
      %722 = vst [vmem:[#allocation2 + $0x48] sm:$0xff] %v686
      %723 = vst [vmem:[#allocation2 + $0x50] sm:$0xff] %v687
      %724 = vst [vmem:[#allocation2 + $0x58] sm:$0xff] %v688
      %725 = vst [vmem:[#allocation2 + $0x60] sm:$0xff] %v689
      %726 = vst [vmem:[#allocation2 + $0x68] sm:$0xff] %v690
      %727 = vst [vmem:[#allocation2 + $0x70] sm:$0xff] %v691
      %728 = vst [vmem:[#allocation2 + $0x78] sm:$0xff] %v692
      %729 = vst [vmem:[#allocation2 + $0x80] sm:$0xff] %v693
      %730 = vst [vmem:[#allocation2 + $0x88] sm:$0xff] %v694
      %731 = vst [vmem:[#allocation2 + $0x90] sm:$0xff] %v695
      %732 = vst [vmem:[#allocation2 + $0x98] sm:$0xff] %v696
      %733 = vst [vmem:[#allocation2 + $0xa0] sm:$0xff] %v697
      %734 = vst [vmem:[#allocation2 + $0xa8] sm:$0xff] %v698
      %735 = vst [vmem:[#allocation2 + $0xb0] sm:$0xff] %v699
      %736 = vst [vmem:[#allocation2 + $0xb8] sm:$0xff] %v700
      %737 = vst [vmem:[#allocation2 + $0xc0] sm:$0xff] %v701
      %738 = vst [vmem:[#allocation2 + $0xc8] sm:$0xff] %v702
      %739 = vst [vmem:[#allocation2 + $0xd0] sm:$0xff] %v703
      %740 = vst [vmem:[#allocation2 + $0xd8] sm:$0xff] %v704
      %741 = vst [vmem:[#allocation2 + $0xe0] sm:$0xff] %v705
      %742 = vst [vmem:[#allocation2 + $0xe8] sm:$0xff] %v706
      %743 = vst [vmem:[#allocation2 + $0xf0] sm:$0xff] %v707
      %744 = vst [vmem:[#allocation2 + $0xf8] sm:$0xff] %v708
      %745 = vst [vmem:[#allocation2 + $0x100] sm:$0xff] %v709
      %746 = vst [vmem:[#allocation2 + $0x108] sm:$0xff] %v710
      %747 = vst [vmem:[#allocation2 + $0x110] sm:$0xff] %v711
      %748 = vst [vmem:[#allocation2 + $0x118] sm:$0xff] %v712
      %v749 = vld [vmem:[%s206] sm:$0xf]
      %v750 = vld [vmem:[%s206 + $0x4] sm:$0xf]
      %v751 = vld [vmem:[%s206 + $0x8] sm:$0xf]
      %v752 = vld [vmem:[%s206 + $0xc] sm:$0xf]
      %v753 = vld [vmem:[%s206 + $0x10] sm:$0xf]
      %v754 = vld [vmem:[%s206 + $0x14] sm:$0xf]
      %v755 = vld [vmem:[%s206 + $0x18] sm:$0xf]
      %v756 = vld [vmem:[%s206 + $0x1c] sm:$0xf]
      %v757 = vld [vmem:[%s206 + $0x20] sm:$0xf]
      %v758 = vld [vmem:[%s206 + $0x24] sm:$0xf]
      %v759 = vld [vmem:[%s206 + $0x28] sm:$0xf]
      %v760 = vld [vmem:[%s206 + $0x2c] sm:$0xf]
      %v761 = vld [vmem:[%s206 + $0x30] sm:$0xf]
      %v762 = vld [vmem:[%s206 + $0x34] sm:$0xf]
      %v763 = vld [vmem:[%s206 + $0x38] sm:$0xf]
      %v764 = vld [vmem:[%s206 + $0x3c] sm:$0xf]
      %v765 = vld [vmem:[%s206 + $0x40] sm:$0xf]
      %v766 = vld [vmem:[%s206 + $0x44] sm:$0xf]
      %v767 = vld [vmem:[%s206 + $0x48] sm:$0xf]
      %v768 = vld [vmem:[%s206 + $0x4c] sm:$0xf]
      %v769 = vld [vmem:[%s206 + $0x50] sm:$0xf]
      %v770 = vld [vmem:[%s206 + $0x54] sm:$0xf]
      %v771 = vld [vmem:[%s206 + $0x58] sm:$0xf]
      %v772 = vld [vmem:[%s206 + $0x5c] sm:$0xf]
      %v773 = vld [vmem:[%s206 + $0x60] sm:$0xf]
      %v774 = vld [vmem:[%s206 + $0x64] sm:$0xf]
      %v775 = vld [vmem:[%s206 + $0x68] sm:$0xf]
      %v776 = vld [vmem:[%s206 + $0x6c] sm:$0xf]
      %v777 = vld [vmem:[%s206 + $0x70] sm:$0xf]
      %v778 = vld [vmem:[%s206 + $0x74] sm:$0xf]
      %v779 = vld [vmem:[%s206 + $0x78] sm:$0xf]
      %v780 = vld [vmem:[%s206 + $0x7c] sm:$0xf]
      %v781 = vld [vmem:[%s206 + $0x80] sm:$0xf]
      %v782 = vld [vmem:[%s206 + $0x84] sm:$0xf]
      %v783 = vld [vmem:[%s206 + $0x88] sm:$0xf]
      %v784 = vld [vmem:[%s206 + $0x8c] sm:$0xf]
      %v785 = vld [vmem:[%s206 + $0x90] sm:$0x1]
      %v786 = vld [vmem:[#allocation2] sm:$0xff]
      %v787 = vld [vmem:[#allocation2 + $0x8] sm:$0xff]
      %v788 = vld [vmem:[#allocation2 + $0x10] sm:$0xff]
      %v789 = vld [vmem:[#allocation2 + $0x18] sm:$0xff]
      %v790 = vld [vmem:[#allocation2 + $0x20] sm:$0xff]
      %v791 = vld [vmem:[#allocation2 + $0x28] sm:$0xff]
      %v792 = vld [vmem:[#allocation2 + $0x30] sm:$0xff]
      %v793 = vld [vmem:[#allocation2 + $0x38] sm:$0xff]
      %v794 = vld [vmem:[#allocation2 + $0x40] sm:$0xff]
      %v795 = vld [vmem:[#allocation2 + $0x48] sm:$0xff]
      %v796 = vld [vmem:[#allocation2 + $0x50] sm:$0xff]
      %v797 = vld [vmem:[#allocation2 + $0x58] sm:$0xff]
      %v798 = vld [vmem:[#allocation2 + $0x60] sm:$0xff]
      %v799 = vld [vmem:[#allocation2 + $0x68] sm:$0xff]
      %v800 = vld [vmem:[#allocation2 + $0x70] sm:$0xff]
      %v801 = vld [vmem:[#allocation2 + $0x78] sm:$0xff]
      %v802 = vld [vmem:[#allocation2 + $0x80] sm:$0xff]
      %v803 = vld [vmem:[#allocation2 + $0x88] sm:$0xff]
      %v804 = vld [vmem:[#allocation2 + $0x90] sm:$0xff]
      %v805 = vld [vmem:[#allocation2 + $0x98] sm:$0xff]
      %v806 = vld [vmem:[#allocation2 + $0xa0] sm:$0xff]
      %v807 = vld [vmem:[#allocation2 + $0xa8] sm:$0xff]
      %v808 = vld [vmem:[#allocation2 + $0xb0] sm:$0xff]
      %v809 = vld [vmem:[#allocation2 + $0xb8] sm:$0xff]
      %v810 = vld [vmem:[#allocation2 + $0xc0] sm:$0xff]
      %v811 = vld [vmem:[#allocation2 + $0xc8] sm:$0xff]
      %v812 = vld [vmem:[#allocation2 + $0xd0] sm:$0xff]
      %v813 = vld [vmem:[#allocation2 + $0xd8] sm:$0xff]
      %v814 = vld [vmem:[#allocation2 + $0xe0] sm:$0xff]
      %v815 = vld [vmem:[#allocation2 + $0xe8] sm:$0xff]
      %v816 = vld [vmem:[#allocation2 + $0xf0] sm:$0xff]
      %v817 = vld [vmem:[#allocation2 + $0xf8] sm:$0xff]
      %v818 = vld [vmem:[#allocation2 + $0x100] sm:$0xff]
      %v819 = vld [vmem:[#allocation2 + $0x108] sm:$0xff]
      %v820 = vld [vmem:[#allocation2 + $0x110] sm:$0xff]
      %v821 = vld [vmem:[#allocation2 + $0x118] sm:$0xff]
      %s822 = scalar_lea.vmem %s210, 24
      %v823 = vld [vmem:[%s822] sm:$0xf]
      %v824 = vld [vmem:[%s822 + $0x4] sm:$0xf]
      %v825 = vld [vmem:[%s822 + $0x8] sm:$0xf]
      %v826 = vld [vmem:[%s822 + $0xc] sm:$0xf]
      %v827 = vld [vmem:[%s822 + $0x10] sm:$0xf]
      %v828 = vld [vmem:[%s822 + $0x14] sm:$0xf]
      %v866 = vunpack.c.l.b16 %v749
      %v867 = vunpack.c.l.b16 %v750
      %v868 = vunpack.c.l.b16 %v751
      %v869 = vunpack.c.l.b16 %v752
      %v870 = vunpack.c.l.b16 %v753
      %v871 = vunpack.c.l.b16 %v754
      %v872 = vunpack.c.l.b16 %v755
      %v873 = vunpack.c.l.b16 %v756
      %v874 = vunpack.c.l.b16 %v757
      %v875 = vunpack.c.l.b16 %v758
      %v876 = vunpack.c.l.b16 %v759
      %v877 = vunpack.c.l.b16 %v760
      %v878 = vunpack.c.l.b16 %v761
      %v879 = vunpack.c.l.b16 %v762
      %v880 = vunpack.c.l.b16 %v763
      %v881 = vunpack.c.l.b16 %v764
      %v882 = vunpack.c.l.b16 %v765
      %v883 = vunpack.c.l.b16 %v766
      %v884 = vunpack.c.l.b16 %v767
      %v885 = vunpack.c.l.b16 %v768
      %v886 = vunpack.c.l.b16 %v769
      %v887 = vunpack.c.l.b16 %v770
      %v888 = vunpack.c.l.b16 %v771
      %v889 = vunpack.c.l.b16 %v772
      %v890 = vunpack.c.l.b16 %v773
      %v891 = vunpack.c.l.b16 %v774
      %v892 = vunpack.c.l.b16 %v775
      %v893 = vunpack.c.l.b16 %v776
      %v894 = vunpack.c.l.b16 %v777
      %v895 = vunpack.c.l.b16 %v778
      %v896 = vunpack.c.l.b16 %v779
      %v897 = vunpack.c.l.b16 %v780
      %v898 = vunpack.c.l.b16 %v781
      %v899 = vunpack.c.l.b16 %v782
      %v900 = vunpack.c.l.b16 %v783
      %v901 = vunpack.c.l.b16 %v784
      %v902 = vunpack.c.l.b16 %v785
      %v903 = vpack.c.b16 %v867, %v866
      %v904 = vpack.c.b16 %v869, %v868
      %v905 = vpack.c.b16 %v871, %v870
      %v906 = vpack.c.b16 %v873, %v872
      %v907 = vpack.c.b16 %v875, %v874
      %v908 = vpack.c.b16 %v877, %v876
      %v909 = vpack.c.b16 %v879, %v878
      %v910 = vpack.c.b16 %v881, %v880
      %v911 = vpack.c.b16 %v883, %v882
      %v912 = vpack.c.b16 %v885, %v884
      %v913 = vpack.c.b16 %v887, %v886
      %v914 = vpack.c.b16 %v889, %v888
      %v915 = vpack.c.b16 %v891, %v890
      %v916 = vpack.c.b16 %v893, %v892
      %v917 = vpack.c.b16 %v895, %v894
      %v918 = vpack.c.b16 %v897, %v896
      %v919 = vpack.c.b16 %v899, %v898
      %v920 = vpack.c.b16 %v901, %v900
      %v921 = vpack.c.b16 %v902, %v902
      %vm922 = vsmask.f32 7424
      %v924 = vshrl.u32 %v903, 16
      %v926 = vshll.u32 %v903, 16
      %v928 = vrot.slane %v926, 1
      %v929 = vor.u32 %v924, %v928
      %v931 = vshll.u32 %v904, 16
      %v933 = vrot.slane %v931, 1
      %v934 = vsel %vm922, %v929, %v933
      %v935 = vshrl.u32 %v904, 16
      %v937 = vor.u32 %v935, %v933
      %v939 = vshll.u32 %v905, 16
      %v941 = vrot.slane %v939, 1
      %v942 = vsel %vm922, %v937, %v941
      %v943 = vshrl.u32 %v905, 16
      %v945 = vor.u32 %v943, %v941
      %v947 = vshll.u32 %v906, 16
      %v949 = vrot.slane %v947, 1
      %v950 = vsel %vm922, %v945, %v949
      %v951 = vshrl.u32 %v906, 16
      %v953 = vor.u32 %v951, %v949
      %v955 = vshll.u32 %v907, 16
      %v957 = vrot.slane %v955, 1
      %v958 = vsel %vm922, %v953, %v957
      %v959 = vshrl.u32 %v907, 16
      %v961 = vor.u32 %v959, %v957
      %v963 = vshll.u32 %v908, 16
      %v965 = vrot.slane %v963, 1
      %v966 = vsel %vm922, %v961, %v965
      %v967 = vshrl.u32 %v908, 16
      %v969 = vor.u32 %v967, %v965
      %v971 = vshll.u32 %v909, 16
      %v973 = vrot.slane %v971, 1
      %v974 = vsel %vm922, %v969, %v973
      %v975 = vshrl.u32 %v909, 16
      %v977 = vor.u32 %v975, %v973
      %v979 = vshll.u32 %v910, 16
      %v981 = vrot.slane %v979, 1
      %v982 = vsel %vm922, %v977, %v981
      %v983 = vshrl.u32 %v910, 16
      %v985 = vor.u32 %v983, %v981
      %v987 = vshll.u32 %v911, 16
      %v989 = vrot.slane %v987, 1
      %v990 = vsel %vm922, %v985, %v989
      %v991 = vshrl.u32 %v911, 16
      %v993 = vor.u32 %v991, %v989
      %v995 = vshll.u32 %v912, 16
      %v997 = vrot.slane %v995, 1
      %v998 = vsel %vm922, %v993, %v997
      %v999 = vshrl.u32 %v912, 16
      %v1001 = vor.u32 %v999, %v997
      %v1003 = vshll.u32 %v913, 16
      %v1005 = vrot.slane %v1003, 1
      %v1006 = vsel %vm922, %v1001, %v1005
      %v1007 = vshrl.u32 %v913, 16
      %v1009 = vor.u32 %v1007, %v1005
      %v1011 = vshll.u32 %v914, 16
      %v1013 = vrot.slane %v1011, 1
      %v1014 = vsel %vm922, %v1009, %v1013
      %v1015 = vshrl.u32 %v914, 16
      %v1017 = vor.u32 %v1015, %v1013
      %v1019 = vshll.u32 %v915, 16
      %v1021 = vrot.slane %v1019, 1
      %v1022 = vsel %vm922, %v1017, %v1021
      %v1023 = vshrl.u32 %v915, 16
      %v1025 = vor.u32 %v1023, %v1021
      %v1027 = vshll.u32 %v916, 16
      %v1029 = vrot.slane %v1027, 1
      %v1030 = vsel %vm922, %v1025, %v1029
      %v1031 = vshrl.u32 %v916, 16
      %v1033 = vor.u32 %v1031, %v1029
      %v1035 = vshll.u32 %v917, 16
      %v1037 = vrot.slane %v1035, 1
      %v1038 = vsel %vm922, %v1033, %v1037
      %v1039 = vshrl.u32 %v917, 16
      %v1041 = vor.u32 %v1039, %v1037
      %v1043 = vshll.u32 %v918, 16
      %v1045 = vrot.slane %v1043, 1
      %v1046 = vsel %vm922, %v1041, %v1045
      %v1047 = vshrl.u32 %v918, 16
      %v1049 = vor.u32 %v1047, %v1045
      %v1051 = vshll.u32 %v919, 16
      %v1053 = vrot.slane %v1051, 1
      %v1054 = vsel %vm922, %v1049, %v1053
      %v1055 = vshrl.u32 %v919, 16
      %v1057 = vor.u32 %v1055, %v1053
      %v1059 = vshll.u32 %v920, 16
      %v1061 = vrot.slane %v1059, 1
      %v1062 = vsel %vm922, %v1057, %v1061
      %v1063 = vshrl.u32 %v920, 16
      %v1065 = vor.u32 %v1063, %v1061
      %v1067 = vshll.u32 %v921, 16
      %v1069 = vrot.slane %v1067, 1
      %v1070 = vsel %vm922, %v1065, %v1069
      %v1077 = vunpack.c.l.b16 %v823
      %v1078 = vunpack.c.l.b16 %v824
      %v1079 = vunpack.c.l.b16 %v825
      %v1080 = vunpack.c.l.b16 %v826
      %v1081 = vunpack.c.l.b16 %v827
      %v1082 = vunpack.c.l.b16 %v828
      %v1083 = vpack.c.b16 %v1078, %v1077
      %v1084 = vpack.c.b16 %v1080, %v1079
      %v1085 = vpack.c.b16 %v1082, %v1081
      %v1090 = vsel %vm445, %v934, 0
      %v1093 = vsel %vm445, %v942, 0
      %v1096 = vsel %vm445, %v950, 0
      %v1099 = vsel %vm445, %v958, 0
      %v1102 = vsel %vm445, %v966, 0
      %v1105 = vsel %vm445, %v974, 0
      %v1108 = vsel %vm445, %v982, 0
      %v1111 = vsel %vm445, %v990, 0
      %v1114 = vsel %vm445, %v998, 0
      %v1117 = vsel %vm445, %v1006, 0
      %v1120 = vsel %vm445, %v1014, 0
      %v1123 = vsel %vm445, %v1022, 0
      %v1126 = vsel %vm445, %v1030, 0
      %v1129 = vsel %vm445, %v1038, 0
      %v1132 = vsel %vm445, %v1046, 0
      %v1135 = vsel %vm445, %v1054, 0
      %v1138 = vsel %vm445, %v1062, 0
      %v1141 = vsel %vm445, %v1070, 0
      %1143 = vmatprep.subr.bf16.mxu0 0
      %1144 = vmatpush1.bf16.msra.mxu0 %v1083
      %1145 = vmatprep.subr.bf16.mxu0 0
      %1146 = vmatpush1.bf16.msra.mxu0 %v1084
      %1147 = vmatprep.subr.bf16.mxu0 0
      %1148 = vmatpush1.bf16.msra.mxu0 %v1085
      %1149 = vmatprep.subr.bf16.mxu0 0
      %1150 = vmatpush1.bf16.msra.mxu0 0
      %1151 = vmatprep.subr.bf16.mxu0 0
      %1152 = vmatpush1.bf16.msra.mxu0 0
      %1153 = vmatprep.subr.bf16.mxu0 0
      %1154 = vmatpush1.bf16.msra.mxu0 0
      %1155 = vmatprep.subr.bf16.mxu0 0
      %1156 = vmatpush1.bf16.msra.mxu0 0
      %1157 = vmatprep.subr.bf16.mxu0 0
      %1158 = vmatpush1.bf16.msra.mxu0 0
      %1159 = vmatprep.subr.bf16.mxu0 0
      %1160 = vmatpush1.bf16.msra.mxu0 0
      %1161 = vmatprep.subr.bf16.mxu0 0
      %1162 = vmatpush1.bf16.msra.mxu0 0
      %1163 = vmatprep.subr.bf16.mxu0 0
      %1164 = vmatpush1.bf16.msra.mxu0 0
      %1165 = vmatprep.subr.bf16.mxu0 0
      %1166 = vmatpush1.bf16.msra.mxu0 0
      %1167 = vmatprep.subr.bf16.mxu0 0
      %1168 = vmatpush1.bf16.msra.mxu0 0
      %1169 = vmatprep.subr.bf16.mxu0 0
      %1170 = vmatpush1.bf16.msra.mxu0 0
      %1171 = vmatprep.subr.bf16.mxu0 0
      %1172 = vmatpush1.bf16.msra.mxu0 0
      %1173 = vmatprep.subr.bf16.mxu0 0
      %1174 = vmatpush1.bf16.msra.mxu0 0
      %1175 = vmatprep.mubr.bf16.mxu0 0
      %1176 = vmatmul.mubr.bf16.gmra.mrb[0].mxu0 %v1090
      %v1177 = vpop.f32.mrb[0].mxu0
      %v1178 = vadd.f32 0.0, %v1177
      %v1179 = vpop.f32.mrb[0].mxu0
      %v1180 = vpop.f32.mrb[0].mxu0
      %v1181 = vadd.f32 0.0, %v1180
      %v1182 = vpop.f32.mrb[0].mxu0
      %1183 = vmatprep.mubr.bf16.mxu0 0
      %1184 = vmatmul.mubr.bf16.gmra.mrb[0].mxu0 %v1093
      %v1185 = vpop.f32.mrb[0].mxu0
      %v1186 = vadd.f32 0.0, %v1185
      %v1187 = vpop.f32.mrb[0].mxu0
      %v1188 = vpop.f32.mrb[0].mxu0
      %v1189 = vadd.f32 0.0, %v1188
      %v1190 = vpop.f32.mrb[0].mxu0
      %1191 = vmatprep.mubr.bf16.mxu0 0
      %1192 = vmatmul.mubr.bf16.gmra.mrb[0].mxu0 %v1096
      %v1193 = vpop.f32.mrb[0].mxu0
      %v1194 = vadd.f32 0.0, %v1193
      %v1195 = vpop.f32.mrb[0].mxu0
      %v1196 = vpop.f32.mrb[0].mxu0
      %v1197 = vadd.f32 0.0, %v1196
      %v1198 = vpop.f32.mrb[0].mxu0
      %1199 = vmatprep.mubr.bf16.mxu0 0
      %1200 = vmatmul.mubr.bf16.gmra.mrb[0].mxu0 %v1099
      %v1201 = vpop.f32.mrb[0].mxu0
      %v1202 = vadd.f32 0.0, %v1201
      %v1203 = vpop.f32.mrb[0].mxu0
      %v1204 = vpop.f32.mrb[0].mxu0
      %v1205 = vadd.f32 0.0, %v1204
      %v1206 = vpop.f32.mrb[0].mxu0
      %1207 = vmatprep.mubr.bf16.mxu0 0
      %1208 = vmatmul.mubr.bf16.gmra.mrb[0].mxu0 %v1102
      %v1209 = vpop.f32.mrb[0].mxu0
      %v1210 = vadd.f32 0.0, %v1209
      %v1211 = vpop.f32.mrb[0].mxu0
      %v1212 = vpop.f32.mrb[0].mxu0
      %v1213 = vadd.f32 0.0, %v1212
      %v1214 = vpop.f32.mrb[0].mxu0
      %1215 = vmatprep.mubr.bf16.mxu0 0
      %1216 = vmatmul.mubr.bf16.gmra.mrb[0].mxu0 %v1105
      %v1217 = vpop.f32.mrb[0].mxu0
      %v1218 = vadd.f32 0.0, %v1217
      %v1219 = vpop.f32.mrb[0].mxu0
      %v1220 = vpop.f32.mrb[0].mxu0
      %v1221 = vadd.f32 0.0, %v1220
      %v1222 = vpop.f32.mrb[0].mxu0
      %1223 = vmatprep.mubr.bf16.mxu0 0
      %1224 = vmatmul.mubr.bf16.gmra.mrb[0].mxu0 %v1108
      %v1225 = vpop.f32.mrb[0].mxu0
      %v1226 = vadd.f32 0.0, %v1225
      %v1227 = vpop.f32.mrb[0].mxu0
      %v1228 = vpop.f32.mrb[0].mxu0
      %v1229 = vadd.f32 0.0, %v1228
      %v1230 = vpop.f32.mrb[0].mxu0
      %1231 = vmatprep.mubr.bf16.mxu0 0
      %1232 = vmatmul.mubr.bf16.gmra.mrb[0].mxu0 %v1111
      %v1233 = vpop.f32.mrb[0].mxu0
      %v1234 = vadd.f32 0.0, %v1233
      %v1235 = vpop.f32.mrb[0].mxu0
      %v1236 = vpop.f32.mrb[0].mxu0
      %v1237 = vadd.f32 0.0, %v1236
      %v1238 = vpop.f32.mrb[0].mxu0
      %1239 = vmatprep.mubr.bf16.mxu0 0
      %1240 = vmatmul.mubr.bf16.gmra.mrb[0].mxu0 %v1114
      %v1241 = vpop.f32.mrb[0].mxu0
      %v1242 = vadd.f32 0.0, %v1241
      %v1243 = vpop.f32.mrb[0].mxu0
      %v1244 = vpop.f32.mrb[0].mxu0
      %v1245 = vadd.f32 0.0, %v1244
      %v1246 = vpop.f32.mrb[0].mxu0
      %1247 = vmatprep.mubr.bf16.mxu0 0
      %1248 = vmatmul.mubr.bf16.gmra.mrb[0].mxu0 %v1117
      %v1249 = vpop.f32.mrb[0].mxu0
      %v1250 = vadd.f32 0.0, %v1249
      %v1251 = vpop.f32.mrb[0].mxu0
      %v1252 = vpop.f32.mrb[0].mxu0
      %v1253 = vadd.f32 0.0, %v1252
      %v1254 = vpop.f32.mrb[0].mxu0
      %1255 = vmatprep.mubr.bf16.mxu0 0
      %1256 = vmatmul.mubr.bf16.gmra.mrb[0].mxu0 %v1120
      %v1257 = vpop.f32.mrb[0].mxu0
      %v1258 = vadd.f32 0.0, %v1257
      %v1259 = vpop.f32.mrb[0].mxu0
      %v1260 = vpop.f32.mrb[0].mxu0
      %v1261 = vadd.f32 0.0, %v1260
      %v1262 = vpop.f32.mrb[0].mxu0
      %1263 = vmatprep.mubr.bf16.mxu0 0
      %1264 = vmatmul.mubr.bf16.gmra.mrb[0].mxu0 %v1123
      %v1265 = vpop.f32.mrb[0].mxu0
      %v1266 = vadd.f32 0.0, %v1265
      %v1267 = vpop.f32.mrb[0].mxu0
      %v1268 = vpop.f32.mrb[0].mxu0
      %v1269 = vadd.f32 0.0, %v1268
      %v1270 = vpop.f32.mrb[0].mxu0
      %1271 = vmatprep.mubr.bf16.mxu0 0
      %1272 = vmatmul.mubr.bf16.gmra.mrb[0].mxu0 %v1126
      %v1273 = vpop.f32.mrb[0].mxu0
      %v1274 = vadd.f32 0.0, %v1273
      %v1275 = vpop.f32.mrb[0].mxu0
      %v1276 = vpop.f32.mrb[0].mxu0
      %v1277 = vadd.f32 0.0, %v1276
      %v1278 = vpop.f32.mrb[0].mxu0
      %1279 = vmatprep.mubr.bf16.mxu0 0
      %1280 = vmatmul.mubr.bf16.gmra.mrb[0].mxu0 %v1129
      %v1281 = vpop.f32.mrb[0].mxu0
      %v1282 = vadd.f32 0.0, %v1281
      %v1283 = vpop.f32.mrb[0].mxu0
      %v1284 = vpop.f32.mrb[0].mxu0
      %v1285 = vadd.f32 0.0, %v1284
      %v1286 = vpop.f32.mrb[0].mxu0
      %1287 = vmatprep.mubr.bf16.mxu0 0
      %1288 = vmatmul.mubr.bf16.gmra.mrb[0].mxu0 %v1132
      %v1289 = vpop.f32.mrb[0].mxu0
      %v1290 = vadd.f32 0.0, %v1289
      %v1291 = vpop.f32.mrb[0].mxu0
      %v1292 = vpop.f32.mrb[0].mxu0
      %v1293 = vadd.f32 0.0, %v1292
      %v1294 = vpop.f32.mrb[0].mxu0
      %1295 = vmatprep.mubr.bf16.mxu0 0
      %1296 = vmatmul.mubr.bf16.gmra.mrb[0].mxu0 %v1135
      %v1297 = vpop.f32.mrb[0].mxu0
      %v1298 = vadd.f32 0.0, %v1297
      %v1299 = vpop.f32.mrb[0].mxu0
      %v1300 = vpop.f32.mrb[0].mxu0
      %v1301 = vadd.f32 0.0, %v1300
      %v1302 = vpop.f32.mrb[0].mxu0
      %1303 = vmatprep.mubr.bf16.mxu0 0
      %1304 = vmatmul.mubr.bf16.gmra.mrb[0].mxu0 %v1138
      %v1305 = vpop.f32.mrb[0].mxu0
      %v1306 = vadd.f32 0.0, %v1305
      %v1307 = vpop.f32.mrb[0].mxu0
      %v1308 = vpop.f32.mrb[0].mxu0
      %v1309 = vadd.f32 0.0, %v1308
      %v1310 = vpop.f32.mrb[0].mxu0
      %1311 = vmatprep.mubr.bf16.mxu0 0
      %1312 = vmatmul.mubr.bf16.gmra.mrb[0].mxu0 %v1141
      %v1313 = vpop.f32.mrb[0].mxu0
      %v1314 = vadd.f32 0.0, %v1313
      %v1315 = vpop.f32.mrb[0].mxu0
      %v1316 = vpop.f32.mrb[0].mxu0
      %v1317 = vadd.f32 0.0, %v1316
      %v1318 = vpop.f32.mrb[0].mxu0
      %1319 = vdwg.mxu0
      %v1320 = vadd.f32 %v786, %v1178
      %v1321 = vadd.f32 %v787, %v1181
      %v1322 = vadd.f32 %v788, %v1186
      %v1323 = vadd.f32 %v789, %v1189
      %v1324 = vadd.f32 %v790, %v1194
      %v1325 = vadd.f32 %v791, %v1197
      %v1326 = vadd.f32 %v792, %v1202
      %v1327 = vadd.f32 %v793, %v1205
      %v1328 = vadd.f32 %v794, %v1210
      %v1329 = vadd.f32 %v795, %v1213
      %v1330 = vadd.f32 %v796, %v1218
      %v1331 = vadd.f32 %v797, %v1221
      %v1332 = vadd.f32 %v798, %v1226
      %v1333 = vadd.f32 %v799, %v1229
      %v1334 = vadd.f32 %v800, %v1234
      %v1335 = vadd.f32 %v801, %v1237
      %v1336 = vadd.f32 %v802, %v1242
      %v1337 = vadd.f32 %v803, %v1245
      %v1338 = vadd.f32 %v804, %v1250
      %v1339 = vadd.f32 %v805, %v1253
      %v1340 = vadd.f32 %v806, %v1258
      %v1341 = vadd.f32 %v807, %v1261
      %v1342 = vadd.f32 %v808, %v1266
      %v1343 = vadd.f32 %v809, %v1269
      %v1344 = vadd.f32 %v810, %v1274
      %v1345 = vadd.f32 %v811, %v1277
      %v1346 = vadd.f32 %v812, %v1282
      %v1347 = vadd.f32 %v813, %v1285
      %v1348 = vadd.f32 %v814, %v1290
      %v1349 = vadd.f32 %v815, %v1293
      %v1350 = vadd.f32 %v816, %v1298
      %v1351 = vadd.f32 %v817, %v1301
      %v1352 = vadd.f32 %v818, %v1306
      %v1353 = vadd.f32 %v819, %v1309
      %v1354 = vadd.f32 %v820, %v1314
      %v1355 = vadd.f32 %v821, %v1317
      %1356 = vst [vmem:[#allocation2] sm:$0xff] %v1320
      %1357 = vst [vmem:[#allocation2 + $0x8] sm:$0xff] %v1321
      %1358 = vst [vmem:[#allocation2 + $0x10] sm:$0xff] %v1322
      %1359 = vst [vmem:[#allocation2 + $0x18] sm:$0xff] %v1323
      %1360 = vst [vmem:[#allocation2 + $0x20] sm:$0xff] %v1324
      %1361 = vst [vmem:[#allocation2 + $0x28] sm:$0xff] %v1325
      %1362 = vst [vmem:[#allocation2 + $0x30] sm:$0xff] %v1326
      %1363 = vst [vmem:[#allocation2 + $0x38] sm:$0xff] %v1327
      %1364 = vst [vmem:[#allocation2 + $0x40] sm:$0xff] %v1328
      %1365 = vst [vmem:[#allocation2 + $0x48] sm:$0xff] %v1329
      %1366 = vst [vmem:[#allocation2 + $0x50] sm:$0xff] %v1330
      %1367 = vst [vmem:[#allocation2 + $0x58] sm:$0xff] %v1331
      %1368 = vst [vmem:[#allocation2 + $0x60] sm:$0xff] %v1332
      %1369 = vst [vmem:[#allocation2 + $0x68] sm:$0xff] %v1333
      %1370 = vst [vmem:[#allocation2 + $0x70] sm:$0xff] %v1334
      %1371 = vst [vmem:[#allocation2 + $0x78] sm:$0xff] %v1335
      %1372 = vst [vmem:[#allocation2 + $0x80] sm:$0xff] %v1336
      %1373 = vst [vmem:[#allocation2 + $0x88] sm:$0xff] %v1337
      %1374 = vst [vmem:[#allocation2 + $0x90] sm:$0xff] %v1338
      %1375 = vst [vmem:[#allocation2 + $0x98] sm:$0xff] %v1339
      %1376 = vst [vmem:[#allocation2 + $0xa0] sm:$0xff] %v1340
      %1377 = vst [vmem:[#allocation2 + $0xa8] sm:$0xff] %v1341
      %1378 = vst [vmem:[#allocation2 + $0xb0] sm:$0xff] %v1342
      %1379 = vst [vmem:[#allocation2 + $0xb8] sm:$0xff] %v1343
      %1380 = vst [vmem:[#allocation2 + $0xc0] sm:$0xff] %v1344
      %1381 = vst [vmem:[#allocation2 + $0xc8] sm:$0xff] %v1345
      %1382 = vst [vmem:[#allocation2 + $0xd0] sm:$0xff] %v1346
      %1383 = vst [vmem:[#allocation2 + $0xd8] sm:$0xff] %v1347
      %1384 = vst [vmem:[#allocation2 + $0xe0] sm:$0xff] %v1348
      %1385 = vst [vmem:[#allocation2 + $0xe8] sm:$0xff] %v1349
      %1386 = vst [vmem:[#allocation2 + $0xf0] sm:$0xff] %v1350
      %1387 = vst [vmem:[#allocation2 + $0xf8] sm:$0xff] %v1351
      %1388 = vst [vmem:[#allocation2 + $0x100] sm:$0xff] %v1352
      %1389 = vst [vmem:[#allocation2 + $0x108] sm:$0xff] %v1353
      %1390 = vst [vmem:[#allocation2 + $0x110] sm:$0xff] %v1354
      %1391 = vst [vmem:[#allocation2 + $0x118] sm:$0xff] %v1355
      %v1392 = vld [vmem:[%s206] sm:$0xe]
      %v1393 = vld [vmem:[%s206 + $0x4] sm:$0xf]
      %v1394 = vld [vmem:[%s206 + $0x8] sm:$0xf]
      %v1395 = vld [vmem:[%s206 + $0xc] sm:$0xf]
      %v1396 = vld [vmem:[%s206 + $0x10] sm:$0xf]
      %v1397 = vld [vmem:[%s206 + $0x14] sm:$0xf]
      %v1398 = vld [vmem:[%s206 + $0x18] sm:$0xf]
      %v1399 = vld [vmem:[%s206 + $0x1c] sm:$0xf]
      %v1400 = vld [vmem:[%s206 + $0x20] sm:$0xf]
      %v1401 = vld [vmem:[%s206 + $0x24] sm:$0xf]
      %v1402 = vld [vmem:[%s206 + $0x28] sm:$0xf]
      %v1403 = vld [vmem:[%s206 + $0x2c] sm:$0xf]
      %v1404 = vld [vmem:[%s206 + $0x30] sm:$0xf]
      %v1405 = vld [vmem:[%s206 + $0x34] sm:$0xf]
      %v1406 = vld [vmem:[%s206 + $0x38] sm:$0xf]
      %v1407 = vld [vmem:[%s206 + $0x3c] sm:$0xf]
      %v1408 = vld [vmem:[%s206 + $0x40] sm:$0xf]
      %v1409 = vld [vmem:[%s206 + $0x44] sm:$0xf]
      %v1410 = vld [vmem:[%s206 + $0x48] sm:$0xf]
      %v1411 = vld [vmem:[%s206 + $0x4c] sm:$0xf]
      %v1412 = vld [vmem:[%s206 + $0x50] sm:$0xf]
      %v1413 = vld [vmem:[%s206 + $0x54] sm:$0xf]
      %v1414 = vld [vmem:[%s206 + $0x58] sm:$0xf]
      %v1415 = vld [vmem:[%s206 + $0x5c] sm:$0xf]
      %v1416 = vld [vmem:[%s206 + $0x60] sm:$0xf]
      %v1417 = vld [vmem:[%s206 + $0x64] sm:$0xf]
      %v1418 = vld [vmem:[%s206 + $0x68] sm:$0xf]
      %v1419 = vld [vmem:[%s206 + $0x6c] sm:$0xf]
      %v1420 = vld [vmem:[%s206 + $0x70] sm:$0xf]
      %v1421 = vld [vmem:[%s206 + $0x74] sm:$0xf]
      %v1422 = vld [vmem:[%s206 + $0x78] sm:$0xf]
      %v1423 = vld [vmem:[%s206 + $0x7c] sm:$0xf]
      %v1424 = vld [vmem:[%s206 + $0x80] sm:$0xf]
      %v1425 = vld [vmem:[%s206 + $0x84] sm:$0xf]
      %v1426 = vld [vmem:[%s206 + $0x88] sm:$0xf]
      %v1427 = vld [vmem:[%s206 + $0x8c] sm:$0xf]
      %v1428 = vld [vmem:[%s206 + $0x90] sm:$0x1]
      %v1429 = vld [vmem:[#allocation2] sm:$0xff]
      %v1430 = vld [vmem:[#allocation2 + $0x8] sm:$0xff]
      %v1431 = vld [vmem:[#allocation2 + $0x10] sm:$0xff]
      %v1432 = vld [vmem:[#allocation2 + $0x18] sm:$0xff]
      %v1433 = vld [vmem:[#allocation2 + $0x20] sm:$0xff]
      %v1434 = vld [vmem:[#allocation2 + $0x28] sm:$0xff]
      %v1435 = vld [vmem:[#allocation2 + $0x30] sm:$0xff]
      %v1436 = vld [vmem:[#allocation2 + $0x38] sm:$0xff]
      %v1437 = vld [vmem:[#allocation2 + $0x40] sm:$0xff]
      %v1438 = vld [vmem:[#allocation2 + $0x48] sm:$0xff]
      %v1439 = vld [vmem:[#allocation2 + $0x50] sm:$0xff]
      %v1440 = vld [vmem:[#allocation2 + $0x58] sm:$0xff]
      %v1441 = vld [vmem:[#allocation2 + $0x60] sm:$0xff]
      %v1442 = vld [vmem:[#allocation2 + $0x68] sm:$0xff]
      %v1443 = vld [vmem:[#allocation2 + $0x70] sm:$0xff]
      %v1444 = vld [vmem:[#allocation2 + $0x78] sm:$0xff]
      %v1445 = vld [vmem:[#allocation2 + $0x80] sm:$0xff]
      %v1446 = vld [vmem:[#allocation2 + $0x88] sm:$0xff]
      %v1447 = vld [vmem:[#allocation2 + $0x90] sm:$0xff]
      %v1448 = vld [vmem:[#allocation2 + $0x98] sm:$0xff]
      %v1449 = vld [vmem:[#allocation2 + $0xa0] sm:$0xff]
      %v1450 = vld [vmem:[#allocation2 + $0xa8] sm:$0xff]
      %v1451 = vld [vmem:[#allocation2 + $0xb0] sm:$0xff]
      %v1452 = vld [vmem:[#allocation2 + $0xb8] sm:$0xff]
      %v1453 = vld [vmem:[#allocation2 + $0xc0] sm:$0xff]
      %v1454 = vld [vmem:[#allocation2 + $0xc8] sm:$0xff]
      %v1455 = vld [vmem:[#allocation2 + $0xd0] sm:$0xff]
      %v1456 = vld [vmem:[#allocation2 + $0xd8] sm:$0xff]
      %v1457 = vld [vmem:[#allocation2 + $0xe0] sm:$0xff]
      %v1458 = vld [vmem:[#allocation2 + $0xe8] sm:$0xff]
      %v1459 = vld [vmem:[#allocation2 + $0xf0] sm:$0xff]
      %v1460 = vld [vmem:[#allocation2 + $0xf8] sm:$0xff]
      %v1461 = vld [vmem:[#allocation2 + $0x100] sm:$0xff]
      %v1462 = vld [vmem:[#allocation2 + $0x108] sm:$0xff]
      %v1463 = vld [vmem:[#allocation2 + $0x110] sm:$0xff]
      %v1464 = vld [vmem:[#allocation2 + $0x118] sm:$0xff]
      %s1465 = scalar_lea.vmem %s210, 48
      %v1466 = vld [vmem:[%s1465] sm:$0xf]
      %v1467 = vld [vmem:[%s1465 + $0x4] sm:$0xf]
      %v1468 = vld [vmem:[%s1465 + $0x8] sm:$0xf]
      %v1469 = vld [vmem:[%s1465 + $0xc] sm:$0xf]
      %v1470 = vld [vmem:[%s1465 + $0x10] sm:$0xf]
      %v1471 = vld [vmem:[%s1465 + $0x14] sm:$0xf]
      %v1509 = vunpack.c.l.b16 %v1392
      %v1510 = vunpack.c.l.b16 %v1393
      %v1511 = vunpack.c.l.b16 %v1394
      %v1512 = vunpack.c.l.b16 %v1395
      %v1513 = vunpack.c.l.b16 %v1396
      %v1514 = vunpack.c.l.b16 %v1397
      %v1515 = vunpack.c.l.b16 %v1398
      %v1516 = vunpack.c.l.b16 %v1399
      %v1517 = vunpack.c.l.b16 %v1400
      %v1518 = vunpack.c.l.b16 %v1401
      %v1519 = vunpack.c.l.b16 %v1402
      %v1520 = vunpack.c.l.b16 %v1403
      %v1521 = vunpack.c.l.b16 %v1404
      %v1522 = vunpack.c.l.b16 %v1405
      %v1523 = vunpack.c.l.b16 %v1406
      %v1524 = vunpack.c.l.b16 %v1407
      %v1525 = vunpack.c.l.b16 %v1408
      %v1526 = vunpack.c.l.b16 %v1409
      %v1527 = vunpack.c.l.b16 %v1410
      %v1528 = vunpack.c.l.b16 %v1411
      %v1529 = vunpack.c.l.b16 %v1412
      %v1530 = vunpack.c.l.b16 %v1413
      %v1531 = vunpack.c.l.b16 %v1414
      %v1532 = vunpack.c.l.b16 %v1415
      %v1533 = vunpack.c.l.b16 %v1416
      %v1534 = vunpack.c.l.b16 %v1417
      %v1535 = vunpack.c.l.b16 %v1418
      %v1536 = vunpack.c.l.b16 %v1419
      %v1537 = vunpack.c.l.b16 %v1420
      %v1538 = vunpack.c.l.b16 %v1421
      %v1539 = vunpack.c.l.b16 %v1422
      %v1540 = vunpack.c.l.b16 %v1423
      %v1541 = vunpack.c.l.b16 %v1424
      %v1542 = vunpack.c.l.b16 %v1425
      %v1543 = vunpack.c.l.b16 %v1426
      %v1544 = vunpack.c.l.b16 %v1427
      %v1545 = vunpack.c.l.b16 %v1428
      %v1546 = vpack.c.b16 %v1510, %v1509
      %v1547 = vpack.c.b16 %v1512, %v1511
      %v1548 = vpack.c.b16 %v1514, %v1513
      %v1549 = vpack.c.b16 %v1516, %v1515
      %v1550 = vpack.c.b16 %v1518, %v1517
      %v1551 = vpack.c.b16 %v1520, %v1519
      %v1552 = vpack.c.b16 %v1522, %v1521
      %v1553 = vpack.c.b16 %v1524, %v1523
      %v1554 = vpack.c.b16 %v1526, %v1525
      %v1555 = vpack.c.b16 %v1528, %v1527
      %v1556 = vpack.c.b16 %v1530, %v1529
      %v1557 = vpack.c.b16 %v1532, %v1531
      %v1558 = vpack.c.b16 %v1534, %v1533
      %v1559 = vpack.c.b16 %v1536, %v1535
      %v1560 = vpack.c.b16 %v1538, %v1537
      %v1561 = vpack.c.b16 %v1540, %v1539
      %v1562 = vpack.c.b16 %v1542, %v1541
      %v1563 = vpack.c.b16 %v1544, %v1543
      %v1564 = vpack.c.b16 %v1545, %v1545
      %vm1565 = vcmask 1046528
      %v1566 = vrot.slane %v1546, 1
      %v1567 = vrot.slane %v1547, 1
      %v1568 = vsel %vm1565, %v1566, %v1567
      %v1569 = vrot.slane %v1548, 1
      %v1570 = vsel %vm1565, %v1567, %v1569
      %v1571 = vrot.slane %v1549, 1
      %v1572 = vsel %vm1565, %v1569, %v1571
      %v1573 = vrot.slane %v1550, 1
      %v1574 = vsel %vm1565, %v1571, %v1573
      %v1575 = vrot.slane %v1551, 1
      %v1576 = vsel %vm1565, %v1573, %v1575
      %v1577 = vrot.slane %v1552, 1
      %v1578 = vsel %vm1565, %v1575, %v1577
      %v1579 = vrot.slane %v1553, 1
      %v1580 = vsel %vm1565, %v1577, %v1579
      %v1581 = vrot.slane %v1554, 1
      %v1582 = vsel %vm1565, %v1579, %v1581
      %v1583 = vrot.slane %v1555, 1
      %v1584 = vsel %vm1565, %v1581, %v1583
      %v1585 = vrot.slane %v1556, 1
      %v1586 = vsel %vm1565, %v1583, %v1585
      %v1587 = vrot.slane %v1557, 1
      %v1588 = vsel %vm1565, %v1585, %v1587
      %v1589 = vrot.slane %v1558, 1
      %v1590 = vsel %vm1565, %v1587, %v1589
      %v1591 = vrot.slane %v1559, 1
      %v1592 = vsel %vm1565, %v1589, %v1591
      %v1593 = vrot.slane %v1560, 1
      %v1594 = vsel %vm1565, %v1591, %v1593
      %v1595 = vrot.slane %v1561, 1
      %v1596 = vsel %vm1565, %v1593, %v1595
      %v1597 = vrot.slane %v1562, 1
      %v1598 = vsel %vm1565, %v1595, %v1597
      %v1599 = vrot.slane %v1563, 1
      %v1600 = vsel %vm1565, %v1597, %v1599
      %v1601 = vrot.slane %v1564, 1
      %v1602 = vsel %vm1565, %v1599, %v1601
      %v1609 = vunpack.c.l.b16 %v1466
      %v1610 = vunpack.c.l.b16 %v1467
      %v1611 = vunpack.c.l.b16 %v1468
      %v1612 = vunpack.c.l.b16 %v1469
      %v1613 = vunpack.c.l.b16 %v1470
      %v1614 = vunpack.c.l.b16 %v1471
      %v1615 = vpack.c.b16 %v1610, %v1609
      %v1616 = vpack.c.b16 %v1612, %v1611
      %v1617 = vpack.c.b16 %v1614, %v1613
      %v1622 = vsel %vm445, %v1568, 0
      %v1625 = vsel %vm445, %v1570, 0
      %v1628 = vsel %vm445, %v1572, 0
      %v1631 = vsel %vm445, %v1574, 0
      %v1634 = vsel %vm445, %v1576, 0
      %v1637 = vsel %vm445, %v1578, 0
      %v1640 = vsel %vm445, %v1580, 0
      %v1643 = vsel %vm445, %v1582, 0
      %v1646 = vsel %vm445, %v1584, 0
      %v1649 = vsel %vm445, %v1586, 0
      %v1652 = vsel %vm445, %v1588, 0
      %v1655 = vsel %vm445, %v1590, 0
      %v1658 = vsel %vm445, %v1592, 0
      %v1661 = vsel %vm445, %v1594, 0
      %v1664 = vsel %vm445, %v1596, 0
      %v1667 = vsel %vm445, %v1598, 0
      %v1670 = vsel %vm445, %v1600, 0
      %v1673 = vsel %vm445, %v1602, 0
      %1675 = vmatprep.subr.bf16.mxu0 0
      %1676 = vmatpush1.bf16.msra.mxu0 %v1615
      %1677 = vmatprep.subr.bf16.mxu0 0
      %1678 = vmatpush1.bf16.msra.mxu0 %v1616
      %1679 = vmatprep.subr.bf16.mxu0 0
      %1680 = vmatpush1.bf16.msra.mxu0 %v1617
      %1681 = vmatprep.subr.bf16.mxu0 0
      %1682 = vmatpush1.bf16.msra.mxu0 0
      %1683 = vmatprep.subr.bf16.mxu0 0
      %1684 = vmatpush1.bf16.msra.mxu0 0
      %1685 = vmatprep.subr.bf16.mxu0 0
      %1686 = vmatpush1.bf16.msra.mxu0 0
      %1687 = vmatprep.subr.bf16.mxu0 0
      %1688 = vmatpush1.bf16.msra.mxu0 0
      %1689 = vmatprep.subr.bf16.mxu0 0
      %1690 = vmatpush1.bf16.msra.mxu0 0
      %1691 = vmatprep.subr.bf16.mxu0 0
      %1692 = vmatpush1.bf16.msra.mxu0 0
      %1693 = vmatprep.subr.bf16.mxu0 0
      %1694 = vmatpush1.bf16.msra.mxu0 0
      %1695 = vmatprep.subr.bf16.mxu0 0
      %1696 = vmatpush1.bf16.msra.mxu0 0
      %1697 = vmatprep.subr.bf16.mxu0 0
      %1698 = vmatpush1.bf16.msra.mxu0 0
      %1699 = vmatprep.subr.bf16.mxu0 0
      %1700 = vmatpush1.bf16.msra.mxu0 0
      %1701 = vmatprep.subr.bf16.mxu0 0
      %1702 = vmatpush1.bf16.msra.mxu0 0
      %1703 = vmatprep.subr.bf16.mxu0 0
      %1704 = vmatpush1.bf16.msra.mxu0 0
      %1705 = vmatprep.subr.bf16.mxu0 0
      %1706 = vmatpush1.bf16.msra.mxu0 0
      %1707 = vmatprep.mubr.bf16.mxu0 0
      %1708 = vmatmul.mubr.bf16.gmra.mrb[0].mxu0 %v1622
      %v1709 = vpop.f32.mrb[0].mxu0
      %v1710 = vadd.f32 0.0, %v1709
      %v1711 = vpop.f32.mrb[0].mxu0
      %v1712 = vpop.f32.mrb[0].mxu0
      %v1713 = vadd.f32 0.0, %v1712
      %v1714 = vpop.f32.mrb[0].mxu0
      %1715 = vmatprep.mubr.bf16.mxu0 0
      %1716 = vmatmul.mubr.bf16.gmra.mrb[0].mxu0 %v1625
      %v1717 = vpop.f32.mrb[0].mxu0
      %v1718 = vadd.f32 0.0, %v1717
      %v1719 = vpop.f32.mrb[0].mxu0
      %v1720 = vpop.f32.mrb[0].mxu0
      %v1721 = vadd.f32 0.0, %v1720
      %v1722 = vpop.f32.mrb[0].mxu0
      %1723 = vmatprep.mubr.bf16.mxu0 0
      %1724 = vmatmul.mubr.bf16.gmra.mrb[0].mxu0 %v1628
      %v1725 = vpop.f32.mrb[0].mxu0
      %v1726 = vadd.f32 0.0, %v1725
      %v1727 = vpop.f32.mrb[0].mxu0
      %v1728 = vpop.f32.mrb[0].mxu0
      %v1729 = vadd.f32 0.0, %v1728
      %v1730 = vpop.f32.mrb[0].mxu0
      %1731 = vmatprep.mubr.bf16.mxu0 0
      %1732 = vmatmul.mubr.bf16.gmra.mrb[0].mxu0 %v1631
      %v1733 = vpop.f32.mrb[0].mxu0
      %v1734 = vadd.f32 0.0, %v1733
      %v1735 = vpop.f32.mrb[0].mxu0
      %v1736 = vpop.f32.mrb[0].mxu0
      %v1737 = vadd.f32 0.0, %v1736
      %v1738 = vpop.f32.mrb[0].mxu0
      %1739 = vmatprep.mubr.bf16.mxu0 0
      %1740 = vmatmul.mubr.bf16.gmra.mrb[0].mxu0 %v1634
      %v1741 = vpop.f32.mrb[0].mxu0
      %v1742 = vadd.f32 0.0, %v1741
      %v1743 = vpop.f32.mrb[0].mxu0
      %v1744 = vpop.f32.mrb[0].mxu0
      %v1745 = vadd.f32 0.0, %v1744
      %v1746 = vpop.f32.mrb[0].mxu0
      %1747 = vmatprep.mubr.bf16.mxu0 0
      %1748 = vmatmul.mubr.bf16.gmra.mrb[0].mxu0 %v1637
      %v1749 = vpop.f32.mrb[0].mxu0
      %v1750 = vadd.f32 0.0, %v1749
      %v1751 = vpop.f32.mrb[0].mxu0
      %v1752 = vpop.f32.mrb[0].mxu0
      %v1753 = vadd.f32 0.0, %v1752
      %v1754 = vpop.f32.mrb[0].mxu0
      %1755 = vmatprep.mubr.bf16.mxu0 0
      %1756 = vmatmul.mubr.bf16.gmra.mrb[0].mxu0 %v1640
      %v1757 = vpop.f32.mrb[0].mxu0
      %v1758 = vadd.f32 0.0, %v1757
      %v1759 = vpop.f32.mrb[0].mxu0
      %v1760 = vpop.f32.mrb[0].mxu0
      %v1761 = vadd.f32 0.0, %v1760
      %v1762 = vpop.f32.mrb[0].mxu0
      %1763 = vmatprep.mubr.bf16.mxu0 0
      %1764 = vmatmul.mubr.bf16.gmra.mrb[0].mxu0 %v1643
      %v1765 = vpop.f32.mrb[0].mxu0
      %v1766 = vadd.f32 0.0, %v1765
      %v1767 = vpop.f32.mrb[0].mxu0
      %v1768 = vpop.f32.mrb[0].mxu0
      %v1769 = vadd.f32 0.0, %v1768
      %v1770 = vpop.f32.mrb[0].mxu0
      %1771 = vmatprep.mubr.bf16.mxu0 0
      %1772 = vmatmul.mubr.bf16.gmra.mrb[0].mxu0 %v1646
      %v1773 = vpop.f32.mrb[0].mxu0
      %v1774 = vadd.f32 0.0, %v1773
      %v1775 = vpop.f32.mrb[0].mxu0
      %v1776 = vpop.f32.mrb[0].mxu0
      %v1777 = vadd.f32 0.0, %v1776
      %v1778 = vpop.f32.mrb[0].mxu0
      %1779 = vmatprep.mubr.bf16.mxu0 0
      %1780 = vmatmul.mubr.bf16.gmra.mrb[0].mxu0 %v1649
      %v1781 = vpop.f32.mrb[0].mxu0
      %v1782 = vadd.f32 0.0, %v1781
      %v1783 = vpop.f32.mrb[0].mxu0
      %v1784 = vpop.f32.mrb[0].mxu0
      %v1785 = vadd.f32 0.0, %v1784
      %v1786 = vpop.f32.mrb[0].mxu0
      %1787 = vmatprep.mubr.bf16.mxu0 0
      %1788 = vmatmul.mubr.bf16.gmra.mrb[0].mxu0 %v1652
      %v1789 = vpop.f32.mrb[0].mxu0
      %v1790 = vadd.f32 0.0, %v1789
      %v1791 = vpop.f32.mrb[0].mxu0
      %v1792 = vpop.f32.mrb[0].mxu0
      %v1793 = vadd.f32 0.0, %v1792
      %v1794 = vpop.f32.mrb[0].mxu0
      %1795 = vmatprep.mubr.bf16.mxu0 0
      %1796 = vmatmul.mubr.bf16.gmra.mrb[0].mxu0 %v1655
      %v1797 = vpop.f32.mrb[0].mxu0
      %v1798 = vadd.f32 0.0, %v1797
      %v1799 = vpop.f32.mrb[0].mxu0
      %v1800 = vpop.f32.mrb[0].mxu0
      %v1801 = vadd.f32 0.0, %v1800
      %v1802 = vpop.f32.mrb[0].mxu0
      %1803 = vmatprep.mubr.bf16.mxu0 0
      %1804 = vmatmul.mubr.bf16.gmra.mrb[0].mxu0 %v1658
      %v1805 = vpop.f32.mrb[0].mxu0
      %v1806 = vadd.f32 0.0, %v1805
      %v1807 = vpop.f32.mrb[0].mxu0
      %v1808 = vpop.f32.mrb[0].mxu0
      %v1809 = vadd.f32 0.0, %v1808
      %v1810 = vpop.f32.mrb[0].mxu0
      %1811 = vmatprep.mubr.bf16.mxu0 0
      %1812 = vmatmul.mubr.bf16.gmra.mrb[0].mxu0 %v1661
      %v1813 = vpop.f32.mrb[0].mxu0
      %v1814 = vadd.f32 0.0, %v1813
      %v1815 = vpop.f32.mrb[0].mxu0
      %v1816 = vpop.f32.mrb[0].mxu0
      %v1817 = vadd.f32 0.0, %v1816
      %v1818 = vpop.f32.mrb[0].mxu0
      %1819 = vmatprep.mubr.bf16.mxu0 0
      %1820 = vmatmul.mubr.bf16.gmra.mrb[0].mxu0 %v1664
      %v1821 = vpop.f32.mrb[0].mxu0
      %v1822 = vadd.f32 0.0, %v1821
      %v1823 = vpop.f32.mrb[0].mxu0
      %v1824 = vpop.f32.mrb[0].mxu0
      %v1825 = vadd.f32 0.0, %v1824
      %v1826 = vpop.f32.mrb[0].mxu0
      %1827 = vmatprep.mubr.bf16.mxu0 0
      %1828 = vmatmul.mubr.bf16.gmra.mrb[0].mxu0 %v1667
      %v1829 = vpop.f32.mrb[0].mxu0
      %v1830 = vadd.f32 0.0, %v1829
      %v1831 = vpop.f32.mrb[0].mxu0
      %v1832 = vpop.f32.mrb[0].mxu0
      %v1833 = vadd.f32 0.0, %v1832
      %v1834 = vpop.f32.mrb[0].mxu0
      %1835 = vmatprep.mubr.bf16.mxu0 0
      %1836 = vmatmul.mubr.bf16.gmra.mrb[0].mxu0 %v1670
      %v1837 = vpop.f32.mrb[0].mxu0
      %v1838 = vadd.f32 0.0, %v1837
      %v1839 = vpop.f32.mrb[0].mxu0
      %v1840 = vpop.f32.mrb[0].mxu0
      %v1841 = vadd.f32 0.0, %v1840
      %v1842 = vpop.f32.mrb[0].mxu0
      %1843 = vmatprep.mubr.bf16.mxu0 0
      %1844 = vmatmul.mubr.bf16.gmra.mrb[0].mxu0 %v1673
      %v1845 = vpop.f32.mrb[0].mxu0
      %v1846 = vadd.f32 0.0, %v1845
      %v1847 = vpop.f32.mrb[0].mxu0
      %v1848 = vpop.f32.mrb[0].mxu0
      %v1849 = vadd.f32 0.0, %v1848
      %v1850 = vpop.f32.mrb[0].mxu0
      %1851 = vdwg.mxu0
      %v1852 = vadd.f32 %v1429, %v1710
      %v1853 = vadd.f32 %v1430, %v1713
      %v1854 = vadd.f32 %v1431, %v1718
      %v1855 = vadd.f32 %v1432, %v1721
      %v1856 = vadd.f32 %v1433, %v1726
      %v1857 = vadd.f32 %v1434, %v1729
      %v1858 = vadd.f32 %v1435, %v1734
      %v1859 = vadd.f32 %v1436, %v1737
      %v1860 = vadd.f32 %v1437, %v1742
      %v1861 = vadd.f32 %v1438, %v1745
      %v1862 = vadd.f32 %v1439, %v1750
      %v1863 = vadd.f32 %v1440, %v1753
      %v1864 = vadd.f32 %v1441, %v1758
      %v1865 = vadd.f32 %v1442, %v1761
      %v1866 = vadd.f32 %v1443, %v1766
      %v1867 = vadd.f32 %v1444, %v1769
      %v1868 = vadd.f32 %v1445, %v1774
      %v1869 = vadd.f32 %v1446, %v1777
      %v1870 = vadd.f32 %v1447, %v1782
      %v1871 = vadd.f32 %v1448, %v1785
      %v1872 = vadd.f32 %v1449, %v1790
      %v1873 = vadd.f32 %v1450, %v1793
      %v1874 = vadd.f32 %v1451, %v1798
      %v1875 = vadd.f32 %v1452, %v1801
      %v1876 = vadd.f32 %v1453, %v1806
      %v1877 = vadd.f32 %v1454, %v1809
      %v1878 = vadd.f32 %v1455, %v1814
      %v1879 = vadd.f32 %v1456, %v1817
      %v1880 = vadd.f32 %v1457, %v1822
      %v1881 = vadd.f32 %v1458, %v1825
      %v1882 = vadd.f32 %v1459, %v1830
      %v1883 = vadd.f32 %v1460, %v1833
      %v1884 = vadd.f32 %v1461, %v1838
      %v1885 = vadd.f32 %v1462, %v1841
      %v1886 = vadd.f32 %v1463, %v1846
      %v1887 = vadd.f32 %v1464, %v1849
      %1888 = vst [vmem:[#allocation2] sm:$0xff] %v1852
      %1889 = vst [vmem:[#allocation2 + $0x8] sm:$0xff] %v1853
      %1890 = vst [vmem:[#allocation2 + $0x10] sm:$0xff] %v1854
      %1891 = vst [vmem:[#allocation2 + $0x18] sm:$0xff] %v1855
      %1892 = vst [vmem:[#allocation2 + $0x20] sm:$0xff] %v1856
      %1893 = vst [vmem:[#allocation2 + $0x28] sm:$0xff] %v1857
      %1894 = vst [vmem:[#allocation2 + $0x30] sm:$0xff] %v1858
      %1895 = vst [vmem:[#allocation2 + $0x38] sm:$0xff] %v1859
      %1896 = vst [vmem:[#allocation2 + $0x40] sm:$0xff] %v1860
      %1897 = vst [vmem:[#allocation2 + $0x48] sm:$0xff] %v1861
      %1898 = vst [vmem:[#allocation2 + $0x50] sm:$0xff] %v1862
      %1899 = vst [vmem:[#allocation2 + $0x58] sm:$0xff] %v1863
      %1900 = vst [vmem:[#allocation2 + $0x60] sm:$0xff] %v1864
      %1901 = vst [vmem:[#allocation2 + $0x68] sm:$0xff] %v1865
      %1902 = vst [vmem:[#allocation2 + $0x70] sm:$0xff] %v1866
      %1903 = vst [vmem:[#allocation2 + $0x78] sm:$0xff] %v1867
      %1904 = vst [vmem:[#allocation2 + $0x80] sm:$0xff] %v1868
      %1905 = vst [vmem:[#allocation2 + $0x88] sm:$0xff] %v1869
      %1906 = vst [vmem:[#allocation2 + $0x90] sm:$0xff] %v1870
      %1907 = vst [vmem:[#allocation2 + $0x98] sm:$0xff] %v1871
      %1908 = vst [vmem:[#allocation2 + $0xa0] sm:$0xff] %v1872
      %1909 = vst [vmem:[#allocation2 + $0xa8] sm:$0xff] %v1873
      %1910 = vst [vmem:[#allocation2 + $0xb0] sm:$0xff] %v1874
      %1911 = vst [vmem:[#allocation2 + $0xb8] sm:$0xff] %v1875
      %1912 = vst [vmem:[#allocation2 + $0xc0] sm:$0xff] %v1876
      %1913 = vst [vmem:[#allocation2 + $0xc8] sm:$0xff] %v1877
      %1914 = vst [vmem:[#allocation2 + $0xd0] sm:$0xff] %v1878
      %1915 = vst [vmem:[#allocation2 + $0xd8] sm:$0xff] %v1879
      %1916 = vst [vmem:[#allocation2 + $0xe0] sm:$0xff] %v1880
      %1917 = vst [vmem:[#allocation2 + $0xe8] sm:$0xff] %v1881
      %1918 = vst [vmem:[#allocation2 + $0xf0] sm:$0xff] %v1882
      %1919 = vst [vmem:[#allocation2 + $0xf8] sm:$0xff] %v1883
      %1920 = vst [vmem:[#allocation2 + $0x100] sm:$0xff] %v1884
      %1921 = vst [vmem:[#allocation2 + $0x108] sm:$0xff] %v1885
      %1922 = vst [vmem:[#allocation2 + $0x110] sm:$0xff] %v1886
      %1923 = vst [vmem:[#allocation2 + $0x118] sm:$0xff] %v1887
      %v1924 = vld [vmem:[%s206 + $0x8] sm:$0xe]
      %v1925 = vld [vmem:[%s206 + $0xc] sm:$0xf]
      %v1926 = vld [vmem:[%s206 + $0x10] sm:$0xf]
      %v1927 = vld [vmem:[%s206 + $0x14] sm:$0xf]
      %v1928 = vld [vmem:[%s206 + $0x18] sm:$0xf]
      %v1929 = vld [vmem:[%s206 + $0x1c] sm:$0xf]
      %v1930 = vld [vmem:[%s206 + $0x20] sm:$0xf]
      %v1931 = vld [vmem:[%s206 + $0x24] sm:$0xf]
      %v1932 = vld [vmem:[%s206 + $0x28] sm:$0xf]
      %v1933 = vld [vmem:[%s206 + $0x2c] sm:$0xf]
      %v1934 = vld [vmem:[%s206 + $0x30] sm:$0xf]
      %v1935 = vld [vmem:[%s206 + $0x34] sm:$0xf]
      %v1936 = vld [vmem:[%s206 + $0x38] sm:$0xf]
      %v1937 = vld [vmem:[%s206 + $0x3c] sm:$0xf]
      %v1938 = vld [vmem:[%s206 + $0x40] sm:$0xf]
      %v1939 = vld [vmem:[%s206 + $0x44] sm:$0xf]
      %v1940 = vld [vmem:[%s206 + $0x48] sm:$0xf]
      %v1941 = vld [vmem:[%s206 + $0x4c] sm:$0xf]
      %v1942 = vld [vmem:[%s206 + $0x50] sm:$0xf]
      %v1943 = vld [vmem:[%s206 + $0x54] sm:$0xf]
      %v1944 = vld [vmem:[%s206 + $0x58] sm:$0xf]
      %v1945 = vld [vmem:[%s206 + $0x5c] sm:$0xf]
      %v1946 = vld [vmem:[%s206 + $0x60] sm:$0xf]
      %v1947 = vld [vmem:[%s206 + $0x64] sm:$0xf]
      %v1948 = vld [vmem:[%s206 + $0x68] sm:$0xf]
      %v1949 = vld [vmem:[%s206 + $0x6c] sm:$0xf]
      %v1950 = vld [vmem:[%s206 + $0x70] sm:$0xf]
      %v1951 = vld [vmem:[%s206 + $0x74] sm:$0xf]
      %v1952 = vld [vmem:[%s206 + $0x78] sm:$0xf]
      %v1953 = vld [vmem:[%s206 + $0x7c] sm:$0xf]
      %v1954 = vld [vmem:[%s206 + $0x80] sm:$0xf]
      %v1955 = vld [vmem:[%s206 + $0x84] sm:$0xf]
      %v1956 = vld [vmem:[%s206 + $0x88] sm:$0xf]
      %v1957 = vld [vmem:[%s206 + $0x8c] sm:$0xf]
      %v1958 = vld [vmem:[%s206 + $0x90] sm:$0xf]
      %v1959 = vld [vmem:[%s206 + $0x94] sm:$0xf]
      %v1960 = vld [vmem:[%s206 + $0x98] sm:$0x1]
      %v1961 = vld [vmem:[#allocation2] sm:$0xff]
      %v1962 = vld [vmem:[#allocation2 + $0x8] sm:$0xff]
      %v1963 = vld [vmem:[#allocation2 + $0x10] sm:$0xff]
      %v1964 = vld [vmem:[#allocation2 + $0x18] sm:$0xff]
      %v1965 = vld [vmem:[#allocation2 + $0x20] sm:$0xff]
      %v1966 = vld [vmem:[#allocation2 + $0x28] sm:$0xff]
      %v1967 = vld [vmem:[#allocation2 + $0x30] sm:$0xff]
      %v1968 = vld [vmem:[#allocation2 + $0x38] sm:$0xff]
      %v1969 = vld [vmem:[#allocation2 + $0x40] sm:$0xff]
      %v1970 = vld [vmem:[#allocation2 + $0x48] sm:$0xff]
      %v1971 = vld [vmem:[#allocation2 + $0x50] sm:$0xff]
      %v1972 = vld [vmem:[#allocation2 + $0x58] sm:$0xff]
      %v1973 = vld [vmem:[#allocation2 + $0x60] sm:$0xff]
      %v1974 = vld [vmem:[#allocation2 + $0x68] sm:$0xff]
      %v1975 = vld [vmem:[#allocation2 + $0x70] sm:$0xff]
      %v1976 = vld [vmem:[#allocation2 + $0x78] sm:$0xff]
      %v1977 = vld [vmem:[#allocation2 + $0x80] sm:$0xff]
      %v1978 = vld [vmem:[#allocation2 + $0x88] sm:$0xff]
      %v1979 = vld [vmem:[#allocation2 + $0x90] sm:$0xff]
      %v1980 = vld [vmem:[#allocation2 + $0x98] sm:$0xff]
      %v1981 = vld [vmem:[#allocation2 + $0xa0] sm:$0xff]
      %v1982 = vld [vmem:[#allocation2 + $0xa8] sm:$0xff]
      %v1983 = vld [vmem:[#allocation2 + $0xb0] sm:$0xff]
      %v1984 = vld [vmem:[#allocation2 + $0xb8] sm:$0xff]
      %v1985 = vld [vmem:[#allocation2 + $0xc0] sm:$0xff]
      %v1986 = vld [vmem:[#allocation2 + $0xc8] sm:$0xff]
      %v1987 = vld [vmem:[#allocation2 + $0xd0] sm:$0xff]
      %v1988 = vld [vmem:[#allocation2 + $0xd8] sm:$0xff]
      %v1989 = vld [vmem:[#allocation2 + $0xe0] sm:$0xff]
      %v1990 = vld [vmem:[#allocation2 + $0xe8] sm:$0xff]
      %v1991 = vld [vmem:[#allocation2 + $0xf0] sm:$0xff]
      %v1992 = vld [vmem:[#allocation2 + $0xf8] sm:$0xff]
      %v1993 = vld [vmem:[#allocation2 + $0x100] sm:$0xff]
      %v1994 = vld [vmem:[#allocation2 + $0x108] sm:$0xff]
      %v1995 = vld [vmem:[#allocation2 + $0x110] sm:$0xff]
      %v1996 = vld [vmem:[#allocation2 + $0x118] sm:$0xff]
      %s1997 = scalar_lea.vmem %s210, 72
      %v1998 = vld [vmem:[%s1997] sm:$0xf]
      %v1999 = vld [vmem:[%s1997 + $0x4] sm:$0xf]
      %v2000 = vld [vmem:[%s1997 + $0x8] sm:$0xf]
      %v2001 = vld [vmem:[%s1997 + $0xc] sm:$0xf]
      %v2002 = vld [vmem:[%s1997 + $0x10] sm:$0xf]
      %v2003 = vld [vmem:[%s1997 + $0x14] sm:$0xf]
      %v2041 = vunpack.c.l.b16 %v1924
      %v2042 = vunpack.c.l.b16 %v1925
      %v2043 = vunpack.c.l.b16 %v1926
      %v2044 = vunpack.c.l.b16 %v1927
      %v2045 = vunpack.c.l.b16 %v1928
      %v2046 = vunpack.c.l.b16 %v1929
      %v2047 = vunpack.c.l.b16 %v1930
      %v2048 = vunpack.c.l.b16 %v1931
      %v2049 = vunpack.c.l.b16 %v1932
      %v2050 = vunpack.c.l.b16 %v1933
      %v2051 = vunpack.c.l.b16 %v1934
      %v2052 = vunpack.c.l.b16 %v1935
      %v2053 = vunpack.c.l.b16 %v1936
      %v2054 = vunpack.c.l.b16 %v1937
      %v2055 = vunpack.c.l.b16 %v1938
      %v2056 = vunpack.c.l.b16 %v1939
      %v2057 = vunpack.c.l.b16 %v1940
      %v2058 = vunpack.c.l.b16 %v1941
      %v2059 = vunpack.c.l.b16 %v1942
      %v2060 = vunpack.c.l.b16 %v1943
      %v2061 = vunpack.c.l.b16 %v1944
      %v2062 = vunpack.c.l.b16 %v1945
      %v2063 = vunpack.c.l.b16 %v1946
      %v2064 = vunpack.c.l.b16 %v1947
      %v2065 = vunpack.c.l.b16 %v1948
      %v2066 = vunpack.c.l.b16 %v1949
      %v2067 = vunpack.c.l.b16 %v1950
      %v2068 = vunpack.c.l.b16 %v1951
      %v2069 = vunpack.c.l.b16 %v1952
      %v2070 = vunpack.c.l.b16 %v1953
      %v2071 = vunpack.c.l.b16 %v1954
      %v2072 = vunpack.c.l.b16 %v1955
      %v2073 = vunpack.c.l.b16 %v1956
      %v2074 = vunpack.c.l.b16 %v1957
      %v2075 = vunpack.c.l.b16 %v1958
      %v2076 = vunpack.c.l.b16 %v1959
      %v2077 = vunpack.c.l.b16 %v1960
      %v2078 = vpack.c.b16 %v2042, %v2041
      %v2079 = vpack.c.b16 %v2044, %v2043
      %v2080 = vpack.c.b16 %v2046, %v2045
      %v2081 = vpack.c.b16 %v2048, %v2047
      %v2082 = vpack.c.b16 %v2050, %v2049
      %v2083 = vpack.c.b16 %v2052, %v2051
      %v2084 = vpack.c.b16 %v2054, %v2053
      %v2085 = vpack.c.b16 %v2056, %v2055
      %v2086 = vpack.c.b16 %v2058, %v2057
      %v2087 = vpack.c.b16 %v2060, %v2059
      %v2088 = vpack.c.b16 %v2062, %v2061
      %v2089 = vpack.c.b16 %v2064, %v2063
      %v2090 = vpack.c.b16 %v2066, %v2065
      %v2091 = vpack.c.b16 %v2068, %v2067
      %v2092 = vpack.c.b16 %v2070, %v2069
      %v2093 = vpack.c.b16 %v2072, %v2071
      %v2094 = vpack.c.b16 %v2074, %v2073
      %v2095 = vpack.c.b16 %v2076, %v2075
      %v2096 = vpack.c.b16 %v2077, %v2077
      %v2097 = vrot.slane %v2078, 1
      %v2098 = vrot.slane %v2079, 1
      %v2099 = vsel %vm1565, %v2097, %v2098
      %v2100 = vrot.slane %v2080, 1
      %v2101 = vsel %vm1565, %v2098, %v2100
      %v2102 = vrot.slane %v2081, 1
      %v2103 = vsel %vm1565, %v2100, %v2102
      %v2104 = vrot.slane %v2082, 1
      %v2105 = vsel %vm1565, %v2102, %v2104
      %v2106 = vrot.slane %v2083, 1
      %v2107 = vsel %vm1565, %v2104, %v2106
      %v2108 = vrot.slane %v2084, 1
      %v2109 = vsel %vm1565, %v2106, %v2108
      %v2110 = vrot.slane %v2085, 1
      %v2111 = vsel %vm1565, %v2108, %v2110
      %v2112 = vrot.slane %v2086, 1
      %v2113 = vsel %vm1565, %v2110, %v2112
      %v2114 = vrot.slane %v2087, 1
      %v2115 = vsel %vm1565, %v2112, %v2114
      %v2116 = vrot.slane %v2088, 1
      %v2117 = vsel %vm1565, %v2114, %v2116
      %v2118 = vrot.slane %v2089, 1
      %v2119 = vsel %vm1565, %v2116, %v2118
      %v2120 = vrot.slane %v2090, 1
      %v2121 = vsel %vm1565, %v2118, %v2120
      %v2122 = vrot.slane %v2091, 1
      %v2123 = vsel %vm1565, %v2120, %v2122
      %v2124 = vrot.slane %v2092, 1
      %v2125 = vsel %vm1565, %v2122, %v2124
      %v2126 = vrot.slane %v2093, 1
      %v2127 = vsel %vm1565, %v2124, %v2126
      %v2128 = vrot.slane %v2094, 1
      %v2129 = vsel %vm1565, %v2126, %v2128
      %v2130 = vrot.slane %v2095, 1
      %v2131 = vsel %vm1565, %v2128, %v2130
      %v2132 = vrot.slane %v2096, 1
      %v2133 = vsel %vm1565, %v2130, %v2132
      %v2140 = vunpack.c.l.b16 %v1998
      %v2141 = vunpack.c.l.b16 %v1999
      %v2142 = vunpack.c.l.b16 %v2000
      %v2143 = vunpack.c.l.b16 %v2001
      %v2144 = vunpack.c.l.b16 %v2002
      %v2145 = vunpack.c.l.b16 %v2003
      %v2146 = vpack.c.b16 %v2141, %v2140
      %v2147 = vpack.c.b16 %v2143, %v2142
      %v2148 = vpack.c.b16 %v2145, %v2144
      %v2153 = vsel %vm445, %v2099, 0
      %v2156 = vsel %vm445, %v2101, 0
      %v2159 = vsel %vm445, %v2103, 0
      %v2162 = vsel %vm445, %v2105, 0
      %v2165 = vsel %vm445, %v2107, 0
      %v2168 = vsel %vm445, %v2109, 0
      %v2171 = vsel %vm445, %v2111, 0
      %v2174 = vsel %vm445, %v2113, 0
      %v2177 = vsel %vm445, %v2115, 0
      %v2180 = vsel %vm445, %v2117, 0
      %v2183 = vsel %vm445, %v2119, 0
      %v2186 = vsel %vm445, %v2121, 0
      %v2189 = vsel %vm445, %v2123, 0
      %v2192 = vsel %vm445, %v2125, 0
      %v2195 = vsel %vm445, %v2127, 0
      %v2198 = vsel %vm445, %v2129, 0
      %v2201 = vsel %vm445, %v2131, 0
      %v2204 = vsel %vm445, %v2133, 0
      %2206 = vmatprep.subr.bf16.mxu0 0
      %2207 = vmatpush1.bf16.msra.mxu0 %v2146
      %2208 = vmatprep.subr.bf16.mxu0 0
      %2209 = vmatpush1.bf16.msra.mxu0 %v2147
      %2210 = vmatprep.subr.bf16.mxu0 0
      %2211 = vmatpush1.bf16.msra.mxu0 %v2148
      %2212 = vmatprep.subr.bf16.mxu0 0
      %2213 = vmatpush1.bf16.msra.mxu0 0
      %2214 = vmatprep.subr.bf16.mxu0 0
      %2215 = vmatpush1.bf16.msra.mxu0 0
      %2216 = vmatprep.subr.bf16.mxu0 0
      %2217 = vmatpush1.bf16.msra.mxu0 0
      %2218 = vmatprep.subr.bf16.mxu0 0
      %2219 = vmatpush1.bf16.msra.mxu0 0
      %2220 = vmatprep.subr.bf16.mxu0 0
      %2221 = vmatpush1.bf16.msra.mxu0 0
      %2222 = vmatprep.subr.bf16.mxu0 0
      %2223 = vmatpush1.bf16.msra.mxu0 0
      %2224 = vmatprep.subr.bf16.mxu0 0
      %2225 = vmatpush1.bf16.msra.mxu0 0
      %2226 = vmatprep.subr.bf16.mxu0 0
      %2227 = vmatpush1.bf16.msra.mxu0 0
      %2228 = vmatprep.subr.bf16.mxu0 0
      %2229 = vmatpush1.bf16.msra.mxu0 0
      %2230 = vmatprep.subr.bf16.mxu0 0
      %2231 = vmatpush1.bf16.msra.mxu0 0
      %2232 = vmatprep.subr.bf16.mxu0 0
      %2233 = vmatpush1.bf16.msra.mxu0 0
      %2234 = vmatprep.subr.bf16.mxu0 0
      %2235 = vmatpush1.bf16.msra.mxu0 0
      %2236 = vmatprep.subr.bf16.mxu0 0
      %2237 = vmatpush1.bf16.msra.mxu0 0
      %2238 = vmatprep.mubr.bf16.mxu0 0
      %2239 = vmatmul.mubr.bf16.gmra.mrb[0].mxu0 %v2153
      %v2240 = vpop.f32.mrb[0].mxu0
      %v2241 = vadd.f32 0.0, %v2240
      %v2242 = vpop.f32.mrb[0].mxu0
      %v2243 = vpop.f32.mrb[0].mxu0
      %v2244 = vadd.f32 0.0, %v2243
      %v2245 = vpop.f32.mrb[0].mxu0
      %2246 = vmatprep.mubr.bf16.mxu0 0
      %2247 = vmatmul.mubr.bf16.gmra.mrb[0].mxu0 %v2156
      %v2248 = vpop.f32.mrb[0].mxu0
      %v2249 = vadd.f32 0.0, %v2248
      %v2250 = vpop.f32.mrb[0].mxu0
      %v2251 = vpop.f32.mrb[0].mxu0
      %v2252 = vadd.f32 0.0, %v2251
      %v2253 = vpop.f32.mrb[0].mxu0
      %2254 = vmatprep.mubr.bf16.mxu0 0
      %2255 = vmatmul.mubr.bf16.gmra.mrb[0].mxu0 %v2159
      %v2256 = vpop.f32.mrb[0].mxu0
      %v2257 = vadd.f32 0.0, %v2256
      %v2258 = vpop.f32.mrb[0].mxu0
      %v2259 = vpop.f32.mrb[0].mxu0
      %v2260 = vadd.f32 0.0, %v2259
      %v2261 = vpop.f32.mrb[0].mxu0
      %2262 = vmatprep.mubr.bf16.mxu0 0
      %2263 = vmatmul.mubr.bf16.gmra.mrb[0].mxu0 %v2162
      %v2264 = vpop.f32.mrb[0].mxu0
      %v2265 = vadd.f32 0.0, %v2264
      %v2266 = vpop.f32.mrb[0].mxu0
      %v2267 = vpop.f32.mrb[0].mxu0
      %v2268 = vadd.f32 0.0, %v2267
      %v2269 = vpop.f32.mrb[0].mxu0
      %2270 = vmatprep.mubr.bf16.mxu0 0
      %2271 = vmatmul.mubr.bf16.gmra.mrb[0].mxu0 %v2165
      %v2272 = vpop.f32.mrb[0].mxu0
      %v2273 = vadd.f32 0.0, %v2272
      %v2274 = vpop.f32.mrb[0].mxu0
      %v2275 = vpop.f32.mrb[0].mxu0
      %v2276 = vadd.f32 0.0, %v2275
      %v2277 = vpop.f32.mrb[0].mxu0
      %2278 = vmatprep.mubr.bf16.mxu0 0
      %2279 = vmatmul.mubr.bf16.gmra.mrb[0].mxu0 %v2168
      %v2280 = vpop.f32.mrb[0].mxu0
      %v2281 = vadd.f32 0.0, %v2280
      %v2282 = vpop.f32.mrb[0].mxu0
      %v2283 = vpop.f32.mrb[0].mxu0
      %v2284 = vadd.f32 0.0, %v2283
      %v2285 = vpop.f32.mrb[0].mxu0
      %2286 = vmatprep.mubr.bf16.mxu0 0
      %2287 = vmatmul.mubr.bf16.gmra.mrb[0].mxu0 %v2171
      %v2288 = vpop.f32.mrb[0].mxu0
      %v2289 = vadd.f32 0.0, %v2288
      %v2290 = vpop.f32.mrb[0].mxu0
      %v2291 = vpop.f32.mrb[0].mxu0
      %v2292 = vadd.f32 0.0, %v2291
      %v2293 = vpop.f32.mrb[0].mxu0
      %2294 = vmatprep.mubr.bf16.mxu0 0
      %2295 = vmatmul.mubr.bf16.gmra.mrb[0].mxu0 %v2174
      %v2296 = vpop.f32.mrb[0].mxu0
      %v2297 = vadd.f32 0.0, %v2296
      %v2298 = vpop.f32.mrb[0].mxu0
      %v2299 = vpop.f32.mrb[0].mxu0
      %v2300 = vadd.f32 0.0, %v2299
      %v2301 = vpop.f32.mrb[0].mxu0
      %2302 = vmatprep.mubr.bf16.mxu0 0
      %2303 = vmatmul.mubr.bf16.gmra.mrb[0].mxu0 %v2177
      %v2304 = vpop.f32.mrb[0].mxu0
      %v2305 = vadd.f32 0.0, %v2304
      %v2306 = vpop.f32.mrb[0].mxu0
      %v2307 = vpop.f32.mrb[0].mxu0
      %v2308 = vadd.f32 0.0, %v2307
      %v2309 = vpop.f32.mrb[0].mxu0
      %2310 = vmatprep.mubr.bf16.mxu0 0
      %2311 = vmatmul.mubr.bf16.gmra.mrb[0].mxu0 %v2180
      %v2312 = vpop.f32.mrb[0].mxu0
      %v2313 = vadd.f32 0.0, %v2312
      %v2314 = vpop.f32.mrb[0].mxu0
      %v2315 = vpop.f32.mrb[0].mxu0
      %v2316 = vadd.f32 0.0, %v2315
      %v2317 = vpop.f32.mrb[0].mxu0
      %2318 = vmatprep.mubr.bf16.mxu0 0
      %2319 = vmatmul.mubr.bf16.gmra.mrb[0].mxu0 %v2183
      %v2320 = vpop.f32.mrb[0].mxu0
      %v2321 = vadd.f32 0.0, %v2320
      %v2322 = vpop.f32.mrb[0].mxu0
      %v2323 = vpop.f32.mrb[0].mxu0
      %v2324 = vadd.f32 0.0, %v2323
      %v2325 = vpop.f32.mrb[0].mxu0
      %2326 = vmatprep.mubr.bf16.mxu0 0
      %2327 = vmatmul.mubr.bf16.gmra.mrb[0].mxu0 %v2186
      %v2328 = vpop.f32.mrb[0].mxu0
      %v2329 = vadd.f32 0.0, %v2328
      %v2330 = vpop.f32.mrb[0].mxu0
      %v2331 = vpop.f32.mrb[0].mxu0
      %v2332 = vadd.f32 0.0, %v2331
      %v2333 = vpop.f32.mrb[0].mxu0
      %2334 = vmatprep.mubr.bf16.mxu0 0
      %2335 = vmatmul.mubr.bf16.gmra.mrb[0].mxu0 %v2189
      %v2336 = vpop.f32.mrb[0].mxu0
      %v2337 = vadd.f32 0.0, %v2336
      %v2338 = vpop.f32.mrb[0].mxu0
      %v2339 = vpop.f32.mrb[0].mxu0
      %v2340 = vadd.f32 0.0, %v2339
      %v2341 = vpop.f32.mrb[0].mxu0
      %2342 = vmatprep.mubr.bf16.mxu0 0
      %2343 = vmatmul.mubr.bf16.gmra.mrb[0].mxu0 %v2192
      %v2344 = vpop.f32.mrb[0].mxu0
      %v2345 = vadd.f32 0.0, %v2344
      %v2346 = vpop.f32.mrb[0].mxu0
      %v2347 = vpop.f32.mrb[0].mxu0
      %v2348 = vadd.f32 0.0, %v2347
      %v2349 = vpop.f32.mrb[0].mxu0
      %2350 = vmatprep.mubr.bf16.mxu0 0
      %2351 = vmatmul.mubr.bf16.gmra.mrb[0].mxu0 %v2195
      %v2352 = vpop.f32.mrb[0].mxu0
      %v2353 = vadd.f32 0.0, %v2352
      %v2354 = vpop.f32.mrb[0].mxu0
      %v2355 = vpop.f32.mrb[0].mxu0
      %v2356 = vadd.f32 0.0, %v2355
      %v2357 = vpop.f32.mrb[0].mxu0
      %2358 = vmatprep.mubr.bf16.mxu0 0
      %2359 = vmatmul.mubr.bf16.gmra.mrb[0].mxu0 %v2198
      %v2360 = vpop.f32.mrb[0].mxu0
      %v2361 = vadd.f32 0.0, %v2360
      %v2362 = vpop.f32.mrb[0].mxu0
      %v2363 = vpop.f32.mrb[0].mxu0
      %v2364 = vadd.f32 0.0, %v2363
      %v2365 = vpop.f32.mrb[0].mxu0
      %2366 = vmatprep.mubr.bf16.mxu0 0
      %2367 = vmatmul.mubr.bf16.gmra.mrb[0].mxu0 %v2201
      %v2368 = vpop.f32.mrb[0].mxu0
      %v2369 = vadd.f32 0.0, %v2368
      %v2370 = vpop.f32.mrb[0].mxu0
      %v2371 = vpop.f32.mrb[0].mxu0
      %v2372 = vadd.f32 0.0, %v2371
      %v2373 = vpop.f32.mrb[0].mxu0
      %2374 = vmatprep.mubr.bf16.mxu0 0
      %2375 = vmatmul.mubr.bf16.gmra.mrb[0].mxu0 %v2204
      %v2376 = vpop.f32.mrb[0].mxu0
      %v2377 = vadd.f32 0.0, %v2376
      %v2378 = vpop.f32.mrb[0].mxu0
      %v2379 = vpop.f32.mrb[0].mxu0
      %v2380 = vadd.f32 0.0, %v2379
      %v2381 = vpop.f32.mrb[0].mxu0
      %2382 = vdwg.mxu0
      %v2383 = vadd.f32 %v1961, %v2241
      %v2384 = vadd.f32 %v1962, %v2244
      %v2385 = vadd.f32 %v1963, %v2249
      %v2386 = vadd.f32 %v1964, %v2252
      %v2387 = vadd.f32 %v1965, %v2257
      %v2388 = vadd.f32 %v1966, %v2260
      %v2389 = vadd.f32 %v1967, %v2265
      %v2390 = vadd.f32 %v1968, %v2268
      %v2391 = vadd.f32 %v1969, %v2273
      %v2392 = vadd.f32 %v1970, %v2276
      %v2393 = vadd.f32 %v1971, %v2281
      %v2394 = vadd.f32 %v1972, %v2284
      %v2395 = vadd.f32 %v1973, %v2289
      %v2396 = vadd.f32 %v1974, %v2292
      %v2397 = vadd.f32 %v1975, %v2297
      %v2398 = vadd.f32 %v1976, %v2300
      %v2399 = vadd.f32 %v1977, %v2305
      %v2400 = vadd.f32 %v1978, %v2308
      %v2401 = vadd.f32 %v1979, %v2313
      %v2402 = vadd.f32 %v1980, %v2316
      %v2403 = vadd.f32 %v1981, %v2321
      %v2404 = vadd.f32 %v1982, %v2324
      %v2405 = vadd.f32 %v1983, %v2329
      %v2406 = vadd.f32 %v1984, %v2332
      %v2407 = vadd.f32 %v1985, %v2337
      %v2408 = vadd.f32 %v1986, %v2340
      %v2409 = vadd.f32 %v1987, %v2345
      %v2410 = vadd.f32 %v1988, %v2348
      %v2411 = vadd.f32 %v1989, %v2353
      %v2412 = vadd.f32 %v1990, %v2356
      %v2413 = vadd.f32 %v1991, %v2361
      %v2414 = vadd.f32 %v1992, %v2364
      %v2415 = vadd.f32 %v1993, %v2369
      %v2416 = vadd.f32 %v1994, %v2372
      %v2417 = vadd.f32 %v1995, %v2377
      %v2418 = vadd.f32 %v1996, %v2380
      %2419 = vst [vmem:[#allocation2] sm:$0xff] %v2383
      %2420 = vst [vmem:[#allocation2 + $0x8] sm:$0xff] %v2384
      %2421 = vst [vmem:[#allocation2 + $0x10] sm:$0xff] %v2385
      %2422 = vst [vmem:[#allocation2 + $0x18] sm:$0xff] %v2386
      %2423 = vst [vmem:[#allocation2 + $0x20] sm:$0xff] %v2387
      %2424 = vst [vmem:[#allocation2 + $0x28] sm:$0xff] %v2388
      %2425 = vst [vmem:[#allocation2 + $0x30] sm:$0xff] %v2389
      %2426 = vst [vmem:[#allocation2 + $0x38] sm:$0xff] %v2390
      %2427 = vst [vmem:[#allocation2 + $0x40] sm:$0xff] %v2391
      %2428 = vst [vmem:[#allocation2 + $0x48] sm:$0xff] %v2392
      %2429 = vst [vmem:[#allocation2 + $0x50] sm:$0xff] %v2393
      %2430 = vst [vmem:[#allocation2 + $0x58] sm:$0xff] %v2394
      %2431 = vst [vmem:[#allocation2 + $0x60] sm:$0xff] %v2395
      %2432 = vst [vmem:[#allocation2 + $0x68] sm:$0xff] %v2396
      %2433 = vst [vmem:[#allocation2 + $0x70] sm:$0xff] %v2397
      %2434 = vst [vmem:[#allocation2 + $0x78] sm:$0xff] %v2398
      %2435 = vst [vmem:[#allocation2 + $0x80] sm:$0xff] %v2399
      %2436 = vst [vmem:[#allocation2 + $0x88] sm:$0xff] %v2400
      %2437 = vst [vmem:[#allocation2 + $0x90] sm:$0xff] %v2401
      %2438 = vst [vmem:[#allocation2 + $0x98] sm:$0xff] %v2402
      %2439 = vst [vmem:[#allocation2 + $0xa0] sm:$0xff] %v2403
      %2440 = vst [vmem:[#allocation2 + $0xa8] sm:$0xff] %v2404
      %2441 = vst [vmem:[#allocation2 + $0xb0] sm:$0xff] %v2405
      %2442 = vst [vmem:[#allocation2 + $0xb8] sm:$0xff] %v2406
      %2443 = vst [vmem:[#allocation2 + $0xc0] sm:$0xff] %v2407
      %2444 = vst [vmem:[#allocation2 + $0xc8] sm:$0xff] %v2408
      %2445 = vst [vmem:[#allocation2 + $0xd0] sm:$0xff] %v2409
      %2446 = vst [vmem:[#allocation2 + $0xd8] sm:$0xff] %v2410
      %2447 = vst [vmem:[#allocation2 + $0xe0] sm:$0xff] %v2411
      %2448 = vst [vmem:[#allocation2 + $0xe8] sm:$0xff] %v2412
      %2449 = vst [vmem:[#allocation2 + $0xf0] sm:$0xff] %v2413
      %2450 = vst [vmem:[#allocation2 + $0xf8] sm:$0xff] %v2414
      %2451 = vst [vmem:[#allocation2 + $0x100] sm:$0xff] %v2415
      %2452 = vst [vmem:[#allocation2 + $0x108] sm:$0xff] %v2416
      %2453 = vst [vmem:[#allocation2 + $0x110] sm:$0xff] %v2417
      %2454 = vst [vmem:[#allocation2 + $0x118] sm:$0xff] %v2418
      %v2455 = vld [vmem:[%s206 + $0x8] sm:$0xe]
      %v2456 = vld [vmem:[%s206 + $0xc] sm:$0xf]
      %v2457 = vld [vmem:[%s206 + $0x10] sm:$0xf]
      %v2458 = vld [vmem:[%s206 + $0x14] sm:$0xf]
      %v2459 = vld [vmem:[%s206 + $0x18] sm:$0xf]
      %v2460 = vld [vmem:[%s206 + $0x1c] sm:$0xf]
      %v2461 = vld [vmem:[%s206 + $0x20] sm:$0xf]
      %v2462 = vld [vmem:[%s206 + $0x24] sm:$0xf]
      %v2463 = vld [vmem:[%s206 + $0x28] sm:$0xf]
      %v2464 = vld [vmem:[%s206 + $0x2c] sm:$0xf]
      %v2465 = vld [vmem:[%s206 + $0x30] sm:$0xf]
      %v2466 = vld [vmem:[%s206 + $0x34] sm:$0xf]
      %v2467 = vld [vmem:[%s206 + $0x38] sm:$0xf]
      %v2468 = vld [vmem:[%s206 + $0x3c] sm:$0xf]
      %v2469 = vld [vmem:[%s206 + $0x40] sm:$0xf]
      %v2470 = vld [vmem:[%s206 + $0x44] sm:$0xf]
      %v2471 = vld [vmem:[%s206 + $0x48] sm:$0xf]
      %v2472 = vld [vmem:[%s206 + $0x4c] sm:$0xf]
      %v2473 = vld [vmem:[%s206 + $0x50] sm:$0xf]
      %v2474 = vld [vmem:[%s206 + $0x54] sm:$0xf]
      %v2475 = vld [vmem:[%s206 + $0x58] sm:$0xf]
      %v2476 = vld [vmem:[%s206 + $0x5c] sm:$0xf]
      %v2477 = vld [vmem:[%s206 + $0x60] sm:$0xf]
      %v2478 = vld [vmem:[%s206 + $0x64] sm:$0xf]
      %v2479 = vld [vmem:[%s206 + $0x68] sm:$0xf]
      %v2480 = vld [vmem:[%s206 + $0x6c] sm:$0xf]
      %v2481 = vld [vmem:[%s206 + $0x70] sm:$0xf]
      %v2482 = vld [vmem:[%s206 + $0x74] sm:$0xf]
      %v2483 = vld [vmem:[%s206 + $0x78] sm:$0xf]
      %v2484 = vld [vmem:[%s206 + $0x7c] sm:$0xf]
      %v2485 = vld [vmem:[%s206 + $0x80] sm:$0xf]
      %v2486 = vld [vmem:[%s206 + $0x84] sm:$0xf]
      %v2487 = vld [vmem:[%s206 + $0x88] sm:$0xf]
      %v2488 = vld [vmem:[%s206 + $0x8c] sm:$0xf]
      %v2489 = vld [vmem:[%s206 + $0x90] sm:$0xf]
      %v2490 = vld [vmem:[%s206 + $0x94] sm:$0xf]
      %v2491 = vld [vmem:[%s206 + $0x98] sm:$0x3]
      %v2492 = vld [vmem:[#allocation2] sm:$0xff]
      %v2493 = vld [vmem:[#allocation2 + $0x8] sm:$0xff]
      %v2494 = vld [vmem:[#allocation2 + $0x10] sm:$0xff]
      %v2495 = vld [vmem:[#allocation2 + $0x18] sm:$0xff]
      %v2496 = vld [vmem:[#allocation2 + $0x20] sm:$0xff]
      %v2497 = vld [vmem:[#allocation2 + $0x28] sm:$0xff]
      %v2498 = vld [vmem:[#allocation2 + $0x30] sm:$0xff]
      %v2499 = vld [vmem:[#allocation2 + $0x38] sm:$0xff]
      %v2500 = vld [vmem:[#allocation2 + $0x40] sm:$0xff]
      %v2501 = vld [vmem:[#allocation2 + $0x48] sm:$0xff]
      %v2502 = vld [vmem:[#allocation2 + $0x50] sm:$0xff]
      %v2503 = vld [vmem:[#allocation2 + $0x58] sm:$0xff]
      %v2504 = vld [vmem:[#allocation2 + $0x60] sm:$0xff]
      %v2505 = vld [vmem:[#allocation2 + $0x68] sm:$0xff]
      %v2506 = vld [vmem:[#allocation2 + $0x70] sm:$0xff]
      %v2507 = vld [vmem:[#allocation2 + $0x78] sm:$0xff]
      %v2508 = vld [vmem:[#allocation2 + $0x80] sm:$0xff]
      %v2509 = vld [vmem:[#allocation2 + $0x88] sm:$0xff]
      %v2510 = vld [vmem:[#allocation2 + $0x90] sm:$0xff]
      %v2511 = vld [vmem:[#allocation2 + $0x98] sm:$0xff]
      %v2512 = vld [vmem:[#allocation2 + $0xa0] sm:$0xff]
      %v2513 = vld [vmem:[#allocation2 + $0xa8] sm:$0xff]
      %v2514 = vld [vmem:[#allocation2 + $0xb0] sm:$0xff]
      %v2515 = vld [vmem:[#allocation2 + $0xb8] sm:$0xff]
      %v2516 = vld [vmem:[#allocation2 + $0xc0] sm:$0xff]
      %v2517 = vld [vmem:[#allocation2 + $0xc8] sm:$0xff]
      %v2518 = vld [vmem:[#allocation2 + $0xd0] sm:$0xff]
      %v2519 = vld [vmem:[#allocation2 + $0xd8] sm:$0xff]
      %v2520 = vld [vmem:[#allocation2 + $0xe0] sm:$0xff]
      %v2521 = vld [vmem:[#allocation2 + $0xe8] sm:$0xff]
      %v2522 = vld [vmem:[#allocation2 + $0xf0] sm:$0xff]
      %v2523 = vld [vmem:[#allocation2 + $0xf8] sm:$0xff]
      %v2524 = vld [vmem:[#allocation2 + $0x100] sm:$0xff]
      %v2525 = vld [vmem:[#allocation2 + $0x108] sm:$0xff]
      %v2526 = vld [vmem:[#allocation2 + $0x110] sm:$0xff]
      %v2527 = vld [vmem:[#allocation2 + $0x118] sm:$0xff]
      %s2528 = scalar_lea.vmem %s210, 96
      %v2529 = vld [vmem:[%s2528] sm:$0xf]
      %v2530 = vld [vmem:[%s2528 + $0x4] sm:$0xf]
      %v2531 = vld [vmem:[%s2528 + $0x8] sm:$0xf]
      %v2532 = vld [vmem:[%s2528 + $0xc] sm:$0xf]
      %v2533 = vld [vmem:[%s2528 + $0x10] sm:$0xf]
      %v2534 = vld [vmem:[%s2528 + $0x14] sm:$0xf]
      %v2572 = vunpack.c.l.b16 %v2455
      %v2573 = vunpack.c.l.b16 %v2456
      %v2574 = vunpack.c.l.b16 %v2457
      %v2575 = vunpack.c.l.b16 %v2458
      %v2576 = vunpack.c.l.b16 %v2459
      %v2577 = vunpack.c.l.b16 %v2460
      %v2578 = vunpack.c.l.b16 %v2461
      %v2579 = vunpack.c.l.b16 %v2462
      %v2580 = vunpack.c.l.b16 %v2463
      %v2581 = vunpack.c.l.b16 %v2464
      %v2582 = vunpack.c.l.b16 %v2465
      %v2583 = vunpack.c.l.b16 %v2466
      %v2584 = vunpack.c.l.b16 %v2467
      %v2585 = vunpack.c.l.b16 %v2468
      %v2586 = vunpack.c.l.b16 %v2469
      %v2587 = vunpack.c.l.b16 %v2470
      %v2588 = vunpack.c.l.b16 %v2471
      %v2589 = vunpack.c.l.b16 %v2472
      %v2590 = vunpack.c.l.b16 %v2473
      %v2591 = vunpack.c.l.b16 %v2474
      %v2592 = vunpack.c.l.b16 %v2475
      %v2593 = vunpack.c.l.b16 %v2476
      %v2594 = vunpack.c.l.b16 %v2477
      %v2595 = vunpack.c.l.b16 %v2478
      %v2596 = vunpack.c.l.b16 %v2479
      %v2597 = vunpack.c.l.b16 %v2480
      %v2598 = vunpack.c.l.b16 %v2481
      %v2599 = vunpack.c.l.b16 %v2482
      %v2600 = vunpack.c.l.b16 %v2483
      %v2601 = vunpack.c.l.b16 %v2484
      %v2602 = vunpack.c.l.b16 %v2485
      %v2603 = vunpack.c.l.b16 %v2486
      %v2604 = vunpack.c.l.b16 %v2487
      %v2605 = vunpack.c.l.b16 %v2488
      %v2606 = vunpack.c.l.b16 %v2489
      %v2607 = vunpack.c.l.b16 %v2490
      %v2608 = vunpack.c.l.b16 %v2491
      %v2609 = vpack.c.b16 %v2573, %v2572
      %v2610 = vpack.c.b16 %v2575, %v2574
      %v2611 = vpack.c.b16 %v2577, %v2576
      %v2612 = vpack.c.b16 %v2579, %v2578
      %v2613 = vpack.c.b16 %v2581, %v2580
      %v2614 = vpack.c.b16 %v2583, %v2582
      %v2615 = vpack.c.b16 %v2585, %v2584
      %v2616 = vpack.c.b16 %v2587, %v2586
      %v2617 = vpack.c.b16 %v2589, %v2588
      %v2618 = vpack.c.b16 %v2591, %v2590
      %v2619 = vpack.c.b16 %v2593, %v2592
      %v2620 = vpack.c.b16 %v2595, %v2594
      %v2621 = vpack.c.b16 %v2597, %v2596
      %v2622 = vpack.c.b16 %v2599, %v2598
      %v2623 = vpack.c.b16 %v2601, %v2600
      %v2624 = vpack.c.b16 %v2603, %v2602
      %v2625 = vpack.c.b16 %v2605, %v2604
      %v2626 = vpack.c.b16 %v2607, %v2606
      %v2627 = vpack.c.b16 %v2608, %v2608
      %vm2628 = vsmask.f32 6400
      %v2630 = vshrl.u32 %v2609, 16
      %v2632 = vrot.slane %v2630, 1
      %v2633 = vshll.u32 %v2609, 16
      %v2635 = vrot.slane %v2633, 2
      %v2636 = vor.u32 %v2632, %v2635
      %v2638 = vshrl.u32 %v2610, 16
      %v2640 = vrot.slane %v2638, 1
      %v2641 = vshll.u32 %v2610, 16
      %v2643 = vrot.slane %v2641, 2
      %v2644 = vor.u32 %v2640, %v2643
      %v2645 = vsel %vm2628, %v2636, %v2644
      %v2647 = vshrl.u32 %v2611, 16
      %v2649 = vrot.slane %v2647, 1
      %v2650 = vshll.u32 %v2611, 16
      %v2652 = vrot.slane %v2650, 2
      %v2653 = vor.u32 %v2649, %v2652
      %v2654 = vsel %vm2628, %v2644, %v2653
      %v2656 = vshrl.u32 %v2612, 16
      %v2658 = vrot.slane %v2656, 1
      %v2659 = vshll.u32 %v2612, 16
      %v2661 = vrot.slane %v2659, 2
      %v2662 = vor.u32 %v2658, %v2661
      %v2663 = vsel %vm2628, %v2653, %v2662
      %v2665 = vshrl.u32 %v2613, 16
      %v2667 = vrot.slane %v2665, 1
      %v2668 = vshll.u32 %v2613, 16
      %v2670 = vrot.slane %v2668, 2
      %v2671 = vor.u32 %v2667, %v2670
      %v2672 = vsel %vm2628, %v2662, %v2671
      %v2674 = vshrl.u32 %v2614, 16
      %v2676 = vrot.slane %v2674, 1
      %v2677 = vshll.u32 %v2614, 16
      %v2679 = vrot.slane %v2677, 2
      %v2680 = vor.u32 %v2676, %v2679
      %v2681 = vsel %vm2628, %v2671, %v2680
      %v2683 = vshrl.u32 %v2615, 16
      %v2685 = vrot.slane %v2683, 1
      %v2686 = vshll.u32 %v2615, 16
      %v2688 = vrot.slane %v2686, 2
      %v2689 = vor.u32 %v2685, %v2688
      %v2690 = vsel %vm2628, %v2680, %v2689
      %v2692 = vshrl.u32 %v2616, 16
      %v2694 = vrot.slane %v2692, 1
      %v2695 = vshll.u32 %v2616, 16
      %v2697 = vrot.slane %v2695, 2
      %v2698 = vor.u32 %v2694, %v2697
      %v2699 = vsel %vm2628, %v2689, %v2698
      %v2701 = vshrl.u32 %v2617, 16
      %v2703 = vrot.slane %v2701, 1
      %v2704 = vshll.u32 %v2617, 16
      %v2706 = vrot.slane %v2704, 2
      %v2707 = vor.u32 %v2703, %v2706
      %v2708 = vsel %vm2628, %v2698, %v2707
      %v2710 = vshrl.u32 %v2618, 16
      %v2712 = vrot.slane %v2710, 1
      %v2713 = vshll.u32 %v2618, 16
      %v2715 = vrot.slane %v2713, 2
      %v2716 = vor.u32 %v2712, %v2715
      %v2717 = vsel %vm2628, %v2707, %v2716
      %v2719 = vshrl.u32 %v2619, 16
      %v2721 = vrot.slane %v2719, 1
      %v2722 = vshll.u32 %v2619, 16
      %v2724 = vrot.slane %v2722, 2
      %v2725 = vor.u32 %v2721, %v2724
      %v2726 = vsel %vm2628, %v2716, %v2725
      %v2728 = vshrl.u32 %v2620, 16
      %v2730 = vrot.slane %v2728, 1
      %v2731 = vshll.u32 %v2620, 16
      %v2733 = vrot.slane %v2731, 2
      %v2734 = vor.u32 %v2730, %v2733
      %v2735 = vsel %vm2628, %v2725, %v2734
      %v2737 = vshrl.u32 %v2621, 16
      %v2739 = vrot.slane %v2737, 1
      %v2740 = vshll.u32 %v2621, 16
      %v2742 = vrot.slane %v2740, 2
      %v2743 = vor.u32 %v2739, %v2742
      %v2744 = vsel %vm2628, %v2734, %v2743
      %v2746 = vshrl.u32 %v2622, 16
      %v2748 = vrot.slane %v2746, 1
      %v2749 = vshll.u32 %v2622, 16
      %v2751 = vrot.slane %v2749, 2
      %v2752 = vor.u32 %v2748, %v2751
      %v2753 = vsel %vm2628, %v2743, %v2752
      %v2755 = vshrl.u32 %v2623, 16
      %v2757 = vrot.slane %v2755, 1
      %v2758 = vshll.u32 %v2623, 16
      %v2760 = vrot.slane %v2758, 2
      %v2761 = vor.u32 %v2757, %v2760
      %v2762 = vsel %vm2628, %v2752, %v2761
      %v2764 = vshrl.u32 %v2624, 16
      %v2766 = vrot.slane %v2764, 1
      %v2767 = vshll.u32 %v2624, 16
      %v2769 = vrot.slane %v2767, 2
      %v2770 = vor.u32 %v2766, %v2769
      %v2771 = vsel %vm2628, %v2761, %v2770
      %v2773 = vshrl.u32 %v2625, 16
      %v2775 = vrot.slane %v2773, 1
      %v2776 = vshll.u32 %v2625, 16
      %v2778 = vrot.slane %v2776, 2
      %v2779 = vor.u32 %v2775, %v2778
      %v2780 = vsel %vm2628, %v2770, %v2779
      %v2782 = vshrl.u32 %v2626, 16
      %v2784 = vrot.slane %v2782, 1
      %v2785 = vshll.u32 %v2626, 16
      %v2787 = vrot.slane %v2785, 2
      %v2788 = vor.u32 %v2784, %v2787
      %v2789 = vsel %vm2628, %v2779, %v2788
      %v2791 = vshrl.u32 %v2627, 16
      %v2793 = vrot.slane %v2791, 1
      %v2794 = vshll.u32 %v2627, 16
      %v2796 = vrot.slane %v2794, 2
      %v2797 = vor.u32 %v2793, %v2796
      %v2798 = vsel %vm2628, %v2788, %v2797
      %v2805 = vunpack.c.l.b16 %v2529
      %v2806 = vunpack.c.l.b16 %v2530
      %v2807 = vunpack.c.l.b16 %v2531
      %v2808 = vunpack.c.l.b16 %v2532
      %v2809 = vunpack.c.l.b16 %v2533
      %v2810 = vunpack.c.l.b16 %v2534
      %v2811 = vpack.c.b16 %v2806, %v2805
      %v2812 = vpack.c.b16 %v2808, %v2807
      %v2813 = vpack.c.b16 %v2810, %v2809
      %v2818 = vsel %vm445, %v2645, 0
      %v2821 = vsel %vm445, %v2654, 0
      %v2824 = vsel %vm445, %v2663, 0
      %v2827 = vsel %vm445, %v2672, 0
      %v2830 = vsel %vm445, %v2681, 0
      %v2833 = vsel %vm445, %v2690, 0
      %v2836 = vsel %vm445, %v2699, 0
      %v2839 = vsel %vm445, %v2708, 0
      %v2842 = vsel %vm445, %v2717, 0
      %v2845 = vsel %vm445, %v2726, 0
      %v2848 = vsel %vm445, %v2735, 0
      %v2851 = vsel %vm445, %v2744, 0
      %v2854 = vsel %vm445, %v2753, 0
      %v2857 = vsel %vm445, %v2762, 0
      %v2860 = vsel %vm445, %v2771, 0
      %v2863 = vsel %vm445, %v2780, 0
      %v2866 = vsel %vm445, %v2789, 0
      %v2869 = vsel %vm445, %v2798, 0
      %2871 = vmatprep.subr.bf16.mxu0 0
      %2872 = vmatpush1.bf16.msra.mxu0 %v2811
      %2873 = vmatprep.subr.bf16.mxu0 0
      %2874 = vmatpush1.bf16.msra.mxu0 %v2812
      %2875 = vmatprep.subr.bf16.mxu0 0
      %2876 = vmatpush1.bf16.msra.mxu0 %v2813
      %2877 = vmatprep.subr.bf16.mxu0 0
      %2878 = vmatpush1.bf16.msra.mxu0 0
      %2879 = vmatprep.subr.bf16.mxu0 0
      %2880 = vmatpush1.bf16.msra.mxu0 0
      %2881 = vmatprep.subr.bf16.mxu0 0
      %2882 = vmatpush1.bf16.msra.mxu0 0
      %2883 = vmatprep.subr.bf16.mxu0 0
      %2884 = vmatpush1.bf16.msra.mxu0 0
      %2885 = vmatprep.subr.bf16.mxu0 0
      %2886 = vmatpush1.bf16.msra.mxu0 0
      %2887 = vmatprep.subr.bf16.mxu0 0
      %2888 = vmatpush1.bf16.msra.mxu0 0
      %2889 = vmatprep.subr.bf16.mxu0 0
      %2890 = vmatpush1.bf16.msra.mxu0 0
      %2891 = vmatprep.subr.bf16.mxu0 0
      %2892 = vmatpush1.bf16.msra.mxu0 0
      %2893 = vmatprep.subr.bf16.mxu0 0
      %2894 = vmatpush1.bf16.msra.mxu0 0
      %2895 = vmatprep.subr.bf16.mxu0 0
      %2896 = vmatpush1.bf16.msra.mxu0 0
      %2897 = vmatprep.subr.bf16.mxu0 0
      %2898 = vmatpush1.bf16.msra.mxu0 0
      %2899 = vmatprep.subr.bf16.mxu0 0
      %2900 = vmatpush1.bf16.msra.mxu0 0
      %2901 = vmatprep.subr.bf16.mxu0 0
      %2902 = vmatpush1.bf16.msra.mxu0 0
      %2903 = vmatprep.mubr.bf16.mxu0 0
      %2904 = vmatmul.mubr.bf16.gmra.mrb[0].mxu0 %v2818
      %v2905 = vpop.f32.mrb[0].mxu0
      %v2906 = vadd.f32 0.0, %v2905
      %v2907 = vpop.f32.mrb[0].mxu0
      %v2908 = vpop.f32.mrb[0].mxu0
      %v2909 = vadd.f32 0.0, %v2908
      %v2910 = vpop.f32.mrb[0].mxu0
      %2911 = vmatprep.mubr.bf16.mxu0 0
      %2912 = vmatmul.mubr.bf16.gmra.mrb[0].mxu0 %v2821
      %v2913 = vpop.f32.mrb[0].mxu0
      %v2914 = vadd.f32 0.0, %v2913
      %v2915 = vpop.f32.mrb[0].mxu0
      %v2916 = vpop.f32.mrb[0].mxu0
      %v2917 = vadd.f32 0.0, %v2916
      %v2918 = vpop.f32.mrb[0].mxu0
      %2919 = vmatprep.mubr.bf16.mxu0 0
      %2920 = vmatmul.mubr.bf16.gmra.mrb[0].mxu0 %v2824
      %v2921 = vpop.f32.mrb[0].mxu0
      %v2922 = vadd.f32 0.0, %v2921
      %v2923 = vpop.f32.mrb[0].mxu0
      %v2924 = vpop.f32.mrb[0].mxu0
      %v2925 = vadd.f32 0.0, %v2924
      %v2926 = vpop.f32.mrb[0].mxu0
      %2927 = vmatprep.mubr.bf16.mxu0 0
      %2928 = vmatmul.mubr.bf16.gmra.mrb[0].mxu0 %v2827
      %v2929 = vpop.f32.mrb[0].mxu0
      %v2930 = vadd.f32 0.0, %v2929
      %v2931 = vpop.f32.mrb[0].mxu0
      %v2932 = vpop.f32.mrb[0].mxu0
      %v2933 = vadd.f32 0.0, %v2932
      %v2934 = vpop.f32.mrb[0].mxu0
      %2935 = vmatprep.mubr.bf16.mxu0 0
      %2936 = vmatmul.mubr.bf16.gmra.mrb[0].mxu0 %v2830
      %v2937 = vpop.f32.mrb[0].mxu0
      %v2938 = vadd.f32 0.0, %v2937
      %v2939 = vpop.f32.mrb[0].mxu0
      %v2940 = vpop.f32.mrb[0].mxu0
      %v2941 = vadd.f32 0.0, %v2940
      %v2942 = vpop.f32.mrb[0].mxu0
      %2943 = vmatprep.mubr.bf16.mxu0 0
      %2944 = vmatmul.mubr.bf16.gmra.mrb[0].mxu0 %v2833
      %v2945 = vpop.f32.mrb[0].mxu0
      %v2946 = vadd.f32 0.0, %v2945
      %v2947 = vpop.f32.mrb[0].mxu0
      %v2948 = vpop.f32.mrb[0].mxu0
      %v2949 = vadd.f32 0.0, %v2948
      %v2950 = vpop.f32.mrb[0].mxu0
      %2951 = vmatprep.mubr.bf16.mxu0 0
      %2952 = vmatmul.mubr.bf16.gmra.mrb[0].mxu0 %v2836
      %v2953 = vpop.f32.mrb[0].mxu0
      %v2954 = vadd.f32 0.0, %v2953
      %v2955 = vpop.f32.mrb[0].mxu0
      %v2956 = vpop.f32.mrb[0].mxu0
      %v2957 = vadd.f32 0.0, %v2956
      %v2958 = vpop.f32.mrb[0].mxu0
      %2959 = vmatprep.mubr.bf16.mxu0 0
      %2960 = vmatmul.mubr.bf16.gmra.mrb[0].mxu0 %v2839
      %v2961 = vpop.f32.mrb[0].mxu0
      %v2962 = vadd.f32 0.0, %v2961
      %v2963 = vpop.f32.mrb[0].mxu0
      %v2964 = vpop.f32.mrb[0].mxu0
      %v2965 = vadd.f32 0.0, %v2964
      %v2966 = vpop.f32.mrb[0].mxu0
      %2967 = vmatprep.mubr.bf16.mxu0 0
      %2968 = vmatmul.mubr.bf16.gmra.mrb[0].mxu0 %v2842
      %v2969 = vpop.f32.mrb[0].mxu0
      %v2970 = vadd.f32 0.0, %v2969
      %v2971 = vpop.f32.mrb[0].mxu0
      %v2972 = vpop.f32.mrb[0].mxu0
      %v2973 = vadd.f32 0.0, %v2972
      %v2974 = vpop.f32.mrb[0].mxu0
      %2975 = vmatprep.mubr.bf16.mxu0 0
      %2976 = vmatmul.mubr.bf16.gmra.mrb[0].mxu0 %v2845
      %v2977 = vpop.f32.mrb[0].mxu0
      %v2978 = vadd.f32 0.0, %v2977
      %v2979 = vpop.f32.mrb[0].mxu0
      %v2980 = vpop.f32.mrb[0].mxu0
      %v2981 = vadd.f32 0.0, %v2980
      %v2982 = vpop.f32.mrb[0].mxu0
      %2983 = vmatprep.mubr.bf16.mxu0 0
      %2984 = vmatmul.mubr.bf16.gmra.mrb[0].mxu0 %v2848
      %v2985 = vpop.f32.mrb[0].mxu0
      %v2986 = vadd.f32 0.0, %v2985
      %v2987 = vpop.f32.mrb[0].mxu0
      %v2988 = vpop.f32.mrb[0].mxu0
      %v2989 = vadd.f32 0.0, %v2988
      %v2990 = vpop.f32.mrb[0].mxu0
      %2991 = vmatprep.mubr.bf16.mxu0 0
      %2992 = vmatmul.mubr.bf16.gmra.mrb[0].mxu0 %v2851
      %v2993 = vpop.f32.mrb[0].mxu0
      %v2994 = vadd.f32 0.0, %v2993
      %v2995 = vpop.f32.mrb[0].mxu0
      %v2996 = vpop.f32.mrb[0].mxu0
      %v2997 = vadd.f32 0.0, %v2996
      %v2998 = vpop.f32.mrb[0].mxu0
      %2999 = vmatprep.mubr.bf16.mxu0 0
      %3000 = vmatmul.mubr.bf16.gmra.mrb[0].mxu0 %v2854
      %v3001 = vpop.f32.mrb[0].mxu0
      %v3002 = vadd.f32 0.0, %v3001
      %v3003 = vpop.f32.mrb[0].mxu0
      %v3004 = vpop.f32.mrb[0].mxu0
      %v3005 = vadd.f32 0.0, %v3004
      %v3006 = vpop.f32.mrb[0].mxu0
      %3007 = vmatprep.mubr.bf16.mxu0 0
      %3008 = vmatmul.mubr.bf16.gmra.mrb[0].mxu0 %v2857
      %v3009 = vpop.f32.mrb[0].mxu0
      %v3010 = vadd.f32 0.0, %v3009
      %v3011 = vpop.f32.mrb[0].mxu0
      %v3012 = vpop.f32.mrb[0].mxu0
      %v3013 = vadd.f32 0.0, %v3012
      %v3014 = vpop.f32.mrb[0].mxu0
      %3015 = vmatprep.mubr.bf16.mxu0 0
      %3016 = vmatmul.mubr.bf16.gmra.mrb[0].mxu0 %v2860
      %v3017 = vpop.f32.mrb[0].mxu0
      %v3018 = vadd.f32 0.0, %v3017
      %v3019 = vpop.f32.mrb[0].mxu0
      %v3020 = vpop.f32.mrb[0].mxu0
      %v3021 = vadd.f32 0.0, %v3020
      %v3022 = vpop.f32.mrb[0].mxu0
      %3023 = vmatprep.mubr.bf16.mxu0 0
      %3024 = vmatmul.mubr.bf16.gmra.mrb[0].mxu0 %v2863
      %v3025 = vpop.f32.mrb[0].mxu0
      %v3026 = vadd.f32 0.0, %v3025
      %v3027 = vpop.f32.mrb[0].mxu0
      %v3028 = vpop.f32.mrb[0].mxu0
      %v3029 = vadd.f32 0.0, %v3028
      %v3030 = vpop.f32.mrb[0].mxu0
      %3031 = vmatprep.mubr.bf16.mxu0 0
      %3032 = vmatmul.mubr.bf16.gmra.mrb[0].mxu0 %v2866
      %v3033 = vpop.f32.mrb[0].mxu0
      %v3034 = vadd.f32 0.0, %v3033
      %v3035 = vpop.f32.mrb[0].mxu0
      %v3036 = vpop.f32.mrb[0].mxu0
      %v3037 = vadd.f32 0.0, %v3036
      %v3038 = vpop.f32.mrb[0].mxu0
      %3039 = vmatprep.mubr.bf16.mxu0 0
      %3040 = vmatmul.mubr.bf16.gmra.mrb[0].mxu0 %v2869
      %v3041 = vpop.f32.mrb[0].mxu0
      %v3042 = vadd.f32 0.0, %v3041
      %v3043 = vpop.f32.mrb[0].mxu0
      %v3044 = vpop.f32.mrb[0].mxu0
      %v3045 = vadd.f32 0.0, %v3044
      %v3046 = vpop.f32.mrb[0].mxu0
      %3047 = vdwg.mxu0
      %v3048 = vadd.f32 %v2492, %v2906
      %v3049 = vadd.f32 %v2493, %v2909
      %v3050 = vadd.f32 %v2494, %v2914
      %v3051 = vadd.f32 %v2495, %v2917
      %v3052 = vadd.f32 %v2496, %v2922
      %v3053 = vadd.f32 %v2497, %v2925
      %v3054 = vadd.f32 %v2498, %v2930
      %v3055 = vadd.f32 %v2499, %v2933
      %v3056 = vadd.f32 %v2500, %v2938
      %v3057 = vadd.f32 %v2501, %v2941
      %v3058 = vadd.f32 %v2502, %v2946
      %v3059 = vadd.f32 %v2503, %v2949
      %v3060 = vadd.f32 %v2504, %v2954
      %v3061 = vadd.f32 %v2505, %v2957
      %v3062 = vadd.f32 %v2506, %v2962
      %v3063 = vadd.f32 %v2507, %v2965
      %v3064 = vadd.f32 %v2508, %v2970
      %v3065 = vadd.f32 %v2509, %v2973
      %v3066 = vadd.f32 %v2510, %v2978
      %v3067 = vadd.f32 %v2511, %v2981
      %v3068 = vadd.f32 %v2512, %v2986
      %v3069 = vadd.f32 %v2513, %v2989
      %v3070 = vadd.f32 %v2514, %v2994
      %v3071 = vadd.f32 %v2515, %v2997
      %v3072 = vadd.f32 %v2516, %v3002
      %v3073 = vadd.f32 %v2517, %v3005
      %v3074 = vadd.f32 %v2518, %v3010
      %v3075 = vadd.f32 %v2519, %v3013
      %v3076 = vadd.f32 %v2520, %v3018
      %v3077 = vadd.f32 %v2521, %v3021
      %v3078 = vadd.f32 %v2522, %v3026
      %v3079 = vadd.f32 %v2523, %v3029
      %v3080 = vadd.f32 %v2524, %v3034
      %v3081 = vadd.f32 %v2525, %v3037
      %v3082 = vadd.f32 %v2526, %v3042
      %v3083 = vadd.f32 %v2527, %v3045
      %3084 = vst [vmem:[#allocation2] sm:$0xff] %v3048
      %3085 = vst [vmem:[#allocation2 + $0x8] sm:$0xff] %v3049
      %3086 = vst [vmem:[#allocation2 + $0x10] sm:$0xff] %v3050
      %3087 = vst [vmem:[#allocation2 + $0x18] sm:$0xff] %v3051
      %3088 = vst [vmem:[#allocation2 + $0x20] sm:$0xff] %v3052
      %3089 = vst [vmem:[#allocation2 + $0x28] sm:$0xff] %v3053
      %3090 = vst [vmem:[#allocation2 + $0x30] sm:$0xff] %v3054
      %3091 = vst [vmem:[#allocation2 + $0x38] sm:$0xff] %v3055
      %3092 = vst [vmem:[#allocation2 + $0x40] sm:$0xff] %v3056
      %3093 = vst [vmem:[#allocation2 + $0x48] sm:$0xff] %v3057
      %3094 = vst [vmem:[#allocation2 + $0x50] sm:$0xff] %v3058
      %3095 = vst [vmem:[#allocation2 + $0x58] sm:$0xff] %v3059
      %3096 = vst [vmem:[#allocation2 + $0x60] sm:$0xff] %v3060
      %3097 = vst [vmem:[#allocation2 + $0x68] sm:$0xff] %v3061
      %3098 = vst [vmem:[#allocation2 + $0x70] sm:$0xff] %v3062
      %3099 = vst [vmem:[#allocation2 + $0x78] sm:$0xff] %v3063
      %3100 = vst [vmem:[#allocation2 + $0x80] sm:$0xff] %v3064
      %3101 = vst [vmem:[#allocation2 + $0x88] sm:$0xff] %v3065
      %3102 = vst [vmem:[#allocation2 + $0x90] sm:$0xff] %v3066
      %3103 = vst [vmem:[#allocation2 + $0x98] sm:$0xff] %v3067
      %3104 = vst [vmem:[#allocation2 + $0xa0] sm:$0xff] %v3068
      %3105 = vst [vmem:[#allocation2 + $0xa8] sm:$0xff] %v3069
      %3106 = vst [vmem:[#allocation2 + $0xb0] sm:$0xff] %v3070
      %3107 = vst [vmem:[#allocation2 + $0xb8] sm:$0xff] %v3071
      %3108 = vst [vmem:[#allocation2 + $0xc0] sm:$0xff] %v3072
      %3109 = vst [vmem:[#allocation2 + $0xc8] sm:$0xff] %v3073
      %3110 = vst [vmem:[#allocation2 + $0xd0] sm:$0xff] %v3074
      %3111 = vst [vmem:[#allocation2 + $0xd8] sm:$0xff] %v3075
      %3112 = vst [vmem:[#allocation2 + $0xe0] sm:$0xff] %v3076
      %3113 = vst [vmem:[#allocation2 + $0xe8] sm:$0xff] %v3077
      %3114 = vst [vmem:[#allocation2 + $0xf0] sm:$0xff] %v3078
      %3115 = vst [vmem:[#allocation2 + $0xf8] sm:$0xff] %v3079
      %3116 = vst [vmem:[#allocation2 + $0x100] sm:$0xff] %v3080
      %3117 = vst [vmem:[#allocation2 + $0x108] sm:$0xff] %v3081
      %3118 = vst [vmem:[#allocation2 + $0x110] sm:$0xff] %v3082
      %3119 = vst [vmem:[#allocation2 + $0x118] sm:$0xff] %v3083
      %v3120 = vld [vmem:[%s206 + $0x8] sm:$0xc]
      %v3121 = vld [vmem:[%s206 + $0xc] sm:$0xf]
      %v3122 = vld [vmem:[%s206 + $0x10] sm:$0xf]
      %v3123 = vld [vmem:[%s206 + $0x14] sm:$0xf]
      %v3124 = vld [vmem:[%s206 + $0x18] sm:$0xf]
      %v3125 = vld [vmem:[%s206 + $0x1c] sm:$0xf]
      %v3126 = vld [vmem:[%s206 + $0x20] sm:$0xf]
      %v3127 = vld [vmem:[%s206 + $0x24] sm:$0xf]
      %v3128 = vld [vmem:[%s206 + $0x28] sm:$0xf]
      %v3129 = vld [vmem:[%s206 + $0x2c] sm:$0xf]
      %v3130 = vld [vmem:[%s206 + $0x30] sm:$0xf]
      %v3131 = vld [vmem:[%s206 + $0x34] sm:$0xf]
      %v3132 = vld [vmem:[%s206 + $0x38] sm:$0xf]
      %v3133 = vld [vmem:[%s206 + $0x3c] sm:$0xf]
      %v3134 = vld [vmem:[%s206 + $0x40] sm:$0xf]
      %v3135 = vld [vmem:[%s206 + $0x44] sm:$0xf]
      %v3136 = vld [vmem:[%s206 + $0x48] sm:$0xf]
      %v3137 = vld [vmem:[%s206 + $0x4c] sm:$0xf]
      %v3138 = vld [vmem:[%s206 + $0x50] sm:$0xf]
      %v3139 = vld [vmem:[%s206 + $0x54] sm:$0xf]
      %v3140 = vld [vmem:[%s206 + $0x58] sm:$0xf]
      %v3141 = vld [vmem:[%s206 + $0x5c] sm:$0xf]
      %v3142 = vld [vmem:[%s206 + $0x60] sm:$0xf]
      %v3143 = vld [vmem:[%s206 + $0x64] sm:$0xf]
      %v3144 = vld [vmem:[%s206 + $0x68] sm:$0xf]
      %v3145 = vld [vmem:[%s206 + $0x6c] sm:$0xf]
      %v3146 = vld [vmem:[%s206 + $0x70] sm:$0xf]
      %v3147 = vld [vmem:[%s206 + $0x74] sm:$0xf]
      %v3148 = vld [vmem:[%s206 + $0x78] sm:$0xf]
      %v3149 = vld [vmem:[%s206 + $0x7c] sm:$0xf]
      %v3150 = vld [vmem:[%s206 + $0x80] sm:$0xf]
      %v3151 = vld [vmem:[%s206 + $0x84] sm:$0xf]
      %v3152 = vld [vmem:[%s206 + $0x88] sm:$0xf]
      %v3153 = vld [vmem:[%s206 + $0x8c] sm:$0xf]
      %v3154 = vld [vmem:[%s206 + $0x90] sm:$0xf]
      %v3155 = vld [vmem:[%s206 + $0x94] sm:$0xf]
      %v3156 = vld [vmem:[%s206 + $0x98] sm:$0x3]
      %v3157 = vld [vmem:[#allocation2] sm:$0xff]
      %v3158 = vld [vmem:[#allocation2 + $0x8] sm:$0xff]
      %v3159 = vld [vmem:[#allocation2 + $0x10] sm:$0xff]
      %v3160 = vld [vmem:[#allocation2 + $0x18] sm:$0xff]
      %v3161 = vld [vmem:[#allocation2 + $0x20] sm:$0xff]
      %v3162 = vld [vmem:[#allocation2 + $0x28] sm:$0xff]
      %v3163 = vld [vmem:[#allocation2 + $0x30] sm:$0xff]
      %v3164 = vld [vmem:[#allocation2 + $0x38] sm:$0xff]
      %v3165 = vld [vmem:[#allocation2 + $0x40] sm:$0xff]
      %v3166 = vld [vmem:[#allocation2 + $0x48] sm:$0xff]
      %v3167 = vld [vmem:[#allocation2 + $0x50] sm:$0xff]
      %v3168 = vld [vmem:[#allocation2 + $0x58] sm:$0xff]
      %v3169 = vld [vmem:[#allocation2 + $0x60] sm:$0xff]
      %v3170 = vld [vmem:[#allocation2 + $0x68] sm:$0xff]
      %v3171 = vld [vmem:[#allocation2 + $0x70] sm:$0xff]
      %v3172 = vld [vmem:[#allocation2 + $0x78] sm:$0xff]
      %v3173 = vld [vmem:[#allocation2 + $0x80] sm:$0xff]
      %v3174 = vld [vmem:[#allocation2 + $0x88] sm:$0xff]
      %v3175 = vld [vmem:[#allocation2 + $0x90] sm:$0xff]
      %v3176 = vld [vmem:[#allocation2 + $0x98] sm:$0xff]
      %v3177 = vld [vmem:[#allocation2 + $0xa0] sm:$0xff]
      %v3178 = vld [vmem:[#allocation2 + $0xa8] sm:$0xff]
      %v3179 = vld [vmem:[#allocation2 + $0xb0] sm:$0xff]
      %v3180 = vld [vmem:[#allocation2 + $0xb8] sm:$0xff]
      %v3181 = vld [vmem:[#allocation2 + $0xc0] sm:$0xff]
      %v3182 = vld [vmem:[#allocation2 + $0xc8] sm:$0xff]
      %v3183 = vld [vmem:[#allocation2 + $0xd0] sm:$0xff]
      %v3184 = vld [vmem:[#allocation2 + $0xd8] sm:$0xff]
      %v3185 = vld [vmem:[#allocation2 + $0xe0] sm:$0xff]
      %v3186 = vld [vmem:[#allocation2 + $0xe8] sm:$0xff]
      %v3187 = vld [vmem:[#allocation2 + $0xf0] sm:$0xff]
      %v3188 = vld [vmem:[#allocation2 + $0xf8] sm:$0xff]
      %v3189 = vld [vmem:[#allocation2 + $0x100] sm:$0xff]
      %v3190 = vld [vmem:[#allocation2 + $0x108] sm:$0xff]
      %v3191 = vld [vmem:[#allocation2 + $0x110] sm:$0xff]
      %v3192 = vld [vmem:[#allocation2 + $0x118] sm:$0xff]
      %s3193 = scalar_lea.vmem %s210, 120
      %v3194 = vld [vmem:[%s3193] sm:$0xf]
      %v3195 = vld [vmem:[%s3193 + $0x4] sm:$0xf]
      %v3196 = vld [vmem:[%s3193 + $0x8] sm:$0xf]
      %v3197 = vld [vmem:[%s3193 + $0xc] sm:$0xf]
      %v3198 = vld [vmem:[%s3193 + $0x10] sm:$0xf]
      %v3199 = vld [vmem:[%s3193 + $0x14] sm:$0xf]
      %v3237 = vunpack.c.l.b16 %v3120
      %v3238 = vunpack.c.l.b16 %v3121
      %v3239 = vunpack.c.l.b16 %v3122
      %v3240 = vunpack.c.l.b16 %v3123
      %v3241 = vunpack.c.l.b16 %v3124
      %v3242 = vunpack.c.l.b16 %v3125
      %v3243 = vunpack.c.l.b16 %v3126
      %v3244 = vunpack.c.l.b16 %v3127
      %v3245 = vunpack.c.l.b16 %v3128
      %v3246 = vunpack.c.l.b16 %v3129
      %v3247 = vunpack.c.l.b16 %v3130
      %v3248 = vunpack.c.l.b16 %v3131
      %v3249 = vunpack.c.l.b16 %v3132
      %v3250 = vunpack.c.l.b16 %v3133
      %v3251 = vunpack.c.l.b16 %v3134
      %v3252 = vunpack.c.l.b16 %v3135
      %v3253 = vunpack.c.l.b16 %v3136
      %v3254 = vunpack.c.l.b16 %v3137
      %v3255 = vunpack.c.l.b16 %v3138
      %v3256 = vunpack.c.l.b16 %v3139
      %v3257 = vunpack.c.l.b16 %v3140
      %v3258 = vunpack.c.l.b16 %v3141
      %v3259 = vunpack.c.l.b16 %v3142
      %v3260 = vunpack.c.l.b16 %v3143
      %v3261 = vunpack.c.l.b16 %v3144
      %v3262 = vunpack.c.l.b16 %v3145
      %v3263 = vunpack.c.l.b16 %v3146
      %v3264 = vunpack.c.l.b16 %v3147
      %v3265 = vunpack.c.l.b16 %v3148
      %v3266 = vunpack.c.l.b16 %v3149
      %v3267 = vunpack.c.l.b16 %v3150
      %v3268 = vunpack.c.l.b16 %v3151
      %v3269 = vunpack.c.l.b16 %v3152
      %v3270 = vunpack.c.l.b16 %v3153
      %v3271 = vunpack.c.l.b16 %v3154
      %v3272 = vunpack.c.l.b16 %v3155
      %v3273 = vunpack.c.l.b16 %v3156
      %v3274 = vpack.c.b16 %v3238, %v3237
      %v3275 = vpack.c.b16 %v3240, %v3239
      %v3276 = vpack.c.b16 %v3242, %v3241
      %v3277 = vpack.c.b16 %v3244, %v3243
      %v3278 = vpack.c.b16 %v3246, %v3245
      %v3279 = vpack.c.b16 %v3248, %v3247
      %v3280 = vpack.c.b16 %v3250, %v3249
      %v3281 = vpack.c.b16 %v3252, %v3251
      %v3282 = vpack.c.b16 %v3254, %v3253
      %v3283 = vpack.c.b16 %v3256, %v3255
      %v3284 = vpack.c.b16 %v3258, %v3257
      %v3285 = vpack.c.b16 %v3260, %v3259
      %v3286 = vpack.c.b16 %v3262, %v3261
      %v3287 = vpack.c.b16 %v3264, %v3263
      %v3288 = vpack.c.b16 %v3266, %v3265
      %v3289 = vpack.c.b16 %v3268, %v3267
      %v3290 = vpack.c.b16 %v3270, %v3269
      %v3291 = vpack.c.b16 %v3272, %v3271
      %v3292 = vpack.c.b16 %v3273, %v3273
      %vm3293 = vcmask 1045504
      %v3294 = vrot.slane %v3274, 2
      %v3295 = vrot.slane %v3275, 2
      %v3296 = vsel %vm3293, %v3294, %v3295
      %v3297 = vrot.slane %v3276, 2
      %v3298 = vsel %vm3293, %v3295, %v3297
      %v3299 = vrot.slane %v3277, 2
      %v3300 = vsel %vm3293, %v3297, %v3299
      %v3301 = vrot.slane %v3278, 2
      %v3302 = vsel %vm3293, %v3299, %v3301
      %v3303 = vrot.slane %v3279, 2
      %v3304 = vsel %vm3293, %v3301, %v3303
      %v3305 = vrot.slane %v3280, 2
      %v3306 = vsel %vm3293, %v3303, %v3305
      %v3307 = vrot.slane %v3281, 2
      %v3308 = vsel %vm3293, %v3305, %v3307
      %v3309 = vrot.slane %v3282, 2
      %v3310 = vsel %vm3293, %v3307, %v3309
      %v3311 = vrot.slane %v3283, 2
      %v3312 = vsel %vm3293, %v3309, %v3311
      %v3313 = vrot.slane %v3284, 2
      %v3314 = vsel %vm3293, %v3311, %v3313
      %v3315 = vrot.slane %v3285, 2
      %v3316 = vsel %vm3293, %v3313, %v3315
      %v3317 = vrot.slane %v3286, 2
      %v3318 = vsel %vm3293, %v3315, %v3317
      %v3319 = vrot.slane %v3287, 2
      %v3320 = vsel %vm3293, %v3317, %v3319
      %v3321 = vrot.slane %v3288, 2
      %v3322 = vsel %vm3293, %v3319, %v3321
      %v3323 = vrot.slane %v3289, 2
      %v3324 = vsel %vm3293, %v3321, %v3323
      %v3325 = vrot.slane %v3290, 2
      %v3326 = vsel %vm3293, %v3323, %v3325
      %v3327 = vrot.slane %v3291, 2
      %v3328 = vsel %vm3293, %v3325, %v3327
      %v3329 = vrot.slane %v3292, 2
      %v3330 = vsel %vm3293, %v3327, %v3329
      %v3337 = vunpack.c.l.b16 %v3194
      %v3338 = vunpack.c.l.b16 %v3195
      %v3339 = vunpack.c.l.b16 %v3196
      %v3340 = vunpack.c.l.b16 %v3197
      %v3341 = vunpack.c.l.b16 %v3198
      %v3342 = vunpack.c.l.b16 %v3199
      %v3343 = vpack.c.b16 %v3338, %v3337
      %v3344 = vpack.c.b16 %v3340, %v3339
      %v3345 = vpack.c.b16 %v3342, %v3341
      %v3350 = vsel %vm445, %v3296, 0
      %v3353 = vsel %vm445, %v3298, 0
      %v3356 = vsel %vm445, %v3300, 0
      %v3359 = vsel %vm445, %v3302, 0
      %v3362 = vsel %vm445, %v3304, 0
      %v3365 = vsel %vm445, %v3306, 0
      %v3368 = vsel %vm445, %v3308, 0
      %v3371 = vsel %vm445, %v3310, 0
      %v3374 = vsel %vm445, %v3312, 0
      %v3377 = vsel %vm445, %v3314, 0
      %v3380 = vsel %vm445, %v3316, 0
      %v3383 = vsel %vm445, %v3318, 0
      %v3386 = vsel %vm445, %v3320, 0
      %v3389 = vsel %vm445, %v3322, 0
      %v3392 = vsel %vm445, %v3324, 0
      %v3395 = vsel %vm445, %v3326, 0
      %v3398 = vsel %vm445, %v3328, 0
      %v3401 = vsel %vm445, %v3330, 0
      %3403 = vmatprep.subr.bf16.mxu0 0
      %3404 = vmatpush1.bf16.msra.mxu0 %v3343
      %3405 = vmatprep.subr.bf16.mxu0 0
      %3406 = vmatpush1.bf16.msra.mxu0 %v3344
      %3407 = vmatprep.subr.bf16.mxu0 0
      %3408 = vmatpush1.bf16.msra.mxu0 %v3345
      %3409 = vmatprep.subr.bf16.mxu0 0
      %3410 = vmatpush1.bf16.msra.mxu0 0
      %3411 = vmatprep.subr.bf16.mxu0 0
      %3412 = vmatpush1.bf16.msra.mxu0 0
      %3413 = vmatprep.subr.bf16.mxu0 0
      %3414 = vmatpush1.bf16.msra.mxu0 0
      %3415 = vmatprep.subr.bf16.mxu0 0
      %3416 = vmatpush1.bf16.msra.mxu0 0
      %3417 = vmatprep.subr.bf16.mxu0 0
      %3418 = vmatpush1.bf16.msra.mxu0 0
      %3419 = vmatprep.subr.bf16.mxu0 0
      %3420 = vmatpush1.bf16.msra.mxu0 0
      %3421 = vmatprep.subr.bf16.mxu0 0
      %3422 = vmatpush1.bf16.msra.mxu0 0
      %3423 = vmatprep.subr.bf16.mxu0 0
      %3424 = vmatpush1.bf16.msra.mxu0 0
      %3425 = vmatprep.subr.bf16.mxu0 0
      %3426 = vmatpush1.bf16.msra.mxu0 0
      %3427 = vmatprep.subr.bf16.mxu0 0
      %3428 = vmatpush1.bf16.msra.mxu0 0
      %3429 = vmatprep.subr.bf16.mxu0 0
      %3430 = vmatpush1.bf16.msra.mxu0 0
      %3431 = vmatprep.subr.bf16.mxu0 0
      %3432 = vmatpush1.bf16.msra.mxu0 0
      %3433 = vmatprep.subr.bf16.mxu0 0
      %3434 = vmatpush1.bf16.msra.mxu0 0
      %3435 = vmatprep.mubr.bf16.mxu0 0
      %3436 = vmatmul.mubr.bf16.gmra.mrb[0].mxu0 %v3350
      %v3437 = vpop.f32.mrb[0].mxu0
      %v3438 = vadd.f32 0.0, %v3437
      %v3439 = vpop.f32.mrb[0].mxu0
      %v3440 = vpop.f32.mrb[0].mxu0
      %v3441 = vadd.f32 0.0, %v3440
      %v3442 = vpop.f32.mrb[0].mxu0
      %3443 = vmatprep.mubr.bf16.mxu0 0
      %3444 = vmatmul.mubr.bf16.gmra.mrb[0].mxu0 %v3353
      %v3445 = vpop.f32.mrb[0].mxu0
      %v3446 = vadd.f32 0.0, %v3445
      %v3447 = vpop.f32.mrb[0].mxu0
      %v3448 = vpop.f32.mrb[0].mxu0
      %v3449 = vadd.f32 0.0, %v3448
      %v3450 = vpop.f32.mrb[0].mxu0
      %3451 = vmatprep.mubr.bf16.mxu0 0
      %3452 = vmatmul.mubr.bf16.gmra.mrb[0].mxu0 %v3356
      %v3453 = vpop.f32.mrb[0].mxu0
      %v3454 = vadd.f32 0.0, %v3453
      %v3455 = vpop.f32.mrb[0].mxu0
      %v3456 = vpop.f32.mrb[0].mxu0
      %v3457 = vadd.f32 0.0, %v3456
      %v3458 = vpop.f32.mrb[0].mxu0
      %3459 = vmatprep.mubr.bf16.mxu0 0
      %3460 = vmatmul.mubr.bf16.gmra.mrb[0].mxu0 %v3359
      %v3461 = vpop.f32.mrb[0].mxu0
      %v3462 = vadd.f32 0.0, %v3461
      %v3463 = vpop.f32.mrb[0].mxu0
      %v3464 = vpop.f32.mrb[0].mxu0
      %v3465 = vadd.f32 0.0, %v3464
      %v3466 = vpop.f32.mrb[0].mxu0
      %3467 = vmatprep.mubr.bf16.mxu0 0
      %3468 = vmatmul.mubr.bf16.gmra.mrb[0].mxu0 %v3362
      %v3469 = vpop.f32.mrb[0].mxu0
      %v3470 = vadd.f32 0.0, %v3469
      %v3471 = vpop.f32.mrb[0].mxu0
      %v3472 = vpop.f32.mrb[0].mxu0
      %v3473 = vadd.f32 0.0, %v3472
      %v3474 = vpop.f32.mrb[0].mxu0
      %3475 = vmatprep.mubr.bf16.mxu0 0
      %3476 = vmatmul.mubr.bf16.gmra.mrb[0].mxu0 %v3365
      %v3477 = vpop.f32.mrb[0].mxu0
      %v3478 = vadd.f32 0.0, %v3477
      %v3479 = vpop.f32.mrb[0].mxu0
      %v3480 = vpop.f32.mrb[0].mxu0
      %v3481 = vadd.f32 0.0, %v3480
      %v3482 = vpop.f32.mrb[0].mxu0
      %3483 = vmatprep.mubr.bf16.mxu0 0
      %3484 = vmatmul.mubr.bf16.gmra.mrb[0].mxu0 %v3368
      %v3485 = vpop.f32.mrb[0].mxu0
      %v3486 = vadd.f32 0.0, %v3485
      %v3487 = vpop.f32.mrb[0].mxu0
      %v3488 = vpop.f32.mrb[0].mxu0
      %v3489 = vadd.f32 0.0, %v3488
      %v3490 = vpop.f32.mrb[0].mxu0
      %3491 = vmatprep.mubr.bf16.mxu0 0
      %3492 = vmatmul.mubr.bf16.gmra.mrb[0].mxu0 %v3371
      %v3493 = vpop.f32.mrb[0].mxu0
      %v3494 = vadd.f32 0.0, %v3493
      %v3495 = vpop.f32.mrb[0].mxu0
      %v3496 = vpop.f32.mrb[0].mxu0
      %v3497 = vadd.f32 0.0, %v3496
      %v3498 = vpop.f32.mrb[0].mxu0
      %3499 = vmatprep.mubr.bf16.mxu0 0
      %3500 = vmatmul.mubr.bf16.gmra.mrb[0].mxu0 %v3374
      %v3501 = vpop.f32.mrb[0].mxu0
      %v3502 = vadd.f32 0.0, %v3501
      %v3503 = vpop.f32.mrb[0].mxu0
      %v3504 = vpop.f32.mrb[0].mxu0
      %v3505 = vadd.f32 0.0, %v3504
      %v3506 = vpop.f32.mrb[0].mxu0
      %3507 = vmatprep.mubr.bf16.mxu0 0
      %3508 = vmatmul.mubr.bf16.gmra.mrb[0].mxu0 %v3377
      %v3509 = vpop.f32.mrb[0].mxu0
      %v3510 = vadd.f32 0.0, %v3509
      %v3511 = vpop.f32.mrb[0].mxu0
      %v3512 = vpop.f32.mrb[0].mxu0
      %v3513 = vadd.f32 0.0, %v3512
      %v3514 = vpop.f32.mrb[0].mxu0
      %3515 = vmatprep.mubr.bf16.mxu0 0
      %3516 = vmatmul.mubr.bf16.gmra.mrb[0].mxu0 %v3380
      %v3517 = vpop.f32.mrb[0].mxu0
      %v3518 = vadd.f32 0.0, %v3517
      %v3519 = vpop.f32.mrb[0].mxu0
      %v3520 = vpop.f32.mrb[0].mxu0
      %v3521 = vadd.f32 0.0, %v3520
      %v3522 = vpop.f32.mrb[0].mxu0
      %3523 = vmatprep.mubr.bf16.mxu0 0
      %3524 = vmatmul.mubr.bf16.gmra.mrb[0].mxu0 %v3383
      %v3525 = vpop.f32.mrb[0].mxu0
      %v3526 = vadd.f32 0.0, %v3525
      %v3527 = vpop.f32.mrb[0].mxu0
      %v3528 = vpop.f32.mrb[0].mxu0
      %v3529 = vadd.f32 0.0, %v3528
      %v3530 = vpop.f32.mrb[0].mxu0
      %3531 = vmatprep.mubr.bf16.mxu0 0
      %3532 = vmatmul.mubr.bf16.gmra.mrb[0].mxu0 %v3386
      %v3533 = vpop.f32.mrb[0].mxu0
      %v3534 = vadd.f32 0.0, %v3533
      %v3535 = vpop.f32.mrb[0].mxu0
      %v3536 = vpop.f32.mrb[0].mxu0
      %v3537 = vadd.f32 0.0, %v3536
      %v3538 = vpop.f32.mrb[0].mxu0
      %3539 = vmatprep.mubr.bf16.mxu0 0
      %3540 = vmatmul.mubr.bf16.gmra.mrb[0].mxu0 %v3389
      %v3541 = vpop.f32.mrb[0].mxu0
      %v3542 = vadd.f32 0.0, %v3541
      %v3543 = vpop.f32.mrb[0].mxu0
      %v3544 = vpop.f32.mrb[0].mxu0
      %v3545 = vadd.f32 0.0, %v3544
      %v3546 = vpop.f32.mrb[0].mxu0
      %3547 = vmatprep.mubr.bf16.mxu0 0
      %3548 = vmatmul.mubr.bf16.gmra.mrb[0].mxu0 %v3392
      %v3549 = vpop.f32.mrb[0].mxu0
      %v3550 = vadd.f32 0.0, %v3549
      %v3551 = vpop.f32.mrb[0].mxu0
      %v3552 = vpop.f32.mrb[0].mxu0
      %v3553 = vadd.f32 0.0, %v3552
      %v3554 = vpop.f32.mrb[0].mxu0
      %3555 = vmatprep.mubr.bf16.mxu0 0
      %3556 = vmatmul.mubr.bf16.gmra.mrb[0].mxu0 %v3395
      %v3557 = vpop.f32.mrb[0].mxu0
      %v3558 = vadd.f32 0.0, %v3557
      %v3559 = vpop.f32.mrb[0].mxu0
      %v3560 = vpop.f32.mrb[0].mxu0
      %v3561 = vadd.f32 0.0, %v3560
      %v3562 = vpop.f32.mrb[0].mxu0
      %3563 = vmatprep.mubr.bf16.mxu0 0
      %3564 = vmatmul.mubr.bf16.gmra.mrb[0].mxu0 %v3398
      %v3565 = vpop.f32.mrb[0].mxu0
      %v3566 = vadd.f32 0.0, %v3565
      %v3567 = vpop.f32.mrb[0].mxu0
      %v3568 = vpop.f32.mrb[0].mxu0
      %v3569 = vadd.f32 0.0, %v3568
      %v3570 = vpop.f32.mrb[0].mxu0
      %3571 = vmatprep.mubr.bf16.mxu0 0
      %3572 = vmatmul.mubr.bf16.gmra.mrb[0].mxu0 %v3401
      %v3573 = vpop.f32.mrb[0].mxu0
      %v3574 = vadd.f32 0.0, %v3573
      %v3575 = vpop.f32.mrb[0].mxu0
      %v3576 = vpop.f32.mrb[0].mxu0
      %v3577 = vadd.f32 0.0, %v3576
      %v3578 = vpop.f32.mrb[0].mxu0
      %3579 = vdwg.mxu0
      %v3580 = vadd.f32 %v3157, %v3438
      %v3581 = vadd.f32 %v3158, %v3441
      %v3582 = vadd.f32 %v3159, %v3446
      %v3583 = vadd.f32 %v3160, %v3449
      %v3584 = vadd.f32 %v3161, %v3454
      %v3585 = vadd.f32 %v3162, %v3457
      %v3586 = vadd.f32 %v3163, %v3462
      %v3587 = vadd.f32 %v3164, %v3465
      %v3588 = vadd.f32 %v3165, %v3470
      %v3589 = vadd.f32 %v3166, %v3473
      %v3590 = vadd.f32 %v3167, %v3478
      %v3591 = vadd.f32 %v3168, %v3481
      %v3592 = vadd.f32 %v3169, %v3486
      %v3593 = vadd.f32 %v3170, %v3489
      %v3594 = vadd.f32 %v3171, %v3494
      %v3595 = vadd.f32 %v3172, %v3497
      %v3596 = vadd.f32 %v3173, %v3502
      %v3597 = vadd.f32 %v3174, %v3505
      %v3598 = vadd.f32 %v3175, %v3510
      %v3599 = vadd.f32 %v3176, %v3513
      %v3600 = vadd.f32 %v3177, %v3518
      %v3601 = vadd.f32 %v3178, %v3521
      %v3602 = vadd.f32 %v3179, %v3526
      %v3603 = vadd.f32 %v3180, %v3529
      %v3604 = vadd.f32 %v3181, %v3534
      %v3605 = vadd.f32 %v3182, %v3537
      %v3606 = vadd.f32 %v3183, %v3542
      %v3607 = vadd.f32 %v3184, %v3545
      %v3608 = vadd.f32 %v3185, %v3550
      %v3609 = vadd.f32 %v3186, %v3553
      %v3610 = vadd.f32 %v3187, %v3558
      %v3611 = vadd.f32 %v3188, %v3561
      %v3612 = vadd.f32 %v3189, %v3566
      %v3613 = vadd.f32 %v3190, %v3569
      %v3614 = vadd.f32 %v3191, %v3574
      %v3615 = vadd.f32 %v3192, %v3577
      %3616 = vst [vmem:[#allocation2] sm:$0xff] %v3580
      %3617 = vst [vmem:[#allocation2 + $0x8] sm:$0xff] %v3581
      %3618 = vst [vmem:[#allocation2 + $0x10] sm:$0xff] %v3582
      %3619 = vst [vmem:[#allocation2 + $0x18] sm:$0xff] %v3583
      %3620 = vst [vmem:[#allocation2 + $0x20] sm:$0xff] %v3584
      %3621 = vst [vmem:[#allocation2 + $0x28] sm:$0xff] %v3585
      %3622 = vst [vmem:[#allocation2 + $0x30] sm:$0xff] %v3586
      %3623 = vst [vmem:[#allocation2 + $0x38] sm:$0xff] %v3587
      %3624 = vst [vmem:[#allocation2 + $0x40] sm:$0xff] %v3588
      %3625 = vst [vmem:[#allocation2 + $0x48] sm:$0xff] %v3589
      %3626 = vst [vmem:[#allocation2 + $0x50] sm:$0xff] %v3590
      %3627 = vst [vmem:[#allocation2 + $0x58] sm:$0xff] %v3591
      %3628 = vst [vmem:[#allocation2 + $0x60] sm:$0xff] %v3592
      %3629 = vst [vmem:[#allocation2 + $0x68] sm:$0xff] %v3593
      %3630 = vst [vmem:[#allocation2 + $0x70] sm:$0xff] %v3594
      %3631 = vst [vmem:[#allocation2 + $0x78] sm:$0xff] %v3595
      %3632 = vst [vmem:[#allocation2 + $0x80] sm:$0xff] %v3596
      %3633 = vst [vmem:[#allocation2 + $0x88] sm:$0xff] %v3597
      %3634 = vst [vmem:[#allocation2 + $0x90] sm:$0xff] %v3598
      %3635 = vst [vmem:[#allocation2 + $0x98] sm:$0xff] %v3599
      %3636 = vst [vmem:[#allocation2 + $0xa0] sm:$0xff] %v3600
      %3637 = vst [vmem:[#allocation2 + $0xa8] sm:$0xff] %v3601
      %3638 = vst [vmem:[#allocation2 + $0xb0] sm:$0xff] %v3602
      %3639 = vst [vmem:[#allocation2 + $0xb8] sm:$0xff] %v3603
      %3640 = vst [vmem:[#allocation2 + $0xc0] sm:$0xff] %v3604
      %3641 = vst [vmem:[#allocation2 + $0xc8] sm:$0xff] %v3605
      %3642 = vst [vmem:[#allocation2 + $0xd0] sm:$0xff] %v3606
      %3643 = vst [vmem:[#allocation2 + $0xd8] sm:$0xff] %v3607
      %3644 = vst [vmem:[#allocation2 + $0xe0] sm:$0xff] %v3608
      %3645 = vst [vmem:[#allocation2 + $0xe8] sm:$0xff] %v3609
      %3646 = vst [vmem:[#allocation2 + $0xf0] sm:$0xff] %v3610
      %3647 = vst [vmem:[#allocation2 + $0xf8] sm:$0xff] %v3611
      %3648 = vst [vmem:[#allocation2 + $0x100] sm:$0xff] %v3612
      %3649 = vst [vmem:[#allocation2 + $0x108] sm:$0xff] %v3613
      %3650 = vst [vmem:[#allocation2 + $0x110] sm:$0xff] %v3614
      %3651 = vst [vmem:[#allocation2 + $0x118] sm:$0xff] %v3615
      %v3652 = vld [vmem:[%s206 + $0x10] sm:$0xc]
      %v3653 = vld [vmem:[%s206 + $0x14] sm:$0xf]
      %v3654 = vld [vmem:[%s206 + $0x18] sm:$0xf]
      %v3655 = vld [vmem:[%s206 + $0x1c] sm:$0xf]
      %v3656 = vld [vmem:[%s206 + $0x20] sm:$0xf]
      %v3657 = vld [vmem:[%s206 + $0x24] sm:$0xf]
      %v3658 = vld [vmem:[%s206 + $0x28] sm:$0xf]
      %v3659 = vld [vmem:[%s206 + $0x2c] sm:$0xf]
      %v3660 = vld [vmem:[%s206 + $0x30] sm:$0xf]
      %v3661 = vld [vmem:[%s206 + $0x34] sm:$0xf]
      %v3662 = vld [vmem:[%s206 + $0x38] sm:$0xf]
      %v3663 = vld [vmem:[%s206 + $0x3c] sm:$0xf]
      %v3664 = vld [vmem:[%s206 + $0x40] sm:$0xf]
      %v3665 = vld [vmem:[%s206 + $0x44] sm:$0xf]
      %v3666 = vld [vmem:[%s206 + $0x48] sm:$0xf]
      %v3667 = vld [vmem:[%s206 + $0x4c] sm:$0xf]
      %v3668 = vld [vmem:[%s206 + $0x50] sm:$0xf]
      %v3669 = vld [vmem:[%s206 + $0x54] sm:$0xf]
      %v3670 = vld [vmem:[%s206 + $0x58] sm:$0xf]
      %v3671 = vld [vmem:[%s206 + $0x5c] sm:$0xf]
      %v3672 = vld [vmem:[%s206 + $0x60] sm:$0xf]
      %v3673 = vld [vmem:[%s206 + $0x64] sm:$0xf]
      %v3674 = vld [vmem:[%s206 + $0x68] sm:$0xf]
      %v3675 = vld [vmem:[%s206 + $0x6c] sm:$0xf]
      %v3676 = vld [vmem:[%s206 + $0x70] sm:$0xf]
      %v3677 = vld [vmem:[%s206 + $0x74] sm:$0xf]
      %v3678 = vld [vmem:[%s206 + $0x78] sm:$0xf]
      %v3679 = vld [vmem:[%s206 + $0x7c] sm:$0xf]
      %v3680 = vld [vmem:[%s206 + $0x80] sm:$0xf]
      %v3681 = vld [vmem:[%s206 + $0x84] sm:$0xf]
      %v3682 = vld [vmem:[%s206 + $0x88] sm:$0xf]
      %v3683 = vld [vmem:[%s206 + $0x8c] sm:$0xf]
      %v3684 = vld [vmem:[%s206 + $0x90] sm:$0xf]
      %v3685 = vld [vmem:[%s206 + $0x94] sm:$0xf]
      %v3686 = vld [vmem:[%s206 + $0x98] sm:$0xf]
      %v3687 = vld [vmem:[%s206 + $0x9c] sm:$0xf]
      %v3688 = vld [vmem:[%s206 + $0xa0] sm:$0x3]
      %v3689 = vld [vmem:[#allocation2] sm:$0xff]
      %v3690 = vld [vmem:[#allocation2 + $0x8] sm:$0xff]
      %v3691 = vld [vmem:[#allocation2 + $0x10] sm:$0xff]
      %v3692 = vld [vmem:[#allocation2 + $0x18] sm:$0xff]
      %v3693 = vld [vmem:[#allocation2 + $0x20] sm:$0xff]
      %v3694 = vld [vmem:[#allocation2 + $0x28] sm:$0xff]
      %v3695 = vld [vmem:[#allocation2 + $0x30] sm:$0xff]
      %v3696 = vld [vmem:[#allocation2 + $0x38] sm:$0xff]
      %v3697 = vld [vmem:[#allocation2 + $0x40] sm:$0xff]
      %v3698 = vld [vmem:[#allocation2 + $0x48] sm:$0xff]
      %v3699 = vld [vmem:[#allocation2 + $0x50] sm:$0xff]
      %v3700 = vld [vmem:[#allocation2 + $0x58] sm:$0xff]
      %v3701 = vld [vmem:[#allocation2 + $0x60] sm:$0xff]
      %v3702 = vld [vmem:[#allocation2 + $0x68] sm:$0xff]
      %v3703 = vld [vmem:[#allocation2 + $0x70] sm:$0xff]
      %v3704 = vld [vmem:[#allocation2 + $0x78] sm:$0xff]
      %v3705 = vld [vmem:[#allocation2 + $0x80] sm:$0xff]
      %v3706 = vld [vmem:[#allocation2 + $0x88] sm:$0xff]
      %v3707 = vld [vmem:[#allocation2 + $0x90] sm:$0xff]
      %v3708 = vld [vmem:[#allocation2 + $0x98] sm:$0xff]
      %v3709 = vld [vmem:[#allocation2 + $0xa0] sm:$0xff]
      %v3710 = vld [vmem:[#allocation2 + $0xa8] sm:$0xff]
      %v3711 = vld [vmem:[#allocation2 + $0xb0] sm:$0xff]
      %v3712 = vld [vmem:[#allocation2 + $0xb8] sm:$0xff]
      %v3713 = vld [vmem:[#allocation2 + $0xc0] sm:$0xff]
      %v3714 = vld [vmem:[#allocation2 + $0xc8] sm:$0xff]
      %v3715 = vld [vmem:[#allocation2 + $0xd0] sm:$0xff]
      %v3716 = vld [vmem:[#allocation2 + $0xd8] sm:$0xff]
      %v3717 = vld [vmem:[#allocation2 + $0xe0] sm:$0xff]
      %v3718 = vld [vmem:[#allocation2 + $0xe8] sm:$0xff]
      %v3719 = vld [vmem:[#allocation2 + $0xf0] sm:$0xff]
      %v3720 = vld [vmem:[#allocation2 + $0xf8] sm:$0xff]
      %v3721 = vld [vmem:[#allocation2 + $0x100] sm:$0xff]
      %v3722 = vld [vmem:[#allocation2 + $0x108] sm:$0xff]
      %v3723 = vld [vmem:[#allocation2 + $0x110] sm:$0xff]
      %v3724 = vld [vmem:[#allocation2 + $0x118] sm:$0xff]
      %s3725 = scalar_lea.vmem %s210, 144
      %v3726 = vld [vmem:[%s3725] sm:$0xf]
      %v3727 = vld [vmem:[%s3725 + $0x4] sm:$0xf]
      %v3728 = vld [vmem:[%s3725 + $0x8] sm:$0xf]
      %v3729 = vld [vmem:[%s3725 + $0xc] sm:$0xf]
      %v3730 = vld [vmem:[%s3725 + $0x10] sm:$0xf]
      %v3731 = vld [vmem:[%s3725 + $0x14] sm:$0xf]
      %v3769 = vunpack.c.l.b16 %v3652
      %v3770 = vunpack.c.l.b16 %v3653
      %v3771 = vunpack.c.l.b16 %v3654
      %v3772 = vunpack.c.l.b16 %v3655
      %v3773 = vunpack.c.l.b16 %v3656
      %v3774 = vunpack.c.l.b16 %v3657
      %v3775 = vunpack.c.l.b16 %v3658
      %v3776 = vunpack.c.l.b16 %v3659
      %v3777 = vunpack.c.l.b16 %v3660
      %v3778 = vunpack.c.l.b16 %v3661
      %v3779 = vunpack.c.l.b16 %v3662
      %v3780 = vunpack.c.l.b16 %v3663
      %v3781 = vunpack.c.l.b16 %v3664
      %v3782 = vunpack.c.l.b16 %v3665
      %v3783 = vunpack.c.l.b16 %v3666
      %v3784 = vunpack.c.l.b16 %v3667
      %v3785 = vunpack.c.l.b16 %v3668
      %v3786 = vunpack.c.l.b16 %v3669
      %v3787 = vunpack.c.l.b16 %v3670
      %v3788 = vunpack.c.l.b16 %v3671
      %v3789 = vunpack.c.l.b16 %v3672
      %v3790 = vunpack.c.l.b16 %v3673
      %v3791 = vunpack.c.l.b16 %v3674
      %v3792 = vunpack.c.l.b16 %v3675
      %v3793 = vunpack.c.l.b16 %v3676
      %v3794 = vunpack.c.l.b16 %v3677
      %v3795 = vunpack.c.l.b16 %v3678
      %v3796 = vunpack.c.l.b16 %v3679
      %v3797 = vunpack.c.l.b16 %v3680
      %v3798 = vunpack.c.l.b16 %v3681
      %v3799 = vunpack.c.l.b16 %v3682
      %v3800 = vunpack.c.l.b16 %v3683
      %v3801 = vunpack.c.l.b16 %v3684
      %v3802 = vunpack.c.l.b16 %v3685
      %v3803 = vunpack.c.l.b16 %v3686
      %v3804 = vunpack.c.l.b16 %v3687
      %v3805 = vunpack.c.l.b16 %v3688
      %v3806 = vpack.c.b16 %v3770, %v3769
      %v3807 = vpack.c.b16 %v3772, %v3771
      %v3808 = vpack.c.b16 %v3774, %v3773
      %v3809 = vpack.c.b16 %v3776, %v3775
      %v3810 = vpack.c.b16 %v3778, %v3777
      %v3811 = vpack.c.b16 %v3780, %v3779
      %v3812 = vpack.c.b16 %v3782, %v3781
      %v3813 = vpack.c.b16 %v3784, %v3783
      %v3814 = vpack.c.b16 %v3786, %v3785
      %v3815 = vpack.c.b16 %v3788, %v3787
      %v3816 = vpack.c.b16 %v3790, %v3789
      %v3817 = vpack.c.b16 %v3792, %v3791
      %v3818 = vpack.c.b16 %v3794, %v3793
      %v3819 = vpack.c.b16 %v3796, %v3795
      %v3820 = vpack.c.b16 %v3798, %v3797
      %v3821 = vpack.c.b16 %v3800, %v3799
      %v3822 = vpack.c.b16 %v3802, %v3801
      %v3823 = vpack.c.b16 %v3804, %v3803
      %v3824 = vpack.c.b16 %v3805, %v3805
      %v3825 = vrot.slane %v3806, 2
      %v3826 = vrot.slane %v3807, 2
      %v3827 = vsel %vm3293, %v3825, %v3826
      %v3828 = vrot.slane %v3808, 2
      %v3829 = vsel %vm3293, %v3826, %v3828
      %v3830 = vrot.slane %v3809, 2
      %v3831 = vsel %vm3293, %v3828, %v3830
      %v3832 = vrot.slane %v3810, 2
      %v3833 = vsel %vm3293, %v3830, %v3832
      %v3834 = vrot.slane %v3811, 2
      %v3835 = vsel %vm3293, %v3832, %v3834
      %v3836 = vrot.slane %v3812, 2
      %v3837 = vsel %vm3293, %v3834, %v3836
      %v3838 = vrot.slane %v3813, 2
      %v3839 = vsel %vm3293, %v3836, %v3838
      %v3840 = vrot.slane %v3814, 2
      %v3841 = vsel %vm3293, %v3838, %v3840
      %v3842 = vrot.slane %v3815, 2
      %v3843 = vsel %vm3293, %v3840, %v3842
      %v3844 = vrot.slane %v3816, 2
      %v3845 = vsel %vm3293, %v3842, %v3844
      %v3846 = vrot.slane %v3817, 2
      %v3847 = vsel %vm3293, %v3844, %v3846
      %v3848 = vrot.slane %v3818, 2
      %v3849 = vsel %vm3293, %v3846, %v3848
      %v3850 = vrot.slane %v3819, 2
      %v3851 = vsel %vm3293, %v3848, %v3850
      %v3852 = vrot.slane %v3820, 2
      %v3853 = vsel %vm3293, %v3850, %v3852
      %v3854 = vrot.slane %v3821, 2
      %v3855 = vsel %vm3293, %v3852, %v3854
      %v3856 = vrot.slane %v3822, 2
      %v3857 = vsel %vm3293, %v3854, %v3856
      %v3858 = vrot.slane %v3823, 2
      %v3859 = vsel %vm3293, %v3856, %v3858
      %v3860 = vrot.slane %v3824, 2
      %v3861 = vsel %vm3293, %v3858, %v3860
      %v3868 = vunpack.c.l.b16 %v3726
      %v3869 = vunpack.c.l.b16 %v3727
      %v3870 = vunpack.c.l.b16 %v3728
      %v3871 = vunpack.c.l.b16 %v3729
      %v3872 = vunpack.c.l.b16 %v3730
      %v3873 = vunpack.c.l.b16 %v3731
      %v3874 = vpack.c.b16 %v3869, %v3868
      %v3875 = vpack.c.b16 %v3871, %v3870
      %v3876 = vpack.c.b16 %v3873, %v3872
      %v3881 = vsel %vm445, %v3827, 0
      %v3884 = vsel %vm445, %v3829, 0
      %v3887 = vsel %vm445, %v3831, 0
      %v3890 = vsel %vm445, %v3833, 0
      %v3893 = vsel %vm445, %v3835, 0
      %v3896 = vsel %vm445, %v3837, 0
      %v3899 = vsel %vm445, %v3839, 0
      %v3902 = vsel %vm445, %v3841, 0
      %v3905 = vsel %vm445, %v3843, 0
      %v3908 = vsel %vm445, %v3845, 0
      %v3911 = vsel %vm445, %v3847, 0
      %v3914 = vsel %vm445, %v3849, 0
      %v3917 = vsel %vm445, %v3851, 0
      %v3920 = vsel %vm445, %v3853, 0
      %v3923 = vsel %vm445, %v3855, 0
      %v3926 = vsel %vm445, %v3857, 0
      %v3929 = vsel %vm445, %v3859, 0
      %v3932 = vsel %vm445, %v3861, 0
      %3934 = vmatprep.subr.bf16.mxu0 0
      %3935 = vmatpush1.bf16.msra.mxu0 %v3874
      %3936 = vmatprep.subr.bf16.mxu0 0
      %3937 = vmatpush1.bf16.msra.mxu0 %v3875
      %3938 = vmatprep.subr.bf16.mxu0 0
      %3939 = vmatpush1.bf16.msra.mxu0 %v3876
      %3940 = vmatprep.subr.bf16.mxu0 0
      %3941 = vmatpush1.bf16.msra.mxu0 0
      %3942 = vmatprep.subr.bf16.mxu0 0
      %3943 = vmatpush1.bf16.msra.mxu0 0
      %3944 = vmatprep.subr.bf16.mxu0 0
      %3945 = vmatpush1.bf16.msra.mxu0 0
      %3946 = vmatprep.subr.bf16.mxu0 0
      %3947 = vmatpush1.bf16.msra.mxu0 0
      %3948 = vmatprep.subr.bf16.mxu0 0
      %3949 = vmatpush1.bf16.msra.mxu0 0
      %3950 = vmatprep.subr.bf16.mxu0 0
      %3951 = vmatpush1.bf16.msra.mxu0 0
      %3952 = vmatprep.subr.bf16.mxu0 0
      %3953 = vmatpush1.bf16.msra.mxu0 0
      %3954 = vmatprep.subr.bf16.mxu0 0
      %3955 = vmatpush1.bf16.msra.mxu0 0
      %3956 = vmatprep.subr.bf16.mxu0 0
      %3957 = vmatpush1.bf16.msra.mxu0 0
      %3958 = vmatprep.subr.bf16.mxu0 0
      %3959 = vmatpush1.bf16.msra.mxu0 0
      %3960 = vmatprep.subr.bf16.mxu0 0
      %3961 = vmatpush1.bf16.msra.mxu0 0
      %3962 = vmatprep.subr.bf16.mxu0 0
      %3963 = vmatpush1.bf16.msra.mxu0 0
      %3964 = vmatprep.subr.bf16.mxu0 0
      %3965 = vmatpush1.bf16.msra.mxu0 0
      %3966 = vmatprep.mubr.bf16.mxu0 0
      %3967 = vmatmul.mubr.bf16.gmra.mrb[0].mxu0 %v3881
      %v3968 = vpop.f32.mrb[0].mxu0
      %v3969 = vadd.f32 0.0, %v3968
      %v3970 = vpop.f32.mrb[0].mxu0
      %v3971 = vpop.f32.mrb[0].mxu0
      %v3972 = vadd.f32 0.0, %v3971
      %v3973 = vpop.f32.mrb[0].mxu0
      %3974 = vmatprep.mubr.bf16.mxu0 0
      %3975 = vmatmul.mubr.bf16.gmra.mrb[0].mxu0 %v3884
      %v3976 = vpop.f32.mrb[0].mxu0
      %v3977 = vadd.f32 0.0, %v3976
      %v3978 = vpop.f32.mrb[0].mxu0
      %v3979 = vpop.f32.mrb[0].mxu0
      %v3980 = vadd.f32 0.0, %v3979
      %v3981 = vpop.f32.mrb[0].mxu0
      %3982 = vmatprep.mubr.bf16.mxu0 0
      %3983 = vmatmul.mubr.bf16.gmra.mrb[0].mxu0 %v3887
      %v3984 = vpop.f32.mrb[0].mxu0
      %v3985 = vadd.f32 0.0, %v3984
      %v3986 = vpop.f32.mrb[0].mxu0
      %v3987 = vpop.f32.mrb[0].mxu0
      %v3988 = vadd.f32 0.0, %v3987
      %v3989 = vpop.f32.mrb[0].mxu0
      %3990 = vmatprep.mubr.bf16.mxu0 0
      %3991 = vmatmul.mubr.bf16.gmra.mrb[0].mxu0 %v3890
      %v3992 = vpop.f32.mrb[0].mxu0
      %v3993 = vadd.f32 0.0, %v3992
      %v3994 = vpop.f32.mrb[0].mxu0
      %v3995 = vpop.f32.mrb[0].mxu0
      %v3996 = vadd.f32 0.0, %v3995
      %v3997 = vpop.f32.mrb[0].mxu0
      %3998 = vmatprep.mubr.bf16.mxu0 0
      %3999 = vmatmul.mubr.bf16.gmra.mrb[0].mxu0 %v3893
      %v4000 = vpop.f32.mrb[0].mxu0
      %v4001 = vadd.f32 0.0, %v4000
      %v4002 = vpop.f32.mrb[0].mxu0
      %v4003 = vpop.f32.mrb[0].mxu0
      %v4004 = vadd.f32 0.0, %v4003
      %v4005 = vpop.f32.mrb[0].mxu0
      %4006 = vmatprep.mubr.bf16.mxu0 0
      %4007 = vmatmul.mubr.bf16.gmra.mrb[0].mxu0 %v3896
      %v4008 = vpop.f32.mrb[0].mxu0
      %v4009 = vadd.f32 0.0, %v4008
      %v4010 = vpop.f32.mrb[0].mxu0
      %v4011 = vpop.f32.mrb[0].mxu0
      %v4012 = vadd.f32 0.0, %v4011
      %v4013 = vpop.f32.mrb[0].mxu0
      %4014 = vmatprep.mubr.bf16.mxu0 0
      %4015 = vmatmul.mubr.bf16.gmra.mrb[0].mxu0 %v3899
      %v4016 = vpop.f32.mrb[0].mxu0
      %v4017 = vadd.f32 0.0, %v4016
      %v4018 = vpop.f32.mrb[0].mxu0
      %v4019 = vpop.f32.mrb[0].mxu0
      %v4020 = vadd.f32 0.0, %v4019
      %v4021 = vpop.f32.mrb[0].mxu0
      %4022 = vmatprep.mubr.bf16.mxu0 0
      %4023 = vmatmul.mubr.bf16.gmra.mrb[0].mxu0 %v3902
      %v4024 = vpop.f32.mrb[0].mxu0
      %v4025 = vadd.f32 0.0, %v4024
      %v4026 = vpop.f32.mrb[0].mxu0
      %v4027 = vpop.f32.mrb[0].mxu0
      %v4028 = vadd.f32 0.0, %v4027
      %v4029 = vpop.f32.mrb[0].mxu0
      %4030 = vmatprep.mubr.bf16.mxu0 0
      %4031 = vmatmul.mubr.bf16.gmra.mrb[0].mxu0 %v3905
      %v4032 = vpop.f32.mrb[0].mxu0
      %v4033 = vadd.f32 0.0, %v4032
      %v4034 = vpop.f32.mrb[0].mxu0
      %v4035 = vpop.f32.mrb[0].mxu0
      %v4036 = vadd.f32 0.0, %v4035
      %v4037 = vpop.f32.mrb[0].mxu0
      %4038 = vmatprep.mubr.bf16.mxu0 0
      %4039 = vmatmul.mubr.bf16.gmra.mrb[0].mxu0 %v3908
      %v4040 = vpop.f32.mrb[0].mxu0
      %v4041 = vadd.f32 0.0, %v4040
      %v4042 = vpop.f32.mrb[0].mxu0
      %v4043 = vpop.f32.mrb[0].mxu0
      %v4044 = vadd.f32 0.0, %v4043
      %v4045 = vpop.f32.mrb[0].mxu0
      %4046 = vmatprep.mubr.bf16.mxu0 0
      %4047 = vmatmul.mubr.bf16.gmra.mrb[0].mxu0 %v3911
      %v4048 = vpop.f32.mrb[0].mxu0
      %v4049 = vadd.f32 0.0, %v4048
      %v4050 = vpop.f32.mrb[0].mxu0
      %v4051 = vpop.f32.mrb[0].mxu0
      %v4052 = vadd.f32 0.0, %v4051
      %v4053 = vpop.f32.mrb[0].mxu0
      %4054 = vmatprep.mubr.bf16.mxu0 0
      %4055 = vmatmul.mubr.bf16.gmra.mrb[0].mxu0 %v3914
      %v4056 = vpop.f32.mrb[0].mxu0
      %v4057 = vadd.f32 0.0, %v4056
      %v4058 = vpop.f32.mrb[0].mxu0
      %v4059 = vpop.f32.mrb[0].mxu0
      %v4060 = vadd.f32 0.0, %v4059
      %v4061 = vpop.f32.mrb[0].mxu0
      %4062 = vmatprep.mubr.bf16.mxu0 0
      %4063 = vmatmul.mubr.bf16.gmra.mrb[0].mxu0 %v3917
      %v4064 = vpop.f32.mrb[0].mxu0
      %v4065 = vadd.f32 0.0, %v4064
      %v4066 = vpop.f32.mrb[0].mxu0
      %v4067 = vpop.f32.mrb[0].mxu0
      %v4068 = vadd.f32 0.0, %v4067
      %v4069 = vpop.f32.mrb[0].mxu0
      %4070 = vmatprep.mubr.bf16.mxu0 0
      %4071 = vmatmul.mubr.bf16.gmra.mrb[0].mxu0 %v3920
      %v4072 = vpop.f32.mrb[0].mxu0
      %v4073 = vadd.f32 0.0, %v4072
      %v4074 = vpop.f32.mrb[0].mxu0
      %v4075 = vpop.f32.mrb[0].mxu0
      %v4076 = vadd.f32 0.0, %v4075
      %v4077 = vpop.f32.mrb[0].mxu0
      %4078 = vmatprep.mubr.bf16.mxu0 0
      %4079 = vmatmul.mubr.bf16.gmra.mrb[0].mxu0 %v3923
      %v4080 = vpop.f32.mrb[0].mxu0
      %v4081 = vadd.f32 0.0, %v4080
      %v4082 = vpop.f32.mrb[0].mxu0
      %v4083 = vpop.f32.mrb[0].mxu0
      %v4084 = vadd.f32 0.0, %v4083
      %v4085 = vpop.f32.mrb[0].mxu0
      %4086 = vmatprep.mubr.bf16.mxu0 0
      %4087 = vmatmul.mubr.bf16.gmra.mrb[0].mxu0 %v3926
      %v4088 = vpop.f32.mrb[0].mxu0
      %v4089 = vadd.f32 0.0, %v4088
      %v4090 = vpop.f32.mrb[0].mxu0
      %v4091 = vpop.f32.mrb[0].mxu0
      %v4092 = vadd.f32 0.0, %v4091
      %v4093 = vpop.f32.mrb[0].mxu0
      %4094 = vmatprep.mubr.bf16.mxu0 0
      %4095 = vmatmul.mubr.bf16.gmra.mrb[0].mxu0 %v3929
      %v4096 = vpop.f32.mrb[0].mxu0
      %v4097 = vadd.f32 0.0, %v4096
      %v4098 = vpop.f32.mrb[0].mxu0
      %v4099 = vpop.f32.mrb[0].mxu0
      %v4100 = vadd.f32 0.0, %v4099
      %v4101 = vpop.f32.mrb[0].mxu0
      %4102 = vmatprep.mubr.bf16.mxu0 0
      %4103 = vmatmul.mubr.bf16.gmra.mrb[0].mxu0 %v3932
      %v4104 = vpop.f32.mrb[0].mxu0
      %v4105 = vadd.f32 0.0, %v4104
      %v4106 = vpop.f32.mrb[0].mxu0
      %v4107 = vpop.f32.mrb[0].mxu0
      %v4108 = vadd.f32 0.0, %v4107
      %v4109 = vpop.f32.mrb[0].mxu0
      %4110 = vdwg.mxu0
      %v4111 = vadd.f32 %v3689, %v3969
      %v4112 = vadd.f32 %v3690, %v3972
      %v4113 = vadd.f32 %v3691, %v3977
      %v4114 = vadd.f32 %v3692, %v3980
      %v4115 = vadd.f32 %v3693, %v3985
      %v4116 = vadd.f32 %v3694, %v3988
      %v4117 = vadd.f32 %v3695, %v3993
      %v4118 = vadd.f32 %v3696, %v3996
      %v4119 = vadd.f32 %v3697, %v4001
      %v4120 = vadd.f32 %v3698, %v4004
      %v4121 = vadd.f32 %v3699, %v4009
      %v4122 = vadd.f32 %v3700, %v4012
      %v4123 = vadd.f32 %v3701, %v4017
      %v4124 = vadd.f32 %v3702, %v4020
      %v4125 = vadd.f32 %v3703, %v4025
      %v4126 = vadd.f32 %v3704, %v4028
      %v4127 = vadd.f32 %v3705, %v4033
      %v4128 = vadd.f32 %v3706, %v4036
      %v4129 = vadd.f32 %v3707, %v4041
      %v4130 = vadd.f32 %v3708, %v4044
      %v4131 = vadd.f32 %v3709, %v4049
      %v4132 = vadd.f32 %v3710, %v4052
      %v4133 = vadd.f32 %v3711, %v4057
      %v4134 = vadd.f32 %v3712, %v4060
      %v4135 = vadd.f32 %v3713, %v4065
      %v4136 = vadd.f32 %v3714, %v4068
      %v4137 = vadd.f32 %v3715, %v4073
      %v4138 = vadd.f32 %v3716, %v4076
      %v4139 = vadd.f32 %v3717, %v4081
      %v4140 = vadd.f32 %v3718, %v4084
      %v4141 = vadd.f32 %v3719, %v4089
      %v4142 = vadd.f32 %v3720, %v4092
      %v4143 = vadd.f32 %v3721, %v4097
      %v4144 = vadd.f32 %v3722, %v4100
      %v4145 = vadd.f32 %v3723, %v4105
      %v4146 = vadd.f32 %v3724, %v4108
      %4147 = vst [vmem:[#allocation2] sm:$0xff] %v4111
      %4148 = vst [vmem:[#allocation2 + $0x8] sm:$0xff] %v4112
      %4149 = vst [vmem:[#allocation2 + $0x10] sm:$0xff] %v4113
      %4150 = vst [vmem:[#allocation2 + $0x18] sm:$0xff] %v4114
      %4151 = vst [vmem:[#allocation2 + $0x20] sm:$0xff] %v4115
      %4152 = vst [vmem:[#allocation2 + $0x28] sm:$0xff] %v4116
      %4153 = vst [vmem:[#allocation2 + $0x30] sm:$0xff] %v4117
      %4154 = vst [vmem:[#allocation2 + $0x38] sm:$0xff] %v4118
      %4155 = vst [vmem:[#allocation2 + $0x40] sm:$0xff] %v4119
      %4156 = vst [vmem:[#allocation2 + $0x48] sm:$0xff] %v4120
      %4157 = vst [vmem:[#allocation2 + $0x50] sm:$0xff] %v4121
      %4158 = vst [vmem:[#allocation2 + $0x58] sm:$0xff] %v4122
      %4159 = vst [vmem:[#allocation2 + $0x60] sm:$0xff] %v4123
      %4160 = vst [vmem:[#allocation2 + $0x68] sm:$0xff] %v4124
      %4161 = vst [vmem:[#allocation2 + $0x70] sm:$0xff] %v4125
      %4162 = vst [vmem:[#allocation2 + $0x78] sm:$0xff] %v4126
      %4163 = vst [vmem:[#allocation2 + $0x80] sm:$0xff] %v4127
      %4164 = vst [vmem:[#allocation2 + $0x88] sm:$0xff] %v4128
      %4165 = vst [vmem:[#allocation2 + $0x90] sm:$0xff] %v4129
      %4166 = vst [vmem:[#allocation2 + $0x98] sm:$0xff] %v4130
      %4167 = vst [vmem:[#allocation2 + $0xa0] sm:$0xff] %v4131
      %4168 = vst [vmem:[#allocation2 + $0xa8] sm:$0xff] %v4132
      %4169 = vst [vmem:[#allocation2 + $0xb0] sm:$0xff] %v4133
      %4170 = vst [vmem:[#allocation2 + $0xb8] sm:$0xff] %v4134
      %4171 = vst [vmem:[#allocation2 + $0xc0] sm:$0xff] %v4135
      %4172 = vst [vmem:[#allocation2 + $0xc8] sm:$0xff] %v4136
      %4173 = vst [vmem:[#allocation2 + $0xd0] sm:$0xff] %v4137
      %4174 = vst [vmem:[#allocation2 + $0xd8] sm:$0xff] %v4138
      %4175 = vst [vmem:[#allocation2 + $0xe0] sm:$0xff] %v4139
      %4176 = vst [vmem:[#allocation2 + $0xe8] sm:$0xff] %v4140
      %4177 = vst [vmem:[#allocation2 + $0xf0] sm:$0xff] %v4141
      %4178 = vst [vmem:[#allocation2 + $0xf8] sm:$0xff] %v4142
      %4179 = vst [vmem:[#allocation2 + $0x100] sm:$0xff] %v4143
      %4180 = vst [vmem:[#allocation2 + $0x108] sm:$0xff] %v4144
      %4181 = vst [vmem:[#allocation2 + $0x110] sm:$0xff] %v4145
      %4182 = vst [vmem:[#allocation2 + $0x118] sm:$0xff] %v4146
      %v4183 = vld [vmem:[%s206 + $0x10] sm:$0xc]
      %v4184 = vld [vmem:[%s206 + $0x14] sm:$0xf]
      %v4185 = vld [vmem:[%s206 + $0x18] sm:$0xf]
      %v4186 = vld [vmem:[%s206 + $0x1c] sm:$0xf]
      %v4187 = vld [vmem:[%s206 + $0x20] sm:$0xf]
      %v4188 = vld [vmem:[%s206 + $0x24] sm:$0xf]
      %v4189 = vld [vmem:[%s206 + $0x28] sm:$0xf]
      %v4190 = vld [vmem:[%s206 + $0x2c] sm:$0xf]
      %v4191 = vld [vmem:[%s206 + $0x30] sm:$0xf]
      %v4192 = vld [vmem:[%s206 + $0x34] sm:$0xf]
      %v4193 = vld [vmem:[%s206 + $0x38] sm:$0xf]
      %v4194 = vld [vmem:[%s206 + $0x3c] sm:$0xf]
      %v4195 = vld [vmem:[%s206 + $0x40] sm:$0xf]
      %v4196 = vld [vmem:[%s206 + $0x44] sm:$0xf]
      %v4197 = vld [vmem:[%s206 + $0x48] sm:$0xf]
      %v4198 = vld [vmem:[%s206 + $0x4c] sm:$0xf]
      %v4199 = vld [vmem:[%s206 + $0x50] sm:$0xf]
      %v4200 = vld [vmem:[%s206 + $0x54] sm:$0xf]
      %v4201 = vld [vmem:[%s206 + $0x58] sm:$0xf]
      %v4202 = vld [vmem:[%s206 + $0x5c] sm:$0xf]
      %v4203 = vld [vmem:[%s206 + $0x60] sm:$0xf]
      %v4204 = vld [vmem:[%s206 + $0x64] sm:$0xf]
      %v4205 = vld [vmem:[%s206 + $0x68] sm:$0xf]
      %v4206 = vld [vmem:[%s206 + $0x6c] sm:$0xf]
      %v4207 = vld [vmem:[%s206 + $0x70] sm:$0xf]
      %v4208 = vld [vmem:[%s206 + $0x74] sm:$0xf]
      %v4209 = vld [vmem:[%s206 + $0x78] sm:$0xf]
      %v4210 = vld [vmem:[%s206 + $0x7c] sm:$0xf]
      %v4211 = vld [vmem:[%s206 + $0x80] sm:$0xf]
      %v4212 = vld [vmem:[%s206 + $0x84] sm:$0xf]
      %v4213 = vld [vmem:[%s206 + $0x88] sm:$0xf]
      %v4214 = vld [vmem:[%s206 + $0x8c] sm:$0xf]
      %v4215 = vld [vmem:[%s206 + $0x90] sm:$0xf]
      %v4216 = vld [vmem:[%s206 + $0x94] sm:$0xf]
      %v4217 = vld [vmem:[%s206 + $0x98] sm:$0xf]
      %v4218 = vld [vmem:[%s206 + $0x9c] sm:$0xf]
      %v4219 = vld [vmem:[%s206 + $0xa0] sm:$0x7]
      %v4220 = vld [vmem:[#allocation2] sm:$0xff]
      %v4221 = vld [vmem:[#allocation2 + $0x8] sm:$0xff]
      %v4222 = vld [vmem:[#allocation2 + $0x10] sm:$0xff]
      %v4223 = vld [vmem:[#allocation2 + $0x18] sm:$0xff]
      %v4224 = vld [vmem:[#allocation2 + $0x20] sm:$0xff]
      %v4225 = vld [vmem:[#allocation2 + $0x28] sm:$0xff]
      %v4226 = vld [vmem:[#allocation2 + $0x30] sm:$0xff]
      %v4227 = vld [vmem:[#allocation2 + $0x38] sm:$0xff]
      %v4228 = vld [vmem:[#allocation2 + $0x40] sm:$0xff]
      %v4229 = vld [vmem:[#allocation2 + $0x48] sm:$0xff]
      %v4230 = vld [vmem:[#allocation2 + $0x50] sm:$0xff]
      %v4231 = vld [vmem:[#allocation2 + $0x58] sm:$0xff]
      %v4232 = vld [vmem:[#allocation2 + $0x60] sm:$0xff]
      %v4233 = vld [vmem:[#allocation2 + $0x68] sm:$0xff]
      %v4234 = vld [vmem:[#allocation2 + $0x70] sm:$0xff]
      %v4235 = vld [vmem:[#allocation2 + $0x78] sm:$0xff]
      %v4236 = vld [vmem:[#allocation2 + $0x80] sm:$0xff]
      %v4237 = vld [vmem:[#allocation2 + $0x88] sm:$0xff]
      %v4238 = vld [vmem:[#allocation2 + $0x90] sm:$0xff]
      %v4239 = vld [vmem:[#allocation2 + $0x98] sm:$0xff]
      %v4240 = vld [vmem:[#allocation2 + $0xa0] sm:$0xff]
      %v4241 = vld [vmem:[#allocation2 + $0xa8] sm:$0xff]
      %v4242 = vld [vmem:[#allocation2 + $0xb0] sm:$0xff]
      %v4243 = vld [vmem:[#allocation2 + $0xb8] sm:$0xff]
      %v4244 = vld [vmem:[#allocation2 + $0xc0] sm:$0xff]
      %v4245 = vld [vmem:[#allocation2 + $0xc8] sm:$0xff]
      %v4246 = vld [vmem:[#allocation2 + $0xd0] sm:$0xff]
      %v4247 = vld [vmem:[#allocation2 + $0xd8] sm:$0xff]
      %v4248 = vld [vmem:[#allocation2 + $0xe0] sm:$0xff]
      %v4249 = vld [vmem:[#allocation2 + $0xe8] sm:$0xff]
      %v4250 = vld [vmem:[#allocation2 + $0xf0] sm:$0xff]
      %v4251 = vld [vmem:[#allocation2 + $0xf8] sm:$0xff]
      %v4252 = vld [vmem:[#allocation2 + $0x100] sm:$0xff]
      %v4253 = vld [vmem:[#allocation2 + $0x108] sm:$0xff]
      %v4254 = vld [vmem:[#allocation2 + $0x110] sm:$0xff]
      %v4255 = vld [vmem:[#allocation2 + $0x118] sm:$0xff]
      %s4256 = scalar_lea.vmem %s210, 168
      %v4257 = vld [vmem:[%s4256] sm:$0xf]
      %v4258 = vld [vmem:[%s4256 + $0x4] sm:$0xf]
      %v4259 = vld [vmem:[%s4256 + $0x8] sm:$0xf]
      %v4260 = vld [vmem:[%s4256 + $0xc] sm:$0xf]
      %v4261 = vld [vmem:[%s4256 + $0x10] sm:$0xf]
      %v4262 = vld [vmem:[%s4256 + $0x14] sm:$0xf]
      %v4300 = vunpack.c.l.b16 %v4183
      %v4301 = vunpack.c.l.b16 %v4184
      %v4302 = vunpack.c.l.b16 %v4185
      %v4303 = vunpack.c.l.b16 %v4186
      %v4304 = vunpack.c.l.b16 %v4187
      %v4305 = vunpack.c.l.b16 %v4188
      %v4306 = vunpack.c.l.b16 %v4189
      %v4307 = vunpack.c.l.b16 %v4190
      %v4308 = vunpack.c.l.b16 %v4191
      %v4309 = vunpack.c.l.b16 %v4192
      %v4310 = vunpack.c.l.b16 %v4193
      %v4311 = vunpack.c.l.b16 %v4194
      %v4312 = vunpack.c.l.b16 %v4195
      %v4313 = vunpack.c.l.b16 %v4196
      %v4314 = vunpack.c.l.b16 %v4197
      %v4315 = vunpack.c.l.b16 %v4198
      %v4316 = vunpack.c.l.b16 %v4199
      %v4317 = vunpack.c.l.b16 %v4200
      %v4318 = vunpack.c.l.b16 %v4201
      %v4319 = vunpack.c.l.b16 %v4202
      %v4320 = vunpack.c.l.b16 %v4203
      %v4321 = vunpack.c.l.b16 %v4204
      %v4322 = vunpack.c.l.b16 %v4205
      %v4323 = vunpack.c.l.b16 %v4206
      %v4324 = vunpack.c.l.b16 %v4207
      %v4325 = vunpack.c.l.b16 %v4208
      %v4326 = vunpack.c.l.b16 %v4209
      %v4327 = vunpack.c.l.b16 %v4210
      %v4328 = vunpack.c.l.b16 %v4211
      %v4329 = vunpack.c.l.b16 %v4212
      %v4330 = vunpack.c.l.b16 %v4213
      %v4331 = vunpack.c.l.b16 %v4214
      %v4332 = vunpack.c.l.b16 %v4215
      %v4333 = vunpack.c.l.b16 %v4216
      %v4334 = vunpack.c.l.b16 %v4217
      %v4335 = vunpack.c.l.b16 %v4218
      %v4336 = vunpack.c.l.b16 %v4219
      %v4337 = vpack.c.b16 %v4301, %v4300
      %v4338 = vpack.c.b16 %v4303, %v4302
      %v4339 = vpack.c.b16 %v4305, %v4304
      %v4340 = vpack.c.b16 %v4307, %v4306
      %v4341 = vpack.c.b16 %v4309, %v4308
      %v4342 = vpack.c.b16 %v4311, %v4310
      %v4343 = vpack.c.b16 %v4313, %v4312
      %v4344 = vpack.c.b16 %v4315, %v4314
      %v4345 = vpack.c.b16 %v4317, %v4316
      %v4346 = vpack.c.b16 %v4319, %v4318
      %v4347 = vpack.c.b16 %v4321, %v4320
      %v4348 = vpack.c.b16 %v4323, %v4322
      %v4349 = vpack.c.b16 %v4325, %v4324
      %v4350 = vpack.c.b16 %v4327, %v4326
      %v4351 = vpack.c.b16 %v4329, %v4328
      %v4352 = vpack.c.b16 %v4331, %v4330
      %v4353 = vpack.c.b16 %v4333, %v4332
      %v4354 = vpack.c.b16 %v4335, %v4334
      %v4355 = vpack.c.b16 %v4336, %v4336
      %vm4356 = vsmask.f32 5376
      %v4358 = vshrl.u32 %v4337, 16
      %v4360 = vrot.slane %v4358, 2
      %v4361 = vshll.u32 %v4337, 16
      %v4363 = vrot.slane %v4361, 3
      %v4364 = vor.u32 %v4360, %v4363
      %v4366 = vshrl.u32 %v4338, 16
      %v4368 = vrot.slane %v4366, 2
      %v4369 = vshll.u32 %v4338, 16
      %v4371 = vrot.slane %v4369, 3
      %v4372 = vor.u32 %v4368, %v4371
      %v4373 = vsel %vm4356, %v4364, %v4372
      %v4375 = vshrl.u32 %v4339, 16
      %v4377 = vrot.slane %v4375, 2
      %v4378 = vshll.u32 %v4339, 16
      %v4380 = vrot.slane %v4378, 3
      %v4381 = vor.u32 %v4377, %v4380
      %v4382 = vsel %vm4356, %v4372, %v4381
      %v4384 = vshrl.u32 %v4340, 16
      %v4386 = vrot.slane %v4384, 2
      %v4387 = vshll.u32 %v4340, 16
      %v4389 = vrot.slane %v4387, 3
      %v4390 = vor.u32 %v4386, %v4389
      %v4391 = vsel %vm4356, %v4381, %v4390
      %v4393 = vshrl.u32 %v4341, 16
      %v4395 = vrot.slane %v4393, 2
      %v4396 = vshll.u32 %v4341, 16
      %v4398 = vrot.slane %v4396, 3
      %v4399 = vor.u32 %v4395, %v4398
      %v4400 = vsel %vm4356, %v4390, %v4399
      %v4402 = vshrl.u32 %v4342, 16
      %v4404 = vrot.slane %v4402, 2
      %v4405 = vshll.u32 %v4342, 16
      %v4407 = vrot.slane %v4405, 3
      %v4408 = vor.u32 %v4404, %v4407
      %v4409 = vsel %vm4356, %v4399, %v4408
      %v4411 = vshrl.u32 %v4343, 16
      %v4413 = vrot.slane %v4411, 2
      %v4414 = vshll.u32 %v4343, 16
      %v4416 = vrot.slane %v4414, 3
      %v4417 = vor.u32 %v4413, %v4416
      %v4418 = vsel %vm4356, %v4408, %v4417
      %v4420 = vshrl.u32 %v4344, 16
      %v4422 = vrot.slane %v4420, 2
      %v4423 = vshll.u32 %v4344, 16
      %v4425 = vrot.slane %v4423, 3
      %v4426 = vor.u32 %v4422, %v4425
      %v4427 = vsel %vm4356, %v4417, %v4426
      %v4429 = vshrl.u32 %v4345, 16
      %v4431 = vrot.slane %v4429, 2
      %v4432 = vshll.u32 %v4345, 16
      %v4434 = vrot.slane %v4432, 3
      %v4435 = vor.u32 %v4431, %v4434
      %v4436 = vsel %vm4356, %v4426, %v4435
      %v4438 = vshrl.u32 %v4346, 16
      %v4440 = vrot.slane %v4438, 2
      %v4441 = vshll.u32 %v4346, 16
      %v4443 = vrot.slane %v4441, 3
      %v4444 = vor.u32 %v4440, %v4443
      %v4445 = vsel %vm4356, %v4435, %v4444
      %v4447 = vshrl.u32 %v4347, 16
      %v4449 = vrot.slane %v4447, 2
      %v4450 = vshll.u32 %v4347, 16
      %v4452 = vrot.slane %v4450, 3
      %v4453 = vor.u32 %v4449, %v4452
      %v4454 = vsel %vm4356, %v4444, %v4453
      %v4456 = vshrl.u32 %v4348, 16
      %v4458 = vrot.slane %v4456, 2
      %v4459 = vshll.u32 %v4348, 16
      %v4461 = vrot.slane %v4459, 3
      %v4462 = vor.u32 %v4458, %v4461
      %v4463 = vsel %vm4356, %v4453, %v4462
      %v4465 = vshrl.u32 %v4349, 16
      %v4467 = vrot.slane %v4465, 2
      %v4468 = vshll.u32 %v4349, 16
      %v4470 = vrot.slane %v4468, 3
      %v4471 = vor.u32 %v4467, %v4470
      %v4472 = vsel %vm4356, %v4462, %v4471
      %v4474 = vshrl.u32 %v4350, 16
      %v4476 = vrot.slane %v4474, 2
      %v4477 = vshll.u32 %v4350, 16
      %v4479 = vrot.slane %v4477, 3
      %v4480 = vor.u32 %v4476, %v4479
      %v4481 = vsel %vm4356, %v4471, %v4480
      %v4483 = vshrl.u32 %v4351, 16
      %v4485 = vrot.slane %v4483, 2
      %v4486 = vshll.u32 %v4351, 16
      %v4488 = vrot.slane %v4486, 3
      %v4489 = vor.u32 %v4485, %v4488
      %v4490 = vsel %vm4356, %v4480, %v4489
      %v4492 = vshrl.u32 %v4352, 16
      %v4494 = vrot.slane %v4492, 2
      %v4495 = vshll.u32 %v4352, 16
      %v4497 = vrot.slane %v4495, 3
      %v4498 = vor.u32 %v4494, %v4497
      %v4499 = vsel %vm4356, %v4489, %v4498
      %v4501 = vshrl.u32 %v4353, 16
      %v4503 = vrot.slane %v4501, 2
      %v4504 = vshll.u32 %v4353, 16
      %v4506 = vrot.slane %v4504, 3
      %v4507 = vor.u32 %v4503, %v4506
      %v4508 = vsel %vm4356, %v4498, %v4507
      %v4510 = vshrl.u32 %v4354, 16
      %v4512 = vrot.slane %v4510, 2
      %v4513 = vshll.u32 %v4354, 16
      %v4515 = vrot.slane %v4513, 3
      %v4516 = vor.u32 %v4512, %v4515
      %v4517 = vsel %vm4356, %v4507, %v4516
      %v4519 = vshrl.u32 %v4355, 16
      %v4521 = vrot.slane %v4519, 2
      %v4522 = vshll.u32 %v4355, 16
      %v4524 = vrot.slane %v4522, 3
      %v4525 = vor.u32 %v4521, %v4524
      %v4526 = vsel %vm4356, %v4516, %v4525
      %v4533 = vunpack.c.l.b16 %v4257
      %v4534 = vunpack.c.l.b16 %v4258
      %v4535 = vunpack.c.l.b16 %v4259
      %v4536 = vunpack.c.l.b16 %v4260
      %v4537 = vunpack.c.l.b16 %v4261
      %v4538 = vunpack.c.l.b16 %v4262
      %v4539 = vpack.c.b16 %v4534, %v4533
      %v4540 = vpack.c.b16 %v4536, %v4535
      %v4541 = vpack.c.b16 %v4538, %v4537
      %v4546 = vsel %vm445, %v4373, 0
      %v4549 = vsel %vm445, %v4382, 0
      %v4552 = vsel %vm445, %v4391, 0
      %v4555 = vsel %vm445, %v4400, 0
      %v4558 = vsel %vm445, %v4409, 0
      %v4561 = vsel %vm445, %v4418, 0
      %v4564 = vsel %vm445, %v4427, 0
      %v4567 = vsel %vm445, %v4436, 0
      %v4570 = vsel %vm445, %v4445, 0
      %v4573 = vsel %vm445, %v4454, 0
      %v4576 = vsel %vm445, %v4463, 0
      %v4579 = vsel %vm445, %v4472, 0
      %v4582 = vsel %vm445, %v4481, 0
      %v4585 = vsel %vm445, %v4490, 0
      %v4588 = vsel %vm445, %v4499, 0
      %v4591 = vsel %vm445, %v4508, 0
      %v4594 = vsel %vm445, %v4517, 0
      %v4597 = vsel %vm445, %v4526, 0
      %4599 = vmatprep.subr.bf16.mxu0 0
      %4600 = vmatpush1.bf16.msra.mxu0 %v4539
      %4601 = vmatprep.subr.bf16.mxu0 0
      %4602 = vmatpush1.bf16.msra.mxu0 %v4540
      %4603 = vmatprep.subr.bf16.mxu0 0
      %4604 = vmatpush1.bf16.msra.mxu0 %v4541
      %4605 = vmatprep.subr.bf16.mxu0 0
      %4606 = vmatpush1.bf16.msra.mxu0 0
      %4607 = vmatprep.subr.bf16.mxu0 0
      %4608 = vmatpush1.bf16.msra.mxu0 0
      %4609 = vmatprep.subr.bf16.mxu0 0
      %4610 = vmatpush1.bf16.msra.mxu0 0
      %4611 = vmatprep.subr.bf16.mxu0 0
      %4612 = vmatpush1.bf16.msra.mxu0 0
      %4613 = vmatprep.subr.bf16.mxu0 0
      %4614 = vmatpush1.bf16.msra.mxu0 0
      %4615 = vmatprep.subr.bf16.mxu0 0
      %4616 = vmatpush1.bf16.msra.mxu0 0
      %4617 = vmatprep.subr.bf16.mxu0 0
      %4618 = vmatpush1.bf16.msra.mxu0 0
      %4619 = vmatprep.subr.bf16.mxu0 0
      %4620 = vmatpush1.bf16.msra.mxu0 0
      %4621 = vmatprep.subr.bf16.mxu0 0
      %4622 = vmatpush1.bf16.msra.mxu0 0
      %4623 = vmatprep.subr.bf16.mxu0 0
      %4624 = vmatpush1.bf16.msra.mxu0 0
      %4625 = vmatprep.subr.bf16.mxu0 0
      %4626 = vmatpush1.bf16.msra.mxu0 0
      %4627 = vmatprep.subr.bf16.mxu0 0
      %4628 = vmatpush1.bf16.msra.mxu0 0
      %4629 = vmatprep.subr.bf16.mxu0 0
      %4630 = vmatpush1.bf16.msra.mxu0 0
      %4631 = vmatprep.mubr.bf16.mxu0 0
      %4632 = vmatmul.mubr.bf16.gmra.mrb[0].mxu0 %v4546
      %v4633 = vpop.f32.mrb[0].mxu0
      %v4634 = vadd.f32 0.0, %v4633
      %v4635 = vpop.f32.mrb[0].mxu0
      %v4636 = vpop.f32.mrb[0].mxu0
      %v4637 = vadd.f32 0.0, %v4636
      %v4638 = vpop.f32.mrb[0].mxu0
      %4639 = vmatprep.mubr.bf16.mxu0 0
      %4640 = vmatmul.mubr.bf16.gmra.mrb[0].mxu0 %v4549
      %v4641 = vpop.f32.mrb[0].mxu0
      %v4642 = vadd.f32 0.0, %v4641
      %v4643 = vpop.f32.mrb[0].mxu0
      %v4644 = vpop.f32.mrb[0].mxu0
      %v4645 = vadd.f32 0.0, %v4644
      %v4646 = vpop.f32.mrb[0].mxu0
      %4647 = vmatprep.mubr.bf16.mxu0 0
      %4648 = vmatmul.mubr.bf16.gmra.mrb[0].mxu0 %v4552
      %v4649 = vpop.f32.mrb[0].mxu0
      %v4650 = vadd.f32 0.0, %v4649
      %v4651 = vpop.f32.mrb[0].mxu0
      %v4652 = vpop.f32.mrb[0].mxu0
      %v4653 = vadd.f32 0.0, %v4652
      %v4654 = vpop.f32.mrb[0].mxu0
      %4655 = vmatprep.mubr.bf16.mxu0 0
      %4656 = vmatmul.mubr.bf16.gmra.mrb[0].mxu0 %v4555
      %v4657 = vpop.f32.mrb[0].mxu0
      %v4658 = vadd.f32 0.0, %v4657
      %v4659 = vpop.f32.mrb[0].mxu0
      %v4660 = vpop.f32.mrb[0].mxu0
      %v4661 = vadd.f32 0.0, %v4660
      %v4662 = vpop.f32.mrb[0].mxu0
      %4663 = vmatprep.mubr.bf16.mxu0 0
      %4664 = vmatmul.mubr.bf16.gmra.mrb[0].mxu0 %v4558
      %v4665 = vpop.f32.mrb[0].mxu0
      %v4666 = vadd.f32 0.0, %v4665
      %v4667 = vpop.f32.mrb[0].mxu0
      %v4668 = vpop.f32.mrb[0].mxu0
      %v4669 = vadd.f32 0.0, %v4668
      %v4670 = vpop.f32.mrb[0].mxu0
      %4671 = vmatprep.mubr.bf16.mxu0 0
      %4672 = vmatmul.mubr.bf16.gmra.mrb[0].mxu0 %v4561
      %v4673 = vpop.f32.mrb[0].mxu0
      %v4674 = vadd.f32 0.0, %v4673
      %v4675 = vpop.f32.mrb[0].mxu0
      %v4676 = vpop.f32.mrb[0].mxu0
      %v4677 = vadd.f32 0.0, %v4676
      %v4678 = vpop.f32.mrb[0].mxu0
      %4679 = vmatprep.mubr.bf16.mxu0 0
      %4680 = vmatmul.mubr.bf16.gmra.mrb[0].mxu0 %v4564
      %v4681 = vpop.f32.mrb[0].mxu0
      %v4682 = vadd.f32 0.0, %v4681
      %v4683 = vpop.f32.mrb[0].mxu0
      %v4684 = vpop.f32.mrb[0].mxu0
      %v4685 = vadd.f32 0.0, %v4684
      %v4686 = vpop.f32.mrb[0].mxu0
      %4687 = vmatprep.mubr.bf16.mxu0 0
      %4688 = vmatmul.mubr.bf16.gmra.mrb[0].mxu0 %v4567
      %v4689 = vpop.f32.mrb[0].mxu0
      %v4690 = vadd.f32 0.0, %v4689
      %v4691 = vpop.f32.mrb[0].mxu0
      %v4692 = vpop.f32.mrb[0].mxu0
      %v4693 = vadd.f32 0.0, %v4692
      %v4694 = vpop.f32.mrb[0].mxu0
      %4695 = vmatprep.mubr.bf16.mxu0 0
      %4696 = vmatmul.mubr.bf16.gmra.mrb[0].mxu0 %v4570
      %v4697 = vpop.f32.mrb[0].mxu0
      %v4698 = vadd.f32 0.0, %v4697
      %v4699 = vpop.f32.mrb[0].mxu0
      %v4700 = vpop.f32.mrb[0].mxu0
      %v4701 = vadd.f32 0.0, %v4700
      %v4702 = vpop.f32.mrb[0].mxu0
      %4703 = vmatprep.mubr.bf16.mxu0 0
      %4704 = vmatmul.mubr.bf16.gmra.mrb[0].mxu0 %v4573
      %v4705 = vpop.f32.mrb[0].mxu0
      %v4706 = vadd.f32 0.0, %v4705
      %v4707 = vpop.f32.mrb[0].mxu0
      %v4708 = vpop.f32.mrb[0].mxu0
      %v4709 = vadd.f32 0.0, %v4708
      %v4710 = vpop.f32.mrb[0].mxu0
      %4711 = vmatprep.mubr.bf16.mxu0 0
      %4712 = vmatmul.mubr.bf16.gmra.mrb[0].mxu0 %v4576
      %v4713 = vpop.f32.mrb[0].mxu0
      %v4714 = vadd.f32 0.0, %v4713
      %v4715 = vpop.f32.mrb[0].mxu0
      %v4716 = vpop.f32.mrb[0].mxu0
      %v4717 = vadd.f32 0.0, %v4716
      %v4718 = vpop.f32.mrb[0].mxu0
      %4719 = vmatprep.mubr.bf16.mxu0 0
      %4720 = vmatmul.mubr.bf16.gmra.mrb[0].mxu0 %v4579
      %v4721 = vpop.f32.mrb[0].mxu0
      %v4722 = vadd.f32 0.0, %v4721
      %v4723 = vpop.f32.mrb[0].mxu0
      %v4724 = vpop.f32.mrb[0].mxu0
      %v4725 = vadd.f32 0.0, %v4724
      %v4726 = vpop.f32.mrb[0].mxu0
      %4727 = vmatprep.mubr.bf16.mxu0 0
      %4728 = vmatmul.mubr.bf16.gmra.mrb[0].mxu0 %v4582
      %v4729 = vpop.f32.mrb[0].mxu0
      %v4730 = vadd.f32 0.0, %v4729
      %v4731 = vpop.f32.mrb[0].mxu0
      %v4732 = vpop.f32.mrb[0].mxu0
      %v4733 = vadd.f32 0.0, %v4732
      %v4734 = vpop.f32.mrb[0].mxu0
      %4735 = vmatprep.mubr.bf16.mxu0 0
      %4736 = vmatmul.mubr.bf16.gmra.mrb[0].mxu0 %v4585
      %v4737 = vpop.f32.mrb[0].mxu0
      %v4738 = vadd.f32 0.0, %v4737
      %v4739 = vpop.f32.mrb[0].mxu0
      %v4740 = vpop.f32.mrb[0].mxu0
      %v4741 = vadd.f32 0.0, %v4740
      %v4742 = vpop.f32.mrb[0].mxu0
      %4743 = vmatprep.mubr.bf16.mxu0 0
      %4744 = vmatmul.mubr.bf16.gmra.mrb[0].mxu0 %v4588
      %v4745 = vpop.f32.mrb[0].mxu0
      %v4746 = vadd.f32 0.0, %v4745
      %v4747 = vpop.f32.mrb[0].mxu0
      %v4748 = vpop.f32.mrb[0].mxu0
      %v4749 = vadd.f32 0.0, %v4748
      %v4750 = vpop.f32.mrb[0].mxu0
      %4751 = vmatprep.mubr.bf16.mxu0 0
      %4752 = vmatmul.mubr.bf16.gmra.mrb[0].mxu0 %v4591
      %v4753 = vpop.f32.mrb[0].mxu0
      %v4754 = vadd.f32 0.0, %v4753
      %v4755 = vpop.f32.mrb[0].mxu0
      %v4756 = vpop.f32.mrb[0].mxu0
      %v4757 = vadd.f32 0.0, %v4756
      %v4758 = vpop.f32.mrb[0].mxu0
      %4759 = vmatprep.mubr.bf16.mxu0 0
      %4760 = vmatmul.mubr.bf16.gmra.mrb[0].mxu0 %v4594
      %v4761 = vpop.f32.mrb[0].mxu0
      %v4762 = vadd.f32 0.0, %v4761
      %v4763 = vpop.f32.mrb[0].mxu0
      %v4764 = vpop.f32.mrb[0].mxu0
      %v4765 = vadd.f32 0.0, %v4764
      %v4766 = vpop.f32.mrb[0].mxu0
      %4767 = vmatprep.mubr.bf16.mxu0 0
      %4768 = vmatmul.mubr.bf16.gmra.mrb[0].mxu0 %v4597
      %v4769 = vpop.f32.mrb[0].mxu0
      %v4770 = vadd.f32 0.0, %v4769
      %v4771 = vpop.f32.mrb[0].mxu0
      %v4772 = vpop.f32.mrb[0].mxu0
      %v4773 = vadd.f32 0.0, %v4772
      %v4774 = vpop.f32.mrb[0].mxu0
      %4775 = vdwg.mxu0
      %v4776 = vadd.f32 %v4220, %v4634
      %v4777 = vadd.f32 %v4221, %v4637
      %v4778 = vadd.f32 %v4222, %v4642
      %v4779 = vadd.f32 %v4223, %v4645
      %v4780 = vadd.f32 %v4224, %v4650
      %v4781 = vadd.f32 %v4225, %v4653
      %v4782 = vadd.f32 %v4226, %v4658
      %v4783 = vadd.f32 %v4227, %v4661
      %v4784 = vadd.f32 %v4228, %v4666
      %v4785 = vadd.f32 %v4229, %v4669
      %v4786 = vadd.f32 %v4230, %v4674
      %v4787 = vadd.f32 %v4231, %v4677
      %v4788 = vadd.f32 %v4232, %v4682
      %v4789 = vadd.f32 %v4233, %v4685
      %v4790 = vadd.f32 %v4234, %v4690
      %v4791 = vadd.f32 %v4235, %v4693
      %v4792 = vadd.f32 %v4236, %v4698
      %v4793 = vadd.f32 %v4237, %v4701
      %v4794 = vadd.f32 %v4238, %v4706
      %v4795 = vadd.f32 %v4239, %v4709
      %v4796 = vadd.f32 %v4240, %v4714
      %v4797 = vadd.f32 %v4241, %v4717
      %v4798 = vadd.f32 %v4242, %v4722
      %v4799 = vadd.f32 %v4243, %v4725
      %v4800 = vadd.f32 %v4244, %v4730
      %v4801 = vadd.f32 %v4245, %v4733
      %v4802 = vadd.f32 %v4246, %v4738
      %v4803 = vadd.f32 %v4247, %v4741
      %v4804 = vadd.f32 %v4248, %v4746
      %v4805 = vadd.f32 %v4249, %v4749
      %v4806 = vadd.f32 %v4250, %v4754
      %v4807 = vadd.f32 %v4251, %v4757
      %v4808 = vadd.f32 %v4252, %v4762
      %v4809 = vadd.f32 %v4253, %v4765
      %v4810 = vadd.f32 %v4254, %v4770
      %v4811 = vadd.f32 %v4255, %v4773
      %4812 = vst [vmem:[#allocation2] sm:$0xff] %v4776
      %4813 = vst [vmem:[#allocation2 + $0x8] sm:$0xff] %v4777
      %4814 = vst [vmem:[#allocation2 + $0x10] sm:$0xff] %v4778
      %4815 = vst [vmem:[#allocation2 + $0x18] sm:$0xff] %v4779
      %4816 = vst [vmem:[#allocation2 + $0x20] sm:$0xff] %v4780
      %4817 = vst [vmem:[#allocation2 + $0x28] sm:$0xff] %v4781
      %4818 = vst [vmem:[#allocation2 + $0x30] sm:$0xff] %v4782
      %4819 = vst [vmem:[#allocation2 + $0x38] sm:$0xff] %v4783
      %4820 = vst [vmem:[#allocation2 + $0x40] sm:$0xff] %v4784
      %4821 = vst [vmem:[#allocation2 + $0x48] sm:$0xff] %v4785
      %4822 = vst [vmem:[#allocation2 + $0x50] sm:$0xff] %v4786
      %4823 = vst [vmem:[#allocation2 + $0x58] sm:$0xff] %v4787
      %4824 = vst [vmem:[#allocation2 + $0x60] sm:$0xff] %v4788
      %4825 = vst [vmem:[#allocation2 + $0x68] sm:$0xff] %v4789
      %4826 = vst [vmem:[#allocation2 + $0x70] sm:$0xff] %v4790
      %4827 = vst [vmem:[#allocation2 + $0x78] sm:$0xff] %v4791
      %4828 = vst [vmem:[#allocation2 + $0x80] sm:$0xff] %v4792
      %4829 = vst [vmem:[#allocation2 + $0x88] sm:$0xff] %v4793
      %4830 = vst [vmem:[#allocation2 + $0x90] sm:$0xff] %v4794
      %4831 = vst [vmem:[#allocation2 + $0x98] sm:$0xff] %v4795
      %4832 = vst [vmem:[#allocation2 + $0xa0] sm:$0xff] %v4796
      %4833 = vst [vmem:[#allocation2 + $0xa8] sm:$0xff] %v4797
      %4834 = vst [vmem:[#allocation2 + $0xb0] sm:$0xff] %v4798
      %4835 = vst [vmem:[#allocation2 + $0xb8] sm:$0xff] %v4799
      %4836 = vst [vmem:[#allocation2 + $0xc0] sm:$0xff] %v4800
      %4837 = vst [vmem:[#allocation2 + $0xc8] sm:$0xff] %v4801
      %4838 = vst [vmem:[#allocation2 + $0xd0] sm:$0xff] %v4802
      %4839 = vst [vmem:[#allocation2 + $0xd8] sm:$0xff] %v4803
      %4840 = vst [vmem:[#allocation2 + $0xe0] sm:$0xff] %v4804
      %4841 = vst [vmem:[#allocation2 + $0xe8] sm:$0xff] %v4805
      %4842 = vst [vmem:[#allocation2 + $0xf0] sm:$0xff] %v4806
      %4843 = vst [vmem:[#allocation2 + $0xf8] sm:$0xff] %v4807
      %4844 = vst [vmem:[#allocation2 + $0x100] sm:$0xff] %v4808
      %4845 = vst [vmem:[#allocation2 + $0x108] sm:$0xff] %v4809
      %4846 = vst [vmem:[#allocation2 + $0x110] sm:$0xff] %v4810
      %4847 = vst [vmem:[#allocation2 + $0x118] sm:$0xff] %v4811
      %v4848 = vld [vmem:[%s206 + $0x10] sm:$0x8]
      %v4849 = vld [vmem:[%s206 + $0x14] sm:$0xf]
      %v4850 = vld [vmem:[%s206 + $0x18] sm:$0xf]
      %v4851 = vld [vmem:[%s206 + $0x1c] sm:$0xf]
      %v4852 = vld [vmem:[%s206 + $0x20] sm:$0xf]
      %v4853 = vld [vmem:[%s206 + $0x24] sm:$0xf]
      %v4854 = vld [vmem:[%s206 + $0x28] sm:$0xf]
      %v4855 = vld [vmem:[%s206 + $0x2c] sm:$0xf]
      %v4856 = vld [vmem:[%s206 + $0x30] sm:$0xf]
      %v4857 = vld [vmem:[%s206 + $0x34] sm:$0xf]
      %v4858 = vld [vmem:[%s206 + $0x38] sm:$0xf]
      %v4859 = vld [vmem:[%s206 + $0x3c] sm:$0xf]
      %v4860 = vld [vmem:[%s206 + $0x40] sm:$0xf]
      %v4861 = vld [vmem:[%s206 + $0x44] sm:$0xf]
      %v4862 = vld [vmem:[%s206 + $0x48] sm:$0xf]
      %v4863 = vld [vmem:[%s206 + $0x4c] sm:$0xf]
      %v4864 = vld [vmem:[%s206 + $0x50] sm:$0xf]
      %v4865 = vld [vmem:[%s206 + $0x54] sm:$0xf]
      %v4866 = vld [vmem:[%s206 + $0x58] sm:$0xf]
      %v4867 = vld [vmem:[%s206 + $0x5c] sm:$0xf]
      %v4868 = vld [vmem:[%s206 + $0x60] sm:$0xf]
      %v4869 = vld [vmem:[%s206 + $0x64] sm:$0xf]
      %v4870 = vld [vmem:[%s206 + $0x68] sm:$0xf]
      %v4871 = vld [vmem:[%s206 + $0x6c] sm:$0xf]
      %v4872 = vld [vmem:[%s206 + $0x70] sm:$0xf]
      %v4873 = vld [vmem:[%s206 + $0x74] sm:$0xf]
      %v4874 = vld [vmem:[%s206 + $0x78] sm:$0xf]
      %v4875 = vld [vmem:[%s206 + $0x7c] sm:$0xf]
      %v4876 = vld [vmem:[%s206 + $0x80] sm:$0xf]
      %v4877 = vld [vmem:[%s206 + $0x84] sm:$0xf]
      %v4878 = vld [vmem:[%s206 + $0x88] sm:$0xf]
      %v4879 = vld [vmem:[%s206 + $0x8c] sm:$0xf]
      %v4880 = vld [vmem:[%s206 + $0x90] sm:$0xf]
      %v4881 = vld [vmem:[%s206 + $0x94] sm:$0xf]
      %v4882 = vld [vmem:[%s206 + $0x98] sm:$0xf]
      %v4883 = vld [vmem:[%s206 + $0x9c] sm:$0xf]
      %v4884 = vld [vmem:[%s206 + $0xa0] sm:$0x7]
      %v4885 = vld [vmem:[#allocation2] sm:$0xff]
      %v4886 = vld [vmem:[#allocation2 + $0x8] sm:$0xff]
      %v4887 = vld [vmem:[#allocation2 + $0x10] sm:$0xff]
      %v4888 = vld [vmem:[#allocation2 + $0x18] sm:$0xff]
      %v4889 = vld [vmem:[#allocation2 + $0x20] sm:$0xff]
      %v4890 = vld [vmem:[#allocation2 + $0x28] sm:$0xff]
      %v4891 = vld [vmem:[#allocation2 + $0x30] sm:$0xff]
      %v4892 = vld [vmem:[#allocation2 + $0x38] sm:$0xff]
      %v4893 = vld [vmem:[#allocation2 + $0x40] sm:$0xff]
      %v4894 = vld [vmem:[#allocation2 + $0x48] sm:$0xff]
      %v4895 = vld [vmem:[#allocation2 + $0x50] sm:$0xff]
      %v4896 = vld [vmem:[#allocation2 + $0x58] sm:$0xff]
      %v4897 = vld [vmem:[#allocation2 + $0x60] sm:$0xff]
      %v4898 = vld [vmem:[#allocation2 + $0x68] sm:$0xff]
      %v4899 = vld [vmem:[#allocation2 + $0x70] sm:$0xff]
      %v4900 = vld [vmem:[#allocation2 + $0x78] sm:$0xff]
      %v4901 = vld [vmem:[#allocation2 + $0x80] sm:$0xff]
      %v4902 = vld [vmem:[#allocation2 + $0x88] sm:$0xff]
      %v4903 = vld [vmem:[#allocation2 + $0x90] sm:$0xff]
      %v4904 = vld [vmem:[#allocation2 + $0x98] sm:$0xff]
      %v4905 = vld [vmem:[#allocation2 + $0xa0] sm:$0xff]
      %v4906 = vld [vmem:[#allocation2 + $0xa8] sm:$0xff]
      %v4907 = vld [vmem:[#allocation2 + $0xb0] sm:$0xff]
      %v4908 = vld [vmem:[#allocation2 + $0xb8] sm:$0xff]
      %v4909 = vld [vmem:[#allocation2 + $0xc0] sm:$0xff]
      %v4910 = vld [vmem:[#allocation2 + $0xc8] sm:$0xff]
      %v4911 = vld [vmem:[#allocation2 + $0xd0] sm:$0xff]
      %v4912 = vld [vmem:[#allocation2 + $0xd8] sm:$0xff]
      %v4913 = vld [vmem:[#allocation2 + $0xe0] sm:$0xff]
      %v4914 = vld [vmem:[#allocation2 + $0xe8] sm:$0xff]
      %v4915 = vld [vmem:[#allocation2 + $0xf0] sm:$0xff]
      %v4916 = vld [vmem:[#allocation2 + $0xf8] sm:$0xff]
      %v4917 = vld [vmem:[#allocation2 + $0x100] sm:$0xff]
      %v4918 = vld [vmem:[#allocation2 + $0x108] sm:$0xff]
      %v4919 = vld [vmem:[#allocation2 + $0x110] sm:$0xff]
      %v4920 = vld [vmem:[#allocation2 + $0x118] sm:$0xff]
      %s4921 = scalar_lea.vmem %s210, 192
      %v4922 = vld [vmem:[%s4921] sm:$0xf]
      %v4923 = vld [vmem:[%s4921 + $0x4] sm:$0xf]
      %v4924 = vld [vmem:[%s4921 + $0x8] sm:$0xf]
      %v4925 = vld [vmem:[%s4921 + $0xc] sm:$0xf]
      %v4926 = vld [vmem:[%s4921 + $0x10] sm:$0xf]
      %v4927 = vld [vmem:[%s4921 + $0x14] sm:$0xf]
      %v4965 = vunpack.c.l.b16 %v4848
      %v4966 = vunpack.c.l.b16 %v4849
      %v4967 = vunpack.c.l.b16 %v4850
      %v4968 = vunpack.c.l.b16 %v4851
      %v4969 = vunpack.c.l.b16 %v4852
      %v4970 = vunpack.c.l.b16 %v4853
      %v4971 = vunpack.c.l.b16 %v4854
      %v4972 = vunpack.c.l.b16 %v4855
      %v4973 = vunpack.c.l.b16 %v4856
      %v4974 = vunpack.c.l.b16 %v4857
      %v4975 = vunpack.c.l.b16 %v4858
      %v4976 = vunpack.c.l.b16 %v4859
      %v4977 = vunpack.c.l.b16 %v4860
      %v4978 = vunpack.c.l.b16 %v4861
      %v4979 = vunpack.c.l.b16 %v4862
      %v4980 = vunpack.c.l.b16 %v4863
      %v4981 = vunpack.c.l.b16 %v4864
      %v4982 = vunpack.c.l.b16 %v4865
      %v4983 = vunpack.c.l.b16 %v4866
      %v4984 = vunpack.c.l.b16 %v4867
      %v4985 = vunpack.c.l.b16 %v4868
      %v4986 = vunpack.c.l.b16 %v4869
      %v4987 = vunpack.c.l.b16 %v4870
      %v4988 = vunpack.c.l.b16 %v4871
      %v4989 = vunpack.c.l.b16 %v4872
      %v4990 = vunpack.c.l.b16 %v4873
      %v4991 = vunpack.c.l.b16 %v4874
      %v4992 = vunpack.c.l.b16 %v4875
      %v4993 = vunpack.c.l.b16 %v4876
      %v4994 = vunpack.c.l.b16 %v4877
      %v4995 = vunpack.c.l.b16 %v4878
      %v4996 = vunpack.c.l.b16 %v4879
      %v4997 = vunpack.c.l.b16 %v4880
      %v4998 = vunpack.c.l.b16 %v4881
      %v4999 = vunpack.c.l.b16 %v4882
      %v5000 = vunpack.c.l.b16 %v4883
      %v5001 = vunpack.c.l.b16 %v4884
      %v5002 = vpack.c.b16 %v4966, %v4965
      %v5003 = vpack.c.b16 %v4968, %v4967
      %v5004 = vpack.c.b16 %v4970, %v4969
      %v5005 = vpack.c.b16 %v4972, %v4971
      %v5006 = vpack.c.b16 %v4974, %v4973
      %v5007 = vpack.c.b16 %v4976, %v4975
      %v5008 = vpack.c.b16 %v4978, %v4977
      %v5009 = vpack.c.b16 %v4980, %v4979
      %v5010 = vpack.c.b16 %v4982, %v4981
      %v5011 = vpack.c.b16 %v4984, %v4983
      %v5012 = vpack.c.b16 %v4986, %v4985
      %v5013 = vpack.c.b16 %v4988, %v4987
      %v5014 = vpack.c.b16 %v4990, %v4989
      %v5015 = vpack.c.b16 %v4992, %v4991
      %v5016 = vpack.c.b16 %v4994, %v4993
      %v5017 = vpack.c.b16 %v4996, %v4995
      %v5018 = vpack.c.b16 %v4998, %v4997
      %v5019 = vpack.c.b16 %v5000, %v4999
      %v5020 = vpack.c.b16 %v5001, %v5001
      %vm5021 = vcmask 1044480
      %v5022 = vrot.slane %v5002, 3
      %v5023 = vrot.slane %v5003, 3
      %v5024 = vsel %vm5021, %v5022, %v5023
      %v5025 = vrot.slane %v5004, 3
      %v5026 = vsel %vm5021, %v5023, %v5025
      %v5027 = vrot.slane %v5005, 3
      %v5028 = vsel %vm5021, %v5025, %v5027
      %v5029 = vrot.slane %v5006, 3
      %v5030 = vsel %vm5021, %v5027, %v5029
      %v5031 = vrot.slane %v5007, 3
      %v5032 = vsel %vm5021, %v5029, %v5031
      %v5033 = vrot.slane %v5008, 3
      %v5034 = vsel %vm5021, %v5031, %v5033
      %v5035 = vrot.slane %v5009, 3
      %v5036 = vsel %vm5021, %v5033, %v5035
      %v5037 = vrot.slane %v5010, 3
      %v5038 = vsel %vm5021, %v5035, %v5037
      %v5039 = vrot.slane %v5011, 3
      %v5040 = vsel %vm5021, %v5037, %v5039
      %v5041 = vrot.slane %v5012, 3
      %v5042 = vsel %vm5021, %v5039, %v5041
      %v5043 = vrot.slane %v5013, 3
      %v5044 = vsel %vm5021, %v5041, %v5043
      %v5045 = vrot.slane %v5014, 3
      %v5046 = vsel %vm5021, %v5043, %v5045
      %v5047 = vrot.slane %v5015, 3
      %v5048 = vsel %vm5021, %v5045, %v5047
      %v5049 = vrot.slane %v5016, 3
      %v5050 = vsel %vm5021, %v5047, %v5049
      %v5051 = vrot.slane %v5017, 3
      %v5052 = vsel %vm5021, %v5049, %v5051
      %v5053 = vrot.slane %v5018, 3
      %v5054 = vsel %vm5021, %v5051, %v5053
      %v5055 = vrot.slane %v5019, 3
      %v5056 = vsel %vm5021, %v5053, %v5055
      %v5057 = vrot.slane %v5020, 3
      %v5058 = vsel %vm5021, %v5055, %v5057
      %v5065 = vunpack.c.l.b16 %v4922
      %v5066 = vunpack.c.l.b16 %v4923
      %v5067 = vunpack.c.l.b16 %v4924
      %v5068 = vunpack.c.l.b16 %v4925
      %v5069 = vunpack.c.l.b16 %v4926
      %v5070 = vunpack.c.l.b16 %v4927
      %v5071 = vpack.c.b16 %v5066, %v5065
      %v5072 = vpack.c.b16 %v5068, %v5067
      %v5073 = vpack.c.b16 %v5070, %v5069
      %v5078 = vsel %vm445, %v5024, 0
      %v5081 = vsel %vm445, %v5026, 0
      %v5084 = vsel %vm445, %v5028, 0
      %v5087 = vsel %vm445, %v5030, 0
      %v5090 = vsel %vm445, %v5032, 0
      %v5093 = vsel %vm445, %v5034, 0
      %v5096 = vsel %vm445, %v5036, 0
      %v5099 = vsel %vm445, %v5038, 0
      %v5102 = vsel %vm445, %v5040, 0
      %v5105 = vsel %vm445, %v5042, 0
      %v5108 = vsel %vm445, %v5044, 0
      %v5111 = vsel %vm445, %v5046, 0
      %v5114 = vsel %vm445, %v5048, 0
      %v5117 = vsel %vm445, %v5050, 0
      %v5120 = vsel %vm445, %v5052, 0
      %v5123 = vsel %vm445, %v5054, 0
      %v5126 = vsel %vm445, %v5056, 0
      %v5129 = vsel %vm445, %v5058, 0
      %5131 = vmatprep.subr.bf16.mxu0 0
      %5132 = vmatpush1.bf16.msra.mxu0 %v5071
      %5133 = vmatprep.subr.bf16.mxu0 0
      %5134 = vmatpush1.bf16.msra.mxu0 %v5072
      %5135 = vmatprep.subr.bf16.mxu0 0
      %5136 = vmatpush1.bf16.msra.mxu0 %v5073
      %5137 = vmatprep.subr.bf16.mxu0 0
      %5138 = vmatpush1.bf16.msra.mxu0 0
      %5139 = vmatprep.subr.bf16.mxu0 0
      %5140 = vmatpush1.bf16.msra.mxu0 0
      %5141 = vmatprep.subr.bf16.mxu0 0
      %5142 = vmatpush1.bf16.msra.mxu0 0
      %5143 = vmatprep.subr.bf16.mxu0 0
      %5144 = vmatpush1.bf16.msra.mxu0 0
      %5145 = vmatprep.subr.bf16.mxu0 0
      %5146 = vmatpush1.bf16.msra.mxu0 0
      %5147 = vmatprep.subr.bf16.mxu0 0
      %5148 = vmatpush1.bf16.msra.mxu0 0
      %5149 = vmatprep.subr.bf16.mxu0 0
      %5150 = vmatpush1.bf16.msra.mxu0 0
      %5151 = vmatprep.subr.bf16.mxu0 0
      %5152 = vmatpush1.bf16.msra.mxu0 0
      %5153 = vmatprep.subr.bf16.mxu0 0
      %5154 = vmatpush1.bf16.msra.mxu0 0
      %5155 = vmatprep.subr.bf16.mxu0 0
      %5156 = vmatpush1.bf16.msra.mxu0 0
      %5157 = vmatprep.subr.bf16.mxu0 0
      %5158 = vmatpush1.bf16.msra.mxu0 0
      %5159 = vmatprep.subr.bf16.mxu0 0
      %5160 = vmatpush1.bf16.msra.mxu0 0
      %5161 = vmatprep.subr.bf16.mxu0 0
      %5162 = vmatpush1.bf16.msra.mxu0 0
      %5163 = vmatprep.mubr.bf16.mxu0 0
      %5164 = vmatmul.mubr.bf16.gmra.mrb[0].mxu0 %v5078
      %v5165 = vpop.f32.mrb[0].mxu0
      %v5166 = vadd.f32 0.0, %v5165
      %v5167 = vpop.f32.mrb[0].mxu0
      %v5168 = vpop.f32.mrb[0].mxu0
      %v5169 = vadd.f32 0.0, %v5168
      %v5170 = vpop.f32.mrb[0].mxu0
      %5171 = vmatprep.mubr.bf16.mxu0 0
      %5172 = vmatmul.mubr.bf16.gmra.mrb[0].mxu0 %v5081
      %v5173 = vpop.f32.mrb[0].mxu0
      %v5174 = vadd.f32 0.0, %v5173
      %v5175 = vpop.f32.mrb[0].mxu0
      %v5176 = vpop.f32.mrb[0].mxu0
      %v5177 = vadd.f32 0.0, %v5176
      %v5178 = vpop.f32.mrb[0].mxu0
      %5179 = vmatprep.mubr.bf16.mxu0 0
      %5180 = vmatmul.mubr.bf16.gmra.mrb[0].mxu0 %v5084
      %v5181 = vpop.f32.mrb[0].mxu0
      %v5182 = vadd.f32 0.0, %v5181
      %v5183 = vpop.f32.mrb[0].mxu0
      %v5184 = vpop.f32.mrb[0].mxu0
      %v5185 = vadd.f32 0.0, %v5184
      %v5186 = vpop.f32.mrb[0].mxu0
      %5187 = vmatprep.mubr.bf16.mxu0 0
      %5188 = vmatmul.mubr.bf16.gmra.mrb[0].mxu0 %v5087
      %v5189 = vpop.f32.mrb[0].mxu0
      %v5190 = vadd.f32 0.0, %v5189
      %v5191 = vpop.f32.mrb[0].mxu0
      %v5192 = vpop.f32.mrb[0].mxu0
      %v5193 = vadd.f32 0.0, %v5192
      %v5194 = vpop.f32.mrb[0].mxu0
      %5195 = vmatprep.mubr.bf16.mxu0 0
      %5196 = vmatmul.mubr.bf16.gmra.mrb[0].mxu0 %v5090
      %v5197 = vpop.f32.mrb[0].mxu0
      %v5198 = vadd.f32 0.0, %v5197
      %v5199 = vpop.f32.mrb[0].mxu0
      %v5200 = vpop.f32.mrb[0].mxu0
      %v5201 = vadd.f32 0.0, %v5200
      %v5202 = vpop.f32.mrb[0].mxu0
      %5203 = vmatprep.mubr.bf16.mxu0 0
      %5204 = vmatmul.mubr.bf16.gmra.mrb[0].mxu0 %v5093
      %v5205 = vpop.f32.mrb[0].mxu0
      %v5206 = vadd.f32 0.0, %v5205
      %v5207 = vpop.f32.mrb[0].mxu0
      %v5208 = vpop.f32.mrb[0].mxu0
      %v5209 = vadd.f32 0.0, %v5208
      %v5210 = vpop.f32.mrb[0].mxu0
      %5211 = vmatprep.mubr.bf16.mxu0 0
      %5212 = vmatmul.mubr.bf16.gmra.mrb[0].mxu0 %v5096
      %v5213 = vpop.f32.mrb[0].mxu0
      %v5214 = vadd.f32 0.0, %v5213
      %v5215 = vpop.f32.mrb[0].mxu0
      %v5216 = vpop.f32.mrb[0].mxu0
      %v5217 = vadd.f32 0.0, %v5216
      %v5218 = vpop.f32.mrb[0].mxu0
      %5219 = vmatprep.mubr.bf16.mxu0 0
      %5220 = vmatmul.mubr.bf16.gmra.mrb[0].mxu0 %v5099
      %v5221 = vpop.f32.mrb[0].mxu0
      %v5222 = vadd.f32 0.0, %v5221
      %v5223 = vpop.f32.mrb[0].mxu0
      %v5224 = vpop.f32.mrb[0].mxu0
      %v5225 = vadd.f32 0.0, %v5224
      %v5226 = vpop.f32.mrb[0].mxu0
      %5227 = vmatprep.mubr.bf16.mxu0 0
      %5228 = vmatmul.mubr.bf16.gmra.mrb[0].mxu0 %v5102
      %v5229 = vpop.f32.mrb[0].mxu0
      %v5230 = vadd.f32 0.0, %v5229
      %v5231 = vpop.f32.mrb[0].mxu0
      %v5232 = vpop.f32.mrb[0].mxu0
      %v5233 = vadd.f32 0.0, %v5232
      %v5234 = vpop.f32.mrb[0].mxu0
      %5235 = vmatprep.mubr.bf16.mxu0 0
      %5236 = vmatmul.mubr.bf16.gmra.mrb[0].mxu0 %v5105
      %v5237 = vpop.f32.mrb[0].mxu0
      %v5238 = vadd.f32 0.0, %v5237
      %v5239 = vpop.f32.mrb[0].mxu0
      %v5240 = vpop.f32.mrb[0].mxu0
      %v5241 = vadd.f32 0.0, %v5240
      %v5242 = vpop.f32.mrb[0].mxu0
      %5243 = vmatprep.mubr.bf16.mxu0 0
      %5244 = vmatmul.mubr.bf16.gmra.mrb[0].mxu0 %v5108
      %v5245 = vpop.f32.mrb[0].mxu0
      %v5246 = vadd.f32 0.0, %v5245
      %v5247 = vpop.f32.mrb[0].mxu0
      %v5248 = vpop.f32.mrb[0].mxu0
      %v5249 = vadd.f32 0.0, %v5248
      %v5250 = vpop.f32.mrb[0].mxu0
      %5251 = vmatprep.mubr.bf16.mxu0 0
      %5252 = vmatmul.mubr.bf16.gmra.mrb[0].mxu0 %v5111
      %v5253 = vpop.f32.mrb[0].mxu0
      %v5254 = vadd.f32 0.0, %v5253
      %v5255 = vpop.f32.mrb[0].mxu0
      %v5256 = vpop.f32.mrb[0].mxu0
      %v5257 = vadd.f32 0.0, %v5256
      %v5258 = vpop.f32.mrb[0].mxu0
      %5259 = vmatprep.mubr.bf16.mxu0 0
      %5260 = vmatmul.mubr.bf16.gmra.mrb[0].mxu0 %v5114
      %v5261 = vpop.f32.mrb[0].mxu0
      %v5262 = vadd.f32 0.0, %v5261
      %v5263 = vpop.f32.mrb[0].mxu0
      %v5264 = vpop.f32.mrb[0].mxu0
      %v5265 = vadd.f32 0.0, %v5264
      %v5266 = vpop.f32.mrb[0].mxu0
      %5267 = vmatprep.mubr.bf16.mxu0 0
      %5268 = vmatmul.mubr.bf16.gmra.mrb[0].mxu0 %v5117
      %v5269 = vpop.f32.mrb[0].mxu0
      %v5270 = vadd.f32 0.0, %v5269
      %v5271 = vpop.f32.mrb[0].mxu0
      %v5272 = vpop.f32.mrb[0].mxu0
      %v5273 = vadd.f32 0.0, %v5272
      %v5274 = vpop.f32.mrb[0].mxu0
      %5275 = vmatprep.mubr.bf16.mxu0 0
      %5276 = vmatmul.mubr.bf16.gmra.mrb[0].mxu0 %v5120
      %v5277 = vpop.f32.mrb[0].mxu0
      %v5278 = vadd.f32 0.0, %v5277
      %v5279 = vpop.f32.mrb[0].mxu0
      %v5280 = vpop.f32.mrb[0].mxu0
      %v5281 = vadd.f32 0.0, %v5280
      %v5282 = vpop.f32.mrb[0].mxu0
      %5283 = vmatprep.mubr.bf16.mxu0 0
      %5284 = vmatmul.mubr.bf16.gmra.mrb[0].mxu0 %v5123
      %v5285 = vpop.f32.mrb[0].mxu0
      %v5286 = vadd.f32 0.0, %v5285
      %v5287 = vpop.f32.mrb[0].mxu0
      %v5288 = vpop.f32.mrb[0].mxu0
      %v5289 = vadd.f32 0.0, %v5288
      %v5290 = vpop.f32.mrb[0].mxu0
      %5291 = vmatprep.mubr.bf16.mxu0 0
      %5292 = vmatmul.mubr.bf16.gmra.mrb[0].mxu0 %v5126
      %v5293 = vpop.f32.mrb[0].mxu0
      %v5294 = vadd.f32 0.0, %v5293
      %v5295 = vpop.f32.mrb[0].mxu0
      %v5296 = vpop.f32.mrb[0].mxu0
      %v5297 = vadd.f32 0.0, %v5296
      %v5298 = vpop.f32.mrb[0].mxu0
      %5299 = vmatprep.mubr.bf16.mxu0 0
      %5300 = vmatmul.mubr.bf16.gmra.mrb[0].mxu0 %v5129
      %v5301 = vpop.f32.mrb[0].mxu0
      %v5302 = vadd.f32 0.0, %v5301
      %v5303 = vpop.f32.mrb[0].mxu0
      %v5304 = vpop.f32.mrb[0].mxu0
      %v5305 = vadd.f32 0.0, %v5304
      %v5306 = vpop.f32.mrb[0].mxu0
      %5307 = vdwg.mxu0
      %v5308 = vadd.f32 %v4885, %v5166
      %v5309 = vadd.f32 %v4886, %v5169
      %v5310 = vadd.f32 %v4887, %v5174
      %v5311 = vadd.f32 %v4888, %v5177
      %v5312 = vadd.f32 %v4889, %v5182
      %v5313 = vadd.f32 %v4890, %v5185
      %v5314 = vadd.f32 %v4891, %v5190
      %v5315 = vadd.f32 %v4892, %v5193
      %v5316 = vadd.f32 %v4893, %v5198
      %v5317 = vadd.f32 %v4894, %v5201
      %v5318 = vadd.f32 %v4895, %v5206
      %v5319 = vadd.f32 %v4896, %v5209
      %v5320 = vadd.f32 %v4897, %v5214
      %v5321 = vadd.f32 %v4898, %v5217
      %v5322 = vadd.f32 %v4899, %v5222
      %v5323 = vadd.f32 %v4900, %v5225
      %v5324 = vadd.f32 %v4901, %v5230
      %v5325 = vadd.f32 %v4902, %v5233
      %v5326 = vadd.f32 %v4903, %v5238
      %v5327 = vadd.f32 %v4904, %v5241
      %v5328 = vadd.f32 %v4905, %v5246
      %v5329 = vadd.f32 %v4906, %v5249
      %v5330 = vadd.f32 %v4907, %v5254
      %v5331 = vadd.f32 %v4908, %v5257
      %v5332 = vadd.f32 %v4909, %v5262
      %v5333 = vadd.f32 %v4910, %v5265
      %v5334 = vadd.f32 %v4911, %v5270
      %v5335 = vadd.f32 %v4912, %v5273
      %v5336 = vadd.f32 %v4913, %v5278
      %v5337 = vadd.f32 %v4914, %v5281
      %v5338 = vadd.f32 %v4915, %v5286
      %v5339 = vadd.f32 %v4916, %v5289
      %v5340 = vadd.f32 %v4917, %v5294
      %v5341 = vadd.f32 %v4918, %v5297
      %v5342 = vadd.f32 %v4919, %v5302
      %v5343 = vadd.f32 %v4920, %v5305
      %5344 = vst [vmem:[#allocation2] sm:$0xff] %v5308
      %5345 = vst [vmem:[#allocation2 + $0x8] sm:$0xff] %v5309
      %5346 = vst [vmem:[#allocation2 + $0x10] sm:$0xff] %v5310
      %5347 = vst [vmem:[#allocation2 + $0x18] sm:$0xff] %v5311
      %5348 = vst [vmem:[#allocation2 + $0x20] sm:$0xff] %v5312
      %5349 = vst [vmem:[#allocation2 + $0x28] sm:$0xff] %v5313
      %5350 = vst [vmem:[#allocation2 + $0x30] sm:$0xff] %v5314
      %5351 = vst [vmem:[#allocation2 + $0x38] sm:$0xff] %v5315
      %5352 = vst [vmem:[#allocation2 + $0x40] sm:$0xff] %v5316
      %5353 = vst [vmem:[#allocation2 + $0x48] sm:$0xff] %v5317
      %5354 = vst [vmem:[#allocation2 + $0x50] sm:$0xff] %v5318
      %5355 = vst [vmem:[#allocation2 + $0x58] sm:$0xff] %v5319
      %5356 = vst [vmem:[#allocation2 + $0x60] sm:$0xff] %v5320
      %5357 = vst [vmem:[#allocation2 + $0x68] sm:$0xff] %v5321
      %5358 = vst [vmem:[#allocation2 + $0x70] sm:$0xff] %v5322
      %5359 = vst [vmem:[#allocation2 + $0x78] sm:$0xff] %v5323
      %5360 = vst [vmem:[#allocation2 + $0x80] sm:$0xff] %v5324
      %5361 = vst [vmem:[#allocation2 + $0x88] sm:$0xff] %v5325
      %5362 = vst [vmem:[#allocation2 + $0x90] sm:$0xff] %v5326
      %5363 = vst [vmem:[#allocation2 + $0x98] sm:$0xff] %v5327
      %5364 = vst [vmem:[#allocation2 + $0xa0] sm:$0xff] %v5328
      %5365 = vst [vmem:[#allocation2 + $0xa8] sm:$0xff] %v5329
      %5366 = vst [vmem:[#allocation2 + $0xb0] sm:$0xff] %v5330
      %5367 = vst [vmem:[#allocation2 + $0xb8] sm:$0xff] %v5331
      %5368 = vst [vmem:[#allocation2 + $0xc0] sm:$0xff] %v5332
      %5369 = vst [vmem:[#allocation2 + $0xc8] sm:$0xff] %v5333
      %5370 = vst [vmem:[#allocation2 + $0xd0] sm:$0xff] %v5334
      %5371 = vst [vmem:[#allocation2 + $0xd8] sm:$0xff] %v5335
      %5372 = vst [vmem:[#allocation2 + $0xe0] sm:$0xff] %v5336
      %5373 = vst [vmem:[#allocation2 + $0xe8] sm:$0xff] %v5337
      %5374 = vst [vmem:[#allocation2 + $0xf0] sm:$0xff] %v5338
      %5375 = vst [vmem:[#allocation2 + $0xf8] sm:$0xff] %v5339
      %5376 = vst [vmem:[#allocation2 + $0x100] sm:$0xff] %v5340
      %5377 = vst [vmem:[#allocation2 + $0x108] sm:$0xff] %v5341
      %5378 = vst [vmem:[#allocation2 + $0x110] sm:$0xff] %v5342
      %5379 = vst [vmem:[#allocation2 + $0x118] sm:$0xff] %v5343
      %v5380 = vld [vmem:[#allocation2] sm:$0xff]
      %v5381 = vld [vmem:[#allocation2 + $0x8] sm:$0xff]
      %v5382 = vld [vmem:[#allocation2 + $0x10] sm:$0xff]
      %v5383 = vld [vmem:[#allocation2 + $0x18] sm:$0xff]
      %v5384 = vld [vmem:[#allocation2 + $0x20] sm:$0xff]
      %v5385 = vld [vmem:[#allocation2 + $0x28] sm:$0xff]
      %v5386 = vld [vmem:[#allocation2 + $0x30] sm:$0xff]
      %v5387 = vld [vmem:[#allocation2 + $0x38] sm:$0xff]
      %v5388 = vld [vmem:[#allocation2 + $0x40] sm:$0xff]
      %v5389 = vld [vmem:[#allocation2 + $0x48] sm:$0xff]
      %v5390 = vld [vmem:[#allocation2 + $0x50] sm:$0xff]
      %v5391 = vld [vmem:[#allocation2 + $0x58] sm:$0xff]
      %v5392 = vld [vmem:[#allocation2 + $0x60] sm:$0xff]
      %v5393 = vld [vmem:[#allocation2 + $0x68] sm:$0xff]
      %v5394 = vld [vmem:[#allocation2 + $0x70] sm:$0xff]
      %v5395 = vld [vmem:[#allocation2 + $0x78] sm:$0xff]
      %v5396 = vld [vmem:[#allocation2 + $0x80] sm:$0xff]
      %v5397 = vld [vmem:[#allocation2 + $0x88] sm:$0xff]
      %v5398 = vld [vmem:[#allocation2 + $0x90] sm:$0xff]
      %v5399 = vld [vmem:[#allocation2 + $0x98] sm:$0xff]
      %v5400 = vld [vmem:[#allocation2 + $0xa0] sm:$0xff]
      %v5401 = vld [vmem:[#allocation2 + $0xa8] sm:$0xff]
      %v5402 = vld [vmem:[#allocation2 + $0xb0] sm:$0xff]
      %v5403 = vld [vmem:[#allocation2 + $0xb8] sm:$0xff]
      %v5404 = vld [vmem:[#allocation2 + $0xc0] sm:$0xff]
      %v5405 = vld [vmem:[#allocation2 + $0xc8] sm:$0xff]
      %v5406 = vld [vmem:[#allocation2 + $0xd0] sm:$0xff]
      %v5407 = vld [vmem:[#allocation2 + $0xd8] sm:$0xff]
      %v5408 = vld [vmem:[#allocation2 + $0xe0] sm:$0xff]
      %v5409 = vld [vmem:[#allocation2 + $0xe8] sm:$0xff]
      %v5410 = vld [vmem:[#allocation2 + $0xf0] sm:$0xff]
      %v5411 = vld [vmem:[#allocation2 + $0xf8] sm:$0xff]
      %v5412 = vld [vmem:[#allocation2 + $0x100] sm:$0xff]
      %v5413 = vld [vmem:[#allocation2 + $0x108] sm:$0xff]
      %v5414 = vld [vmem:[#allocation2 + $0x110] sm:$0xff]
      %v5415 = vld [vmem:[#allocation2 + $0x118] sm:$0xff]
      %v5416 = vld [vmem:[%s213] sm:$0x1]
      %v5418 = vlaneseq
      %v5419 = vshrl.u32 %v5418, 7
      %v5420 = vsub.s32 0, %v5419
      %v5421 = vrot.slane %v5416, %v5420
      %v5423 = vadd.f32 %v5380, %v5421
      %v5424 = vadd.f32 %v5381, %v5421
      %v5425 = vadd.f32 %v5382, %v5421
      %v5426 = vadd.f32 %v5383, %v5421
      %v5427 = vadd.f32 %v5384, %v5421
      %v5428 = vadd.f32 %v5385, %v5421
      %v5429 = vadd.f32 %v5386, %v5421
      %v5430 = vadd.f32 %v5387, %v5421
      %v5431 = vadd.f32 %v5388, %v5421
      %v5432 = vadd.f32 %v5389, %v5421
      %v5433 = vadd.f32 %v5390, %v5421
      %v5434 = vadd.f32 %v5391, %v5421
      %v5435 = vadd.f32 %v5392, %v5421
      %v5436 = vadd.f32 %v5393, %v5421
      %v5437 = vadd.f32 %v5394, %v5421
      %v5438 = vadd.f32 %v5395, %v5421
      %v5439 = vadd.f32 %v5396, %v5421
      %v5440 = vadd.f32 %v5397, %v5421
      %v5441 = vadd.f32 %v5398, %v5421
      %v5442 = vadd.f32 %v5399, %v5421
      %v5443 = vadd.f32 %v5400, %v5421
      %v5444 = vadd.f32 %v5401, %v5421
      %v5445 = vadd.f32 %v5402, %v5421
      %v5446 = vadd.f32 %v5403, %v5421
      %v5447 = vadd.f32 %v5404, %v5421
      %v5448 = vadd.f32 %v5405, %v5421
      %v5449 = vadd.f32 %v5406, %v5421
      %v5450 = vadd.f32 %v5407, %v5421
      %v5451 = vadd.f32 %v5408, %v5421
      %v5452 = vadd.f32 %v5409, %v5421
      %v5453 = vadd.f32 %v5410, %v5421
      %v5454 = vadd.f32 %v5411, %v5421
      %v5455 = vadd.f32 %v5412, %v5421
      %v5456 = vadd.f32 %v5413, %v5421
      %v5457 = vadd.f32 %v5414, %v5421
      %v5458 = vadd.f32 %v5415, %v5421
      %v5459 = vmax.f32 %v5423, 0.0
      %v5460 = vmax.f32 %v5424, 0.0
      %v5461 = vmax.f32 %v5425, 0.0
      %v5462 = vmax.f32 %v5426, 0.0
      %v5463 = vmax.f32 %v5427, 0.0
      %v5464 = vmax.f32 %v5428, 0.0
      %v5465 = vmax.f32 %v5429, 0.0
      %v5466 = vmax.f32 %v5430, 0.0
      %v5467 = vmax.f32 %v5431, 0.0
      %v5468 = vmax.f32 %v5432, 0.0
      %v5469 = vmax.f32 %v5433, 0.0
      %v5470 = vmax.f32 %v5434, 0.0
      %v5471 = vmax.f32 %v5435, 0.0
      %v5472 = vmax.f32 %v5436, 0.0
      %v5473 = vmax.f32 %v5437, 0.0
      %v5474 = vmax.f32 %v5438, 0.0
      %v5475 = vmax.f32 %v5439, 0.0
      %v5476 = vmax.f32 %v5440, 0.0
      %v5477 = vmax.f32 %v5441, 0.0
      %v5478 = vmax.f32 %v5442, 0.0
      %v5479 = vmax.f32 %v5443, 0.0
      %v5480 = vmax.f32 %v5444, 0.0
      %v5481 = vmax.f32 %v5445, 0.0
      %v5482 = vmax.f32 %v5446, 0.0
      %v5483 = vmax.f32 %v5447, 0.0
      %v5484 = vmax.f32 %v5448, 0.0
      %v5485 = vmax.f32 %v5449, 0.0
      %v5486 = vmax.f32 %v5450, 0.0
      %v5487 = vmax.f32 %v5451, 0.0
      %v5488 = vmax.f32 %v5452, 0.0
      %v5489 = vmax.f32 %v5453, 0.0
      %v5490 = vmax.f32 %v5454, 0.0
      %v5491 = vmax.f32 %v5455, 0.0
      %v5492 = vmax.f32 %v5456, 0.0
      %v5493 = vmax.f32 %v5457, 0.0
      %v5494 = vmax.f32 %v5458, 0.0
      %5495 = vst [vmem:[%s221] sm:$0xff] %v5459
      %5496 = vst [vmem:[%s221 + $0x8] sm:$0xff] %v5460
      %5497 = vst [vmem:[%s221 + $0x10] sm:$0xff] %v5461
      %5498 = vst [vmem:[%s221 + $0x18] sm:$0xff] %v5462
      %5499 = vst [vmem:[%s221 + $0x20] sm:$0xff] %v5463
      %5500 = vst [vmem:[%s221 + $0x28] sm:$0xff] %v5464
      %5501 = vst [vmem:[%s221 + $0x30] sm:$0xff] %v5465
      %5502 = vst [vmem:[%s221 + $0x38] sm:$0xff] %v5466
      %5503 = vst [vmem:[%s221 + $0x40] sm:$0xff] %v5467
      %5504 = vst [vmem:[%s221 + $0x48] sm:$0xff] %v5468
      %5505 = vst [vmem:[%s221 + $0x50] sm:$0xff] %v5469
      %5506 = vst [vmem:[%s221 + $0x58] sm:$0xff] %v5470
      %5507 = vst [vmem:[%s221 + $0x60] sm:$0xff] %v5471
      %5508 = vst [vmem:[%s221 + $0x68] sm:$0xff] %v5472
      %5509 = vst [vmem:[%s221 + $0x70] sm:$0xff] %v5473
      %5510 = vst [vmem:[%s221 + $0x78] sm:$0xff] %v5474
      %5511 = vst [vmem:[%s221 + $0x80] sm:$0xff] %v5475
      %5512 = vst [vmem:[%s221 + $0x88] sm:$0xff] %v5476
      %5513 = vst [vmem:[%s221 + $0x90] sm:$0xff] %v5477
      %5514 = vst [vmem:[%s221 + $0x98] sm:$0xff] %v5478
      %5515 = vst [vmem:[%s221 + $0xa0] sm:$0xff] %v5479
      %5516 = vst [vmem:[%s221 + $0xa8] sm:$0xff] %v5480
      %5517 = vst [vmem:[%s221 + $0xb0] sm:$0xff] %v5481
      %5518 = vst [vmem:[%s221 + $0xb8] sm:$0xff] %v5482
      %5519 = vst [vmem:[%s221 + $0xc0] sm:$0xff] %v5483
      %5520 = vst [vmem:[%s221 + $0xc8] sm:$0xff] %v5484
      %5521 = vst [vmem:[%s221 + $0xd0] sm:$0xff] %v5485
      %5522 = vst [vmem:[%s221 + $0xd8] sm:$0xff] %v5486
      %5523 = vst [vmem:[%s221 + $0xe0] sm:$0xff] %v5487
      %5524 = vst [vmem:[%s221 + $0xe8] sm:$0xff] %v5488
      %5525 = vst [vmem:[%s221 + $0xf0] sm:$0xff] %v5489
      %5526 = vst [vmem:[%s221 + $0xf8] sm:$0xff] %v5490
      %5527 = vst [vmem:[%s221 + $0x100] sm:$0xff] %v5491
      %5528 = vst [vmem:[%s221 + $0x108] sm:$0xff] %v5492
      %5529 = vst [vmem:[%s221 + $0x110] sm:$0xff] %v5493
      %5530 = vst [vmem:[%s221 + $0x118] sm:$0xff] %v5494
      %p5531 = scmp.lt.s32.totalorder %s18, 1
      %s5532 = scalar_select %p5531, %s18, 1
      %p5533 = scmp.lt.s32.totalorder %s19, 0
      %s5534 = scalar_select %p5533, %s19, 0
      %s5535 = smul.addr %s5532, 36
      %s5536 = sadd.s32 %s5534, %s5535
      %s5537 = smul.addr %s5536, 8
      %s5538 = scalar_lea.vmem %s3, %s5537
      // Predicated region
      $region33: #{alexnet_feat_forward.2} parent=31 // pred_check
        %p5539 = pneg %p124
      $region34: #{alexnet_feat_forward.2} parent=31 // pred_check_branch
        %5541 = sbr.rel (%p5539) target = $region36
      $region35: #{alexnet_feat_forward.2} parent=31 // pred_region
        _
      $region36: #{alexnet_feat_forward.2} parent=31 // pred_fallthru
        _
    $region32: #{alexnet_feat_forward.2} parent=5 // pred_fallthru
      _
    %p5542 = scmp.le.s32.totalorder 2, %s9
    // Predicated region
    $region37: #{alexnet_feat_forward.2} parent=5 // pred_check
      %p5543 = pneg %p5542
    $region38: #{alexnet_feat_forward.2} parent=5 // pred_check_branch
      %5545 = sbr.rel (%p5543) target = $region40
    $region39: #{alexnet_feat_forward.2} parent=5 // pred_region
      %s5546 = ssub.s32 %s9, 2
      // Predicated region
      $region41: #{alexnet_feat_forward.2} parent=39 // pred_check
        %p5547 = pneg %p130
      $region42: #{alexnet_feat_forward.2} parent=39 // pred_check_branch
        %5549 = sbr.rel (%p5547) target = $region44
      $region43: #{alexnet_feat_forward.2} parent=39 // pred_region
        %p5550 = scmp.lt.s32.totalorder %s20, 1
        %s5551 = scalar_select %p5550, %s20, 1
        %p5552 = scmp.lt.s32.totalorder %s21, 0
        %s5553 = scalar_select %p5552, %s21, 0
        %s5554 = smul.addr %s5551, 36
        %s5555 = sadd.s32 %s5553, %s5554
        %s5556 = smul.addr %s5555, 8
        %s5557 = scalar_lea.vmem %s3, %s5556
      $region44: #{alexnet_feat_forward.2} parent=39 // pred_fallthru
        _
    $region40: #{alexnet_feat_forward.2} parent=5 // pred_fallthru
      _
  $region6: #{alexnet_feat_forward.2} parent=0 // loop_footer
    %s13 = sadd.s32 1, %s9
  $region7: #{alexnet_feat_forward.2} parent=0 // loop_footer_branch
    %8 = sbr.rel target = $region3
  $region8: #{alexnet_feat_forward.2} parent=0 // loop_exit
    _

</llo_original>
